<compile_context>
chip_gen: v5e
topology: v5e:2x2
jax: 0.10.0
libtpu: 0.0.40
codegen_flags: <defaults>
</compile_context>

<pallas_src>
import functools

import jax
import jax.numpy as jnp
from jax.experimental import pallas as pl
from jax.experimental.pallas import tpu as pltpu

EPS = 1e-5                       # nn.BatchNorm2d default eps
TM = 256                         # matmul M-tile (M is padded up to a multiple of this)
                                 # TODO(synk): 128 can be better on v5e, 512 on v6e for huge M
VMEM_LIMIT = 32 * 1024 * 1024    # raise v5e's 16 MiB default scoped-VMEM limit


def _round_up(x, m):
    return (x + m - 1) // m * m


def _const_spec(block_shape, index_map):
    """BlockSpec for operands whose block never changes: single-buffer them."""
    if hasattr(pl, "Buffered"):
        try:
            return pl.BlockSpec(block_shape, index_map, pipeline_mode=pl.Buffered(1))
        except TypeError:
            pass
    return pl.BlockSpec(block_shape, index_map)


def _fold_bn(bn, cout):
    gamma, beta, mean, var = bn
    scale = gamma * jax.lax.rsqrt(var + EPS)
    bias = (beta - mean * scale).reshape(1, cout).astype(jnp.float32)
    return scale, bias


# ---------------------------------------------------------------------------
# Fused 1x1-conv / matmul kernel: out = relu?( A @ B + bias (+ residual) )
#   A: (TM, K) bf16, B: (K, N) bf16 (BN scale pre-folded), bias: (1, N) f32,
#   residual: (TM, N) bf16.  Single K step -> no accumulator scratch.
# ---------------------------------------------------------------------------
def _mm_bn_act_kernel(*refs, relu, has_res):
    if has_res:
        a_ref, b_ref, c_ref, r_ref, o_ref = refs
    else:
        a_ref, b_ref, c_ref, o_ref = refs
        r_ref = None
    y = jnp.dot(a_ref[...], b_ref[...], preferred_element_type=jnp.float32)
    y = y + c_ref[...]
    if r_ref is not None:
        y = y + r_ref[...].astype(jnp.float32)
    if relu:
        y = jnp.maximum(y, 0.0)
    o_ref[...] = y.astype(o_ref.dtype)


def _matmul_bias_act(a, b, bias, residual=None, relu=False):
    """(M,K)@(K,N) + bias[1,N] (+ residual[M,N]) with optional ReLU; bf16 out."""
    M, K = a.shape
    N = b.shape[1]
    Mp = _round_up(M, TM)
    if Mp != M:
        a = jnp.pad(a, ((0, Mp - M), (0, 0)))
        if residual is not None:
            residual = jnp.pad(residual, ((0, Mp - M), (0, 0)))

    in_specs = [
        pl.BlockSpec((TM, K), lambda i: (i, 0)),
        _const_spec((K, N), lambda i: (0, 0)),     # weights: fetched once, 1 buffer
        _const_spec((1, N), lambda i: (0, 0)),     # bias:    fetched once, 1 buffer
    ]
    args = [a, b, bias]
    if residual is not None:
        in_specs.append(pl.BlockSpec((TM, N), lambda i: (i, 0)))
        args.append(residual)

    # TODO(synk): K stays a single full-extent tile (fine for Bottleneck channel
    # counts <= 2048); a much larger K would need a k-split accumulator.
    out = pl.pallas_call(
        functools.partial(_mm_bn_act_kernel, relu=relu,
                          has_res=residual is not None),
        out_shape=jax.ShapeDtypeStruct((Mp, N), jnp.bfloat16),
        grid_spec=pltpu.PrefetchScalarGridSpec(
            num_scalar_prefetch=0,
            grid=(Mp // TM,),
            in_specs=in_specs,
            out_specs=pl.BlockSpec((TM, N), lambda i: (i, 0)),
        ),
        compiler_params=pltpu.CompilerParams(
            dimension_semantics=("parallel",),
            vmem_limit_bytes=VMEM_LIMIT),
    )(*args)
    return out[:M] if Mp != M else out


def conv1x1_bn_act(x_nhwc, w_oihw, bn, relu, residual_nhwc=None):
    """1x1 conv (stride handled by caller) + BN + optional residual + ReLU."""
    nb, H, W, cin = x_nhwc.shape
    cout = w_oihw.shape[0]
    M = nb * H * W
    scale, bias = _fold_bn(bn, cout)
    a = x_nhwc.reshape(M, cin).astype(jnp.bfloat16)
    b = (w_oihw.reshape(cout, cin).T * scale.reshape(1, cout)).astype(jnp.bfloat16)
    res = None
    if residual_nhwc is not None:
        res = residual_nhwc.reshape(M, cout).astype(jnp.bfloat16)
    y = _matmul_bias_act(a, b, bias, residual=res, relu=relu)
    return y.reshape(nb, H, W, cout)


# ---------------------------------------------------------------------------
# Fused conv1(1x1+BN1+ReLU) -> conv2(3x3+BN2+ReLU) kernel, row-tiled.
# No im2col: the activation is parity-decomposed and flattened over (H, W) so
# every 3x3 tap is a contiguous window; the conv1 output for the rows a tile
# needs is computed in VMEM/vregs and never written to HBM.
# ---------------------------------------------------------------------------
def _fused_conv1_conv3x3_kernel(x_ref, w1_ref, w2_ref, b2_ref, o_ref, *,
                                kh, kw, stride, Lw, TR, relu):
    # x_ref : (s*s, Lh*Lw + tail, cin+1) bf16  parity slab of x + "valid" channel
    # w1_ref: (cin+1, planes)            bf16  BN1-scaled 1x1 weights, last row = BN1 bias
    # w2_ref: (kh*kw, planes, cout)      bf16  BN2-scaled 3x3 weights
    # b2_ref: (1, cout)                  f32   BN2 bias
    # o_ref : (1, TR*Lw, cout)           bf16  one (wide) output row tile
    s = stride
    ay_max = (kh - 1) // s
    ax_max = (kw - 1) // s
    cout = w2_ref.shape[2]
    r = pl.program_id(1)

    step = TR * Lw
    nrows = (TR + ay_max) * Lw + ax_max       # conv1 rows this tile touches
    base = r * step
    if step % 8 == 0:
        base = pl.multiple_of(base, 8)

    # stage 1: 1x1 conv + BN1 + ReLU, only on the rows this row-tile needs.
    # Padded positions come out exactly 0 because x's "valid" channel is 0 there.
    w1 = w1_ref[...]
    y = []
    for p in range(s * s):                    # static unroll over stride parities
        xs = x_ref[p, pl.ds(base, nrows), :]
        z = jnp.dot(xs, w1, preferred_element_type=jnp.float32)
        y.append(jnp.maximum(z, 0.0).astype(jnp.bfloat16))

    # stage 2: 3x3 conv + BN2 (+ ReLU) as kh*kw tap matmuls over static slices.
    acc = jnp.zeros((TR * Lw, cout), jnp.float32)
    for ki in range(kh):                      # static unroll over the taps
        for kj in range(kw):
            py, ay = ki % s, ki // s
            px, ax = kj % s, kj // s
            start = ay * Lw + ax
            patch = y[py * s + px][start:start + TR * Lw, :]
            acc = acc + jnp.dot(patch, w2_ref[ki * kw + kj],
                                preferred_element_type=jnp.float32)
    out = acc + b2_ref[...]
    if relu:
        out = jnp.maximum(out, 0.0)
    o_ref[0] = out.astype(o_ref.dtype)


def conv1_conv3x3_fused(x_nhwc, w1_oihw, bn1, w2_oihw, bn2, stride, pad, relu=True):
    nb, H, W, cin = x_nhwc.shape
    planes = w1_oihw.shape[0]
    cout2, _, kh, kw = w2_oihw.shape
    s = stride
    Ho = (H + 2 * pad - kh) // s + 1
    Wo = (W + 2 * pad - kw) // s + 1
    ay_max = (kh - 1) // s
    ax_max = (kw - 1) // s
    Lh = ay_max + Ho                    # rows needed per stride-parity
    Lw = ax_max + Wo                    # flattened row pitch ("wide" output cols)
    if Lw > 16:                         # sublane-align the pitch when it is cheap
        Lw = _round_up(Lw, 8)
    tail = ax_max                       # slack so every tap slice stays in-bounds

    # Fold BN1 scale into W1; BN1 bias enters through an appended "valid" channel
    # (1 inside the image, 0 in the conv padding) so padded rows stay exactly 0.
    scale1, bias1 = _fold_bn(bn1, planes)
    w1 = w1_oihw.reshape(planes, cin).T * scale1.reshape(1, planes)
    w1 = jnp.concatenate([w1, bias1], axis=0).astype(jnp.bfloat16)   # (cin+1, planes)

    scale2, bias2 = _fold_bn(bn2, cout2)
    w2 = (jnp.transpose(w2_oihw, (2, 3, 1, 0)).reshape(kh * kw, planes, cout2)
          * scale2.reshape(1, 1, cout2)).astype(jnp.bfloat16)

    # Pad once, append the valid channel, split into stride parities, flatten.
    valid = jnp.ones((nb, H, W, 1), x_nhwc.dtype)
    xa = jnp.concatenate([x_nhwc, valid], axis=-1)
    xp = jnp.pad(xa, ((0, 0),
                      (pad, s * Lh - H - pad),
                      (pad, s * Lw - W - pad),
                      (0, 0)))
    if s == 1:                          # no parity stack / extra copy for stride 1
        xf = xp.reshape(nb, Lh * Lw, cin + 1)
    else:
        taps = [xp[:, p::s, q::s, :] for p in range(s) for q in range(s)]
        xf = jnp.stack(taps, axis=1).reshape(nb * s * s, Lh * Lw, cin + 1)
    xf = jnp.pad(xf, ((0, 0), (0, tail), (0, 0))).astype(jnp.bfloat16)

    # Row tile: largest divisor of Ho <= 32 whose output block rows are 8-aligned
    # (a full-extent block is exempt from the (8,128) divisibility rule).
    cands = [d for d in range(1, min(Ho, 32) + 1)
             if Ho % d == 0 and (d == Ho or (d * Lw) % 8 == 0)]
    TR = max(cands) if cands else Ho
    n_rt = Ho // TR

    out = pl.pallas_call(
        functools.partial(_fused_conv1_conv3x3_kernel, kh=kh, kw=kw, stride=s,
                          Lw=Lw, TR=TR, relu=relu),
        out_shape=jax.ShapeDtypeStruct((nb, Ho * Lw, cout2), jnp.bfloat16),
        grid_spec=pltpu.PrefetchScalarGridSpec(
            num_scalar_prefetch=0,
            grid=(nb, n_rt),
            in_specs=[
                pl.BlockSpec((s * s, Lh * Lw + tail, cin + 1),
                             lambda n, r: (n, 0, 0)),
                _const_spec((cin + 1, planes), lambda n, r: (0, 0)),
                _const_spec((kh * kw, planes, cout2), lambda n, r: (0, 0, 0)),
                _const_spec((1, cout2), lambda n, r: (0, 0)),
            ],
            out_specs=pl.BlockSpec((1, TR * Lw, cout2), lambda n, r: (n, r, 0)),
        ),
        compiler_params=pltpu.CompilerParams(
            dimension_semantics=("parallel", "parallel"),
            vmem_limit_bytes=VMEM_LIMIT),
    )(xf, w1, w2, bias2)
    # drop the junk columns (wide Lw -> true Wo); reshape is free
    return out.reshape(nb, Ho, Lw, cout2)[:, :, :Wo, :]


# ---------------------------------------------------------------------------
# Bottleneck parameters (deterministic synthetic init, shapes match nn.Module)
# ---------------------------------------------------------------------------
def _conv_w(key, cout, cin, kh, kw):
    fan_in = cin * kh * kw
    return jax.random.normal(key, (cout, cin, kh, kw), jnp.float32) / jnp.sqrt(fan_in)


def _bn_params(key, c):
    k1, k2, k3, k4 = jax.random.split(key, 4)
    gamma = 1.0 + 0.1 * jax.random.normal(k1, (c,), jnp.float32)
    beta = 0.1 * jax.random.normal(k2, (c,), jnp.float32)
    mean = 0.1 * jax.random.normal(k3, (c,), jnp.float32)
    var = jax.random.uniform(k4, (c,), jnp.float32, minval=0.5, maxval=1.5)
    return (gamma, beta, mean, var)


def init_bottleneck_params(key, in_planes, planes, stride=1):
    expansion = 4
    keys = iter(jax.random.split(key, 16))
    p = {
        'stride': stride,
        'conv1': _conv_w(next(keys), planes, in_planes, 1, 1),
        'bn1': _bn_params(next(keys), planes),
        'conv2': _conv_w(next(keys), planes, planes, 3, 3),
        'bn2': _bn_params(next(keys), planes),
        'conv3': _conv_w(next(keys), expansion * planes, planes, 1, 1),
        'bn3': _bn_params(next(keys), expansion * planes),
    }
    if stride != 1 or in_planes != expansion * planes:
        p['conv_sc'] = _conv_w(next(keys), expansion * planes, in_planes, 1, 1)
        p['bn_sc'] = _bn_params(next(keys), expansion * planes)
    return p


# ---------------------------------------------------------------------------
# Bottleneck forward (mirrors the PyTorch module; eval-mode BN)
# ---------------------------------------------------------------------------
# TODO(synk): BatchNorm uses eval-mode running statistics; training-mode batch
#             stats are not computed in-kernel.
# TODO(synk): the `self.ind` channel-indexed residual path is not implemented
#             (ind is None in the reference module's default forward).
def bottleneck_forward(params, x_nchw):
    x = jnp.transpose(x_nchw, (0, 2, 3, 1))                  # NCHW -> NHWC
    s = params['stride']
    if 'conv_sc' in params:
        xs = x[:, ::s, ::s, :] if s > 1 else x               # strided 1x1 == subsample + matmul
        sc = conv1x1_bn_act(xs, params['conv_sc'], params['bn_sc'], relu=False)
    else:
        sc = x                                               # identity shortcut
    # conv1 (1x1+BN+ReLU) fused into the 3x3 kernel: intermediate stays on chip
    out = conv1_conv3x3_fused(x, params['conv1'], params['bn1'],
                              params['conv2'], params['bn2'],
                              stride=s, pad=1, relu=True)
    # relu(bn3(conv3(out)) + shortcut) fused in one kernel epilogue (bf16 residual)
    out = conv1x1_bn_act(out, params['conv3'], params['bn3'],
                         relu=True, residual_nhwc=sc)
    return jnp.transpose(out, (0, 3, 1, 2))                  # NHWC -> NCHW (bf16)


# ---------------------------------------------------------------------------
# Pure-JAX (XLA) reference for validation
# ---------------------------------------------------------------------------
def _conv_ref(x_nhwc, w_oihw, stride, pad):
    return jax.lax.conv_general_dilated(
        x_nhwc, jnp.transpose(w_oihw, (2, 3, 1, 0)),
        window_strides=(stride, stride), padding=((pad, pad), (pad, pad)),
        dimension_numbers=('NHWC', 'HWIO', 'NHWC'))


def _bn_ref(x, bn):
    gamma, beta, mean, var = bn
    return (x - mean) * gamma / jnp.sqrt(var + EPS) + beta


def bottleneck_ref(params, x_nchw):
    x = jnp.transpose(x_nchw, (0, 2, 3, 1)).astype(jnp.float32)
    s = params['stride']
    out = jax.nn.relu(_bn_ref(_conv_ref(x, params['conv1'], 1, 0), params['bn1']))
    out = jax.nn.relu(_bn_ref(_conv_ref(out, params['conv2'], s, 1), params['bn2']))
    out = _bn_ref(_conv_ref(out, params['conv3'], 1, 0), params['bn3'])
    if 'conv_sc' in params:
        sc = _bn_ref(_conv_ref(x, params['conv_sc'], s, 0), params['bn_sc'])
    else:
        sc = x
    return jnp.transpose(jax.nn.relu(out + sc), (0, 3, 1, 2))


if __name__ == "__main__":
    key = jax.random.PRNGKey(0)
    k1, k2, kx = jax.random.split(key, 3)

    # Bottleneck(in_planes=64, planes=16, stride=1): identity shortcut (64 == 4*16)
    blk1 = init_bottleneck_params(k1, in_planes=64, planes=16, stride=1)
    # Bottleneck(in_planes=64, planes=32, stride=2): conv shortcut + downsampling
    blk2 = init_bottleneck_params(k2, in_planes=64, planes=32, stride=2)

    x = jax.random.normal(kx, (2, 64, 16, 16), jnp.float32)   # NCHW

    fwd1 = jax.jit(lambda v: bottleneck_forward(blk1, v))
    fwd2 = jax.jit(lambda v: bottleneck_forward(blk2, v))

    y1 = jax.block_until_ready(fwd1(x))
    y2 = jax.block_until_ready(fwd2(y1))
    assert y1.shape == (2, 64, 16, 16), y1.shape
    assert y2.shape == (2, 128, 8, 8), y2.shape
    assert bool(jnp.all(jnp.isfinite(y1.astype(jnp.float32))))
    assert bool(jnp.all(jnp.isfinite(y2.astype(jnp.float32))))

    # validate against the f32 XLA reference (kernels use bf16 MXU operands and
    # bf16 activations between kernels)
    r1 = bottleneck_ref(blk1, x)
    r2 = bottleneck_ref(blk2, y1)
    err1 = float(jnp.max(jnp.abs(y1.astype(jnp.float32) - r1)))
    err2 = float(jnp.max(jnp.abs(y2.astype(jnp.float32) - r2)))
    assert err1 < 0.35 and err2 < 0.35, (err1, err2)

    print("KERNEL_OK")
</pallas_src>

<mosaic_0001>
module attributes {stable_mosaic.version = 11 : i64} {
  func.func @_fused_conv1_conv3x3_kernel(%arg0: i32, %arg1: i32, %arg2: memref<1x434x65xbf16, #tpu.memory_space<vmem>>, %arg3: memref<65x16xbf16, #tpu.memory_space<vmem>>, %arg4: memref<9x16x16xbf16, #tpu.memory_space<vmem>>, %arg5: memref<1x16xf32, #tpu.memory_space<vmem>>, %arg6: memref<1x384x16xbf16, #tpu.memory_space<vmem>>) attributes {dimension_semantics = [#tpu.dimension_semantics<parallel>, #tpu.dimension_semantics<parallel>], iteration_bounds = array<i64: 2, 1>, scalar_prefetch = 0 : i64, scratch_operands = 0 : i64, tpu.core_type = #tpu.core_type<tc>, window_params = [{transform_indices = @transform_0, window_bounds = array<i64: 1, 434, 65>}, {pipeline_mode = #tpu.pipeline_mode<synchronous>, transform_indices = @transform_1, window_bounds = array<i64: 65, 16>}, {pipeline_mode = #tpu.pipeline_mode<synchronous>, transform_indices = @transform_2, window_bounds = array<i64: 9, 16, 16>}, {pipeline_mode = #tpu.pipeline_mode<synchronous>, transform_indices = @transform_3, window_bounds = array<i64: 1, 16>}, {transform_indices = @transform_4, window_bounds = array<i64: 1, 384, 16>}]} {
    %c384_i32 = arith.constant 384 : i32
    %0 = arith.muli %arg1, %c384_i32 : i32
    %1 = tpu.assume_multiple %0, 8 : i32
    %c0 = arith.constant 0 : index
    %c0_0 = arith.constant 0 : index
    %2 = vector.load %arg3[%c0, %c0_0] : memref<65x16xbf16, #tpu.memory_space<vmem>>, vector<65x16xbf16>
    %c0_1 = arith.constant 0 : index
    %3 = arith.index_cast %1 : i32 to index
    %c0_2 = arith.constant 0 : index
    %4 = vector.load %arg2[%c0_1, %3, %c0_2] : memref<1x434x65xbf16, #tpu.memory_space<vmem>>, vector<1x434x65xbf16>
    %5 = vector.shape_cast %4 : vector<1x434x65xbf16> to vector<434x65xbf16>
    %cst = arith.constant dense<0.000000e+00> : vector<434x16xf32>
    %6 = tpu.matmul %5, %2, %cst {dimension_numbers = #tpu.dot_dimension_numbers<[1], [0], [0], [1], [0, 0, 1, 1], [], []>} : vector<434x65xbf16>, vector<65x16xbf16>, vector<434x16xf32> -> vector<434x16xf32>
    %cst_3 = arith.constant 0.000000e+00 : f32
    %7 = vector.broadcast %cst_3 : f32 to vector<434x16xf32>
    %8 = arith.maximumf %6, %7 : vector<434x16xf32>
    %9 = arith.truncf %8 : vector<434x16xf32> to vector<434x16xbf16>
    %cst_4 = arith.constant 0.000000e+00 : f32
    %10 = vector.broadcast %cst_4 : f32 to vector<384x16xf32>
    %11 = vector.extract_strided_slice %9 {offsets = [0, 0], sizes = [384, 16], strides = [1, 1]} : vector<434x16xbf16> to vector<384x16xbf16>
    %c0_5 = arith.constant 0 : index
    %c0_6 = arith.constant 0 : index
    %c0_7 = arith.constant 0 : index
    %12 = vector.load %arg4[%c0_5, %c0_6, %c0_7] : memref<9x16x16xbf16, #tpu.memory_space<vmem>>, vector<1x16x16xbf16>
    %13 = vector.shape_cast %12 : vector<1x16x16xbf16> to vector<16x16xbf16>
    %cst_8 = arith.constant dense<0.000000e+00> : vector<384x16xf32>
    %14 = tpu.matmul %11, %13, %cst_8 {dimension_numbers = #tpu.dot_dimension_numbers<[1], [0], [0], [1], [0, 0, 1, 1], [], []>} : vector<384x16xbf16>, vector<16x16xbf16>, vector<384x16xf32> -> vector<384x16xf32>
    %15 = arith.addf %10, %14 : vector<384x16xf32>
    %16 = vector.extract_strided_slice %9 {offsets = [1, 0], sizes = [384, 16], strides = [1, 1]} : vector<434x16xbf16> to vector<384x16xbf16>
    %c1 = arith.constant 1 : index
    %c0_9 = arith.constant 0 : index
    %c0_10 = arith.constant 0 : index
    %17 = vector.load %arg4[%c1, %c0_9, %c0_10] : memref<9x16x16xbf16, #tpu.memory_space<vmem>>, vector<1x16x16xbf16>
    %18 = vector.shape_cast %17 : vector<1x16x16xbf16> to vector<16x16xbf16>
    %cst_11 = arith.constant dense<0.000000e+00> : vector<384x16xf32>
    %19 = tpu.matmul %16, %18, %cst_11 {dimension_numbers = #tpu.dot_dimension_numbers<[1], [0], [0], [1], [0, 0, 1, 1], [], []>} : vector<384x16xbf16>, vector<16x16xbf16>, vector<384x16xf32> -> vector<384x16xf32>
    %20 = arith.addf %15, %19 : vector<384x16xf32>
    %21 = vector.extract_strided_slice %9 {offsets = [2, 0], sizes = [384, 16], strides = [1, 1]} : vector<434x16xbf16> to vector<384x16xbf16>
    %c2 = arith.constant 2 : index
    %c0_12 = arith.constant 0 : index
    %c0_13 = arith.constant 0 : index
    %22 = vector.load %arg4[%c2, %c0_12, %c0_13] : memref<9x16x16xbf16, #tpu.memory_space<vmem>>, vector<1x16x16xbf16>
    %23 = vector.shape_cast %22 : vector<1x16x16xbf16> to vector<16x16xbf16>
    %cst_14 = arith.constant dense<0.000000e+00> : vector<384x16xf32>
    %24 = tpu.matmul %21, %23, %cst_14 {dimension_numbers = #tpu.dot_dimension_numbers<[1], [0], [0], [1], [0, 0, 1, 1], [], []>} : vector<384x16xbf16>, vector<16x16xbf16>, vector<384x16xf32> -> vector<384x16xf32>
    %25 = arith.addf %20, %24 : vector<384x16xf32>
    %26 = vector.extract_strided_slice %9 {offsets = [24, 0], sizes = [384, 16], strides = [1, 1]} : vector<434x16xbf16> to vector<384x16xbf16>
    %c3 = arith.constant 3 : index
    %c0_15 = arith.constant 0 : index
    %c0_16 = arith.constant 0 : index
    %27 = vector.load %arg4[%c3, %c0_15, %c0_16] : memref<9x16x16xbf16, #tpu.memory_space<vmem>>, vector<1x16x16xbf16>
    %28 = vector.shape_cast %27 : vector<1x16x16xbf16> to vector<16x16xbf16>
    %cst_17 = arith.constant dense<0.000000e+00> : vector<384x16xf32>
    %29 = tpu.matmul %26, %28, %cst_17 {dimension_numbers = #tpu.dot_dimension_numbers<[1], [0], [0], [1], [0, 0, 1, 1], [], []>} : vector<384x16xbf16>, vector<16x16xbf16>, vector<384x16xf32> -> vector<384x16xf32>
    %30 = arith.addf %25, %29 : vector<384x16xf32>
    %31 = vector.extract_strided_slice %9 {offsets = [25, 0], sizes = [384, 16], strides = [1, 1]} : vector<434x16xbf16> to vector<384x16xbf16>
    %c4 = arith.constant 4 : index
    %c0_18 = arith.constant 0 : index
    %c0_19 = arith.constant 0 : index
    %32 = vector.load %arg4[%c4, %c0_18, %c0_19] : memref<9x16x16xbf16, #tpu.memory_space<vmem>>, vector<1x16x16xbf16>
    %33 = vector.shape_cast %32 : vector<1x16x16xbf16> to vector<16x16xbf16>
    %cst_20 = arith.constant dense<0.000000e+00> : vector<384x16xf32>
    %34 = tpu.matmul %31, %33, %cst_20 {dimension_numbers = #tpu.dot_dimension_numbers<[1], [0], [0], [1], [0, 0, 1, 1], [], []>} : vector<384x16xbf16>, vector<16x16xbf16>, vector<384x16xf32> -> vector<384x16xf32>
    %35 = arith.addf %30, %34 : vector<384x16xf32>
    %36 = vector.extract_strided_slice %9 {offsets = [26, 0], sizes = [384, 16], strides = [1, 1]} : vector<434x16xbf16> to vector<384x16xbf16>
    %c5 = arith.constant 5 : index
    %c0_21 = arith.constant 0 : index
    %c0_22 = arith.constant 0 : index
    %37 = vector.load %arg4[%c5, %c0_21, %c0_22] : memref<9x16x16xbf16, #tpu.memory_space<vmem>>, vector<1x16x16xbf16>
    %38 = vector.shape_cast %37 : vector<1x16x16xbf16> to vector<16x16xbf16>
    %cst_23 = arith.constant dense<0.000000e+00> : vector<384x16xf32>
    %39 = tpu.matmul %36, %38, %cst_23 {dimension_numbers = #tpu.dot_dimension_numbers<[1], [0], [0], [1], [0, 0, 1, 1], [], []>} : vector<384x16xbf16>, vector<16x16xbf16>, vector<384x16xf32> -> vector<384x16xf32>
    %40 = arith.addf %35, %39 : vector<384x16xf32>
    %41 = vector.extract_strided_slice %9 {offsets = [48, 0], sizes = [384, 16], strides = [1, 1]} : vector<434x16xbf16> to vector<384x16xbf16>
    %c6 = arith.constant 6 : index
    %c0_24 = arith.constant 0 : index
    %c0_25 = arith.constant 0 : index
    %42 = vector.load %arg4[%c6, %c0_24, %c0_25] : memref<9x16x16xbf16, #tpu.memory_space<vmem>>, vector<1x16x16xbf16>
    %43 = vector.shape_cast %42 : vector<1x16x16xbf16> to vector<16x16xbf16>
    %cst_26 = arith.constant dense<0.000000e+00> : vector<384x16xf32>
    %44 = tpu.matmul %41, %43, %cst_26 {dimension_numbers = #tpu.dot_dimension_numbers<[1], [0], [0], [1], [0, 0, 1, 1], [], []>} : vector<384x16xbf16>, vector<16x16xbf16>, vector<384x16xf32> -> vector<384x16xf32>
    %45 = arith.addf %40, %44 : vector<384x16xf32>
    %46 = vector.extract_strided_slice %9 {offsets = [49, 0], sizes = [384, 16], strides = [1, 1]} : vector<434x16xbf16> to vector<384x16xbf16>
    %c7 = arith.constant 7 : index
    %c0_27 = arith.constant 0 : index
    %c0_28 = arith.constant 0 : index
    %47 = vector.load %arg4[%c7, %c0_27, %c0_28] : memref<9x16x16xbf16, #tpu.memory_space<vmem>>, vector<1x16x16xbf16>
    %48 = vector.shape_cast %47 : vector<1x16x16xbf16> to vector<16x16xbf16>
    %cst_29 = arith.constant dense<0.000000e+00> : vector<384x16xf32>
    %49 = tpu.matmul %46, %48, %cst_29 {dimension_numbers = #tpu.dot_dimension_numbers<[1], [0], [0], [1], [0, 0, 1, 1], [], []>} : vector<384x16xbf16>, vector<16x16xbf16>, vector<384x16xf32> -> vector<384x16xf32>
    %50 = arith.addf %45, %49 : vector<384x16xf32>
    %51 = vector.extract_strided_slice %9 {offsets = [50, 0], sizes = [384, 16], strides = [1, 1]} : vector<434x16xbf16> to vector<384x16xbf16>
    %c8 = arith.constant 8 : index
    %c0_30 = arith.constant 0 : index
    %c0_31 = arith.constant 0 : index
    %52 = vector.load %arg4[%c8, %c0_30, %c0_31] : memref<9x16x16xbf16, #tpu.memory_space<vmem>>, vector<1x16x16xbf16>
    %53 = vector.shape_cast %52 : vector<1x16x16xbf16> to vector<16x16xbf16>
    %cst_32 = arith.constant dense<0.000000e+00> : vector<384x16xf32>
    %54 = tpu.matmul %51, %53, %cst_32 {dimension_numbers = #tpu.dot_dimension_numbers<[1], [0], [0], [1], [0, 0, 1, 1], [], []>} : vector<384x16xbf16>, vector<16x16xbf16>, vector<384x16xf32> -> vector<384x16xf32>
    %55 = arith.addf %50, %54 : vector<384x16xf32>
    %c0_33 = arith.constant 0 : index
    %c0_34 = arith.constant 0 : index
    %56 = vector.load %arg5[%c0_33, %c0_34] : memref<1x16xf32, #tpu.memory_space<vmem>>, vector<1x16xf32>
    %57 = vector.broadcast %56 : vector<1x16xf32> to vector<384x16xf32>
    %58 = arith.addf %55, %57 : vector<384x16xf32>
    %cst_35 = arith.constant 0.000000e+00 : f32
    %59 = vector.broadcast %cst_35 : f32 to vector<384x16xf32>
    %60 = arith.maximumf %58, %59 : vector<384x16xf32>
    %61 = arith.truncf %60 : vector<384x16xf32> to vector<384x16xbf16>
    %c0_36 = arith.constant 0 : index
    %c0_37 = arith.constant 0 : index
    %c0_38 = arith.constant 0 : index
    %62 = vector.load %arg6[%c0_36, %c0_37, %c0_38] : memref<1x384x16xbf16, #tpu.memory_space<vmem>>, vector<1x384x16xbf16>
    %63 = vector.shape_cast %62 : vector<1x384x16xbf16> to vector<384x16xbf16>
    %64 = vector.shape_cast %61 : vector<384x16xbf16> to vector<1x384x16xbf16>
    tpu.vector_store %arg6[%c0_36, %c0_37, %c0_38], %64 {strides = array<i32>} : memref<1x384x16xbf16, #tpu.memory_space<vmem>>, vector<1x384x16xbf16>,
    return
  }
  func.func @transform_0(%arg0: i32, %arg1: i32) -> (i32, i32, i32) {
    %c0_i32 = arith.constant 0 : i32
    %c0_i32_0 = arith.constant 0 : i32
    %c0_i32_1 = arith.constant 0 : i32
    return %arg0, %c0_i32, %c0_i32_0 : i32, i32, i32
  }
  func.func @transform_1(%arg0: i32, %arg1: i32) -> (i32, i32) {
    %c0_i32 = arith.constant 0 : i32
    %c0_i32_0 = arith.constant 0 : i32
    %c0_i32_1 = arith.constant 0 : i32
    return %c0_i32, %c0_i32_0 : i32, i32
  }
  func.func @transform_2(%arg0: i32, %arg1: i32) -> (i32, i32, i32) {
    %c0_i32 = arith.constant 0 : i32
    %c0_i32_0 = arith.constant 0 : i32
    %c0_i32_1 = arith.constant 0 : i32
    %c0_i32_2 = arith.constant 0 : i32
    return %c0_i32, %c0_i32_0, %c0_i32_1 : i32, i32, i32
  }
  func.func @transform_3(%arg0: i32, %arg1: i32) -> (i32, i32) {
    %c0_i32 = arith.constant 0 : i32
    %c0_i32_0 = arith.constant 0 : i32
    %c0_i32_1 = arith.constant 0 : i32
    return %c0_i32, %c0_i32_0 : i32, i32
  }
  func.func @transform_4(%arg0: i32, %arg1: i32) -> (i32, i32, i32) {
    %c0_i32 = arith.constant 0 : i32
    %c0_i32_0 = arith.constant 0 : i32
    return %arg0, %arg1, %c0_i32 : i32, i32, i32
  }
}

module attributes {stable_mosaic.version = 11 : i64} {
  func.func @_mm_bn_act_kernel(%arg0: i32, %arg1: memref<256x16xbf16, #tpu.memory_space<vmem>>, %arg2: memref<16x64xbf16, #tpu.memory_space<vmem>>, %arg3: memref<1x64xf32, #tpu.memory_space<vmem>>, %arg4: memref<256x64xbf16, #tpu.memory_space<vmem>>, %arg5: memref<256x64xbf16, #tpu.memory_space<vmem>>) attributes {dimension_semantics = [#tpu.dimension_semantics<parallel>], iteration_bounds = array<i64: 2>, scalar_prefetch = 0 : i64, scratch_operands = 0 : i64, tpu.core_type = #tpu.core_type<tc>, window_params = [{transform_indices = @transform_0, window_bounds = array<i64: 256, 16>}, {pipeline_mode = #tpu.pipeline_mode<synchronous>, transform_indices = @transform_1, window_bounds = array<i64: 16, 64>}, {pipeline_mode = #tpu.pipeline_mode<synchronous>, transform_indices = @transform_2, window_bounds = array<i64: 1, 64>}, {transform_indices = @transform_3, window_bounds = array<i64: 256, 64>}, {transform_indices = @transform_4, window_bounds = array<i64: 256, 64>}]} {
    %c0 = arith.constant 0 : index
    %c0_0 = arith.constant 0 : index
    %0 = vector.load %arg1[%c0, %c0_0] : memref<256x16xbf16, #tpu.memory_space<vmem>>, vector<256x16xbf16>
    %c0_1 = arith.constant 0 : index
    %c0_2 = arith.constant 0 : index
    %1 = vector.load %arg2[%c0_1, %c0_2] : memref<16x64xbf16, #tpu.memory_space<vmem>>, vector<16x64xbf16>
    %cst = arith.constant dense<0.000000e+00> : vector<256x64xf32>
    %2 = tpu.matmul %0, %1, %cst {dimension_numbers = #tpu.dot_dimension_numbers<[1], [0], [0], [1], [0, 0, 1, 1], [], []>} : vector<256x16xbf16>, vector<16x64xbf16>, vector<256x64xf32> -> vector<256x64xf32>
    %c0_3 = arith.constant 0 : index
    %c0_4 = arith.constant 0 : index
    %3 = vector.load %arg3[%c0_3, %c0_4] : memref<1x64xf32, #tpu.memory_space<vmem>>, vector<1x64xf32>
    %4 = vector.broadcast %3 : vector<1x64xf32> to vector<256x64xf32>
    %5 = arith.addf %2, %4 : vector<256x64xf32>
    %c0_5 = arith.constant 0 : index
    %c0_6 = arith.constant 0 : index
    %6 = vector.load %arg4[%c0_5, %c0_6] : memref<256x64xbf16, #tpu.memory_space<vmem>>, vector<256x64xbf16>
    %7 = arith.extf %6 : vector<256x64xbf16> to vector<256x64xf32>
    %8 = arith.addf %5, %7 : vector<256x64xf32>
    %cst_7 = arith.constant 0.000000e+00 : f32
    %9 = vector.broadcast %cst_7 : f32 to vector<256x64xf32>
    %10 = arith.maximumf %8, %9 : vector<256x64xf32>
    %11 = arith.truncf %10 : vector<256x64xf32> to vector<256x64xbf16>
    %c0_8 = arith.constant 0 : index
    %c0_9 = arith.constant 0 : index
    %12 = vector.load %arg5[%c0_8, %c0_9] : memref<256x64xbf16, #tpu.memory_space<vmem>>, vector<256x64xbf16>
    tpu.vector_store %arg5[%c0_8, %c0_9], %11 {strides = array<i32>} : memref<256x64xbf16, #tpu.memory_space<vmem>>, vector<256x64xbf16>,
    return
  }
  func.func @transform_0(%arg0: i32) -> (i32, i32) {
    %c0_i32 = arith.constant 0 : i32
    %c0_i32_0 = arith.constant 0 : i32
    return %arg0, %c0_i32 : i32, i32
  }
  func.func @transform_1(%arg0: i32) -> (i32, i32) {
    %c0_i32 = arith.constant 0 : i32
    %c0_i32_0 = arith.constant 0 : i32
    %c0_i32_1 = arith.constant 0 : i32
    return %c0_i32, %c0_i32_0 : i32, i32
  }
  func.func @transform_2(%arg0: i32) -> (i32, i32) {
    %c0_i32 = arith.constant 0 : i32
    %c0_i32_0 = arith.constant 0 : i32
    %c0_i32_1 = arith.constant 0 : i32
    return %c0_i32, %c0_i32_0 : i32, i32
  }
  func.func @transform_3(%arg0: i32) -> (i32, i32) {
    %c0_i32 = arith.constant 0 : i32
    %c0_i32_0 = arith.constant 0 : i32
    return %arg0, %c0_i32 : i32, i32
  }
  func.func @transform_4(%arg0: i32) -> (i32, i32) {
    %c0_i32 = arith.constant 0 : i32
    %c0_i32_0 = arith.constant 0 : i32
    return %arg0, %c0_i32 : i32, i32
  }
}

</mosaic_0001>

<llo_original>
// kernel: _lambda_.3
$region0: #{_lambda_.3}
  #allocation0 [shape = 'u32[]', space=smem, size = 0x4, offset = 0x4, fixed_abs, tag = 'smem constant byte address 0x4 - core index']
  #allocation1 [shape = 'u32[72,128]{1,0:T(1,128)}', space=vmem, size = 0x9000, scoped, tag = 'internal scratch']
  %s0 = inlined_call_operand.vmem [shape: bf16[512,16], index: 0, kind: input, shape index: {}]
  %s1 = inlined_call_operand.vmem [shape: bf16[16,64], index: 1, kind: input, shape index: {}]
  %s2 = inlined_call_operand.vmem [shape: f32[1,64], index: 2, kind: input, shape index: {}]
  %s3 = inlined_call_operand.vmem [shape: bf16[512,64], index: 3, kind: input, shape index: {}]
  %s4 = inlined_call_operand.hbm [shape: bf16[512,64], index: 4, kind: output, shape index: {}]
  %s5 = sld [smem:[#allocation0]]
  $region49: #{_lambda_.3} parent=0
    _
  %s7 = ssub.s32 1, %s5
  %s8 = scalar_select 0, %s7, %s5
  $region1: #{_lambda_.3} parent=0
    #allocation2 [shape = 'u8[131072]{0}', space=vmem, size = 0x20000, scoped, tag = 'output window, operand 0']
    #allocation3 [shape = 's32[2]{0}', space=sflag, size = 0x8, scoped, tag = 'scoped memory for _lambda_.3']
    %9 = vsyncpa [#allocation3], 0
    %s10 = scalar_lea.sflag [#allocation3], 1
    %11 = vsyncpa %s10, 0
    loop: start=0, step=1, limit=4
    $region2: #{_lambda_.3} parent=1 // loop_pre_header
      _
    $region3: #{_lambda_.3} parent=1 // loop_header
      %s13 = sphi 0, %s17
      %p14 = scmp.ge.s32.totalorder %s13, 4
      %s23 = sphi 0, %s25
      %s26 = sphi 0, %s23
      %s27 = sphi 0, %s26
      %s43 = sphi 0, %s27
      %s47 = sphi 0, %s47
      %s49 = sphi 0, %s47
      %s50 = sphi 0, %s49
      %s64 = sphi 0, %s50
      %s68 = sphi 0, %s68
      %s70 = sphi 0, %s68
      %s71 = sphi 0, %s70
      %s85 = sphi 0, %s71
      %s91 = sphi 0, %s93
      %s94 = sphi 0, %s91
      %s95 = sphi 0, %s94
      %s111 = sphi 0, %s95
      %s117 = sphi 0, %s119
      %s120 = sphi 0, %s117
      %s121 = sphi 0, %s120
      %s137 = sphi 0, %s121
    $region4: #{_lambda_.3} parent=1 // loop_header_branch
      %16 = sbr.rel (%p14) target = $region8
    $region5: #{_lambda_.3} parent=1 // loop_body
      %s18 = ssub.s32 %s13, 1
      %s19 = ssub.s32 %s13, 2
      %s20 = sadd.s32 %s13, 1
      %s21 = ssub.s32 %s13, %s20
      %p22 = scmp.eq.s32.totalorder %s21, 0
      %s24 = sadd.s32 %s23, 1
      %s25 = scalar_select %p22, %s23, %s24
      %p28 = pneg %p22
      %p29 = scmp.eq.s32.totalorder %s13, 1
      %p30 = por %p28, %p29
      %p31 = scmp.ne.s32.totalorder %s23, %s26
      %p32 = scmp.eq.s32.totalorder %s13, 0
      %p33 = por %p31, %p32
      %p34 = scmp.ne.s32.totalorder %s23, %s26
      %p35 = scmp.eq.s32.totalorder %s18, 1
      %p36 = por %p34, %p35
      %p37 = scmp.ne.s32.totalorder %s26, %s27
      %p38 = scmp.eq.s32.totalorder %s18, 0
      %p39 = por %p37, %p38
      %p40 = scmp.ne.s32.totalorder %s26, %s27
      %p41 = scmp.eq.s32.totalorder %s19, 1
      %p42 = por %p40, %p41
      %p44 = scmp.ne.s32.totalorder %s27, %s43
      %p45 = scmp.eq.s32.totalorder %s19, 0
      %p46 = por %p44, %p45
      %s48 = sadd.s32 %s47, 1
      %p51 = scmp.eq.s32.totalorder %s13, 1
      %p52 = scmp.ne.s32.totalorder %s47, %s49
      %p53 = scmp.eq.s32.totalorder %s13, 0
      %p54 = por %p52, %p53
      %p55 = scmp.ne.s32.totalorder %s47, %s49
      %p56 = scmp.eq.s32.totalorder %s18, 1
      %p57 = por %p55, %p56
      %p58 = scmp.ne.s32.totalorder %s49, %s50
      %p59 = scmp.eq.s32.totalorder %s18, 0
      %p60 = por %p58, %p59
      %p61 = scmp.ne.s32.totalorder %s49, %s50
      %p62 = scmp.eq.s32.totalorder %s19, 1
      %p63 = por %p61, %p62
      %p65 = scmp.ne.s32.totalorder %s50, %s64
      %p66 = scmp.eq.s32.totalorder %s19, 0
      %p67 = por %p65, %p66
      %s69 = sadd.s32 %s68, 1
      %p72 = scmp.eq.s32.totalorder %s13, 1
      %p73 = scmp.ne.s32.totalorder %s68, %s70
      %p74 = scmp.eq.s32.totalorder %s13, 0
      %p75 = por %p73, %p74
      %p76 = scmp.ne.s32.totalorder %s68, %s70
      %p77 = scmp.eq.s32.totalorder %s18, 1
      %p78 = por %p76, %p77
      %p79 = scmp.ne.s32.totalorder %s70, %s71
      %p80 = scmp.eq.s32.totalorder %s18, 0
      %p81 = por %p79, %p80
      %p82 = scmp.ne.s32.totalorder %s70, %s71
      %p83 = scmp.eq.s32.totalorder %s19, 1
      %p84 = por %p82, %p83
      %p86 = scmp.ne.s32.totalorder %s71, %s85
      %p87 = scmp.eq.s32.totalorder %s19, 0
      %p88 = por %p86, %p87
      %s89 = ssub.s32 %s13, %s20
      %p90 = scmp.eq.s32.totalorder %s89, 0
      %s92 = sadd.s32 %s91, 1
      %s93 = scalar_select %p90, %s91, %s92
      %p96 = pneg %p90
      %p97 = scmp.eq.s32.totalorder %s13, 1
      %p98 = por %p96, %p97
      %p99 = scmp.ne.s32.totalorder %s91, %s94
      %p100 = scmp.eq.s32.totalorder %s13, 0
      %p101 = por %p99, %p100
      %p102 = scmp.ne.s32.totalorder %s91, %s94
      %p103 = scmp.eq.s32.totalorder %s18, 1
      %p104 = por %p102, %p103
      %p105 = scmp.ne.s32.totalorder %s94, %s95
      %p106 = scmp.eq.s32.totalorder %s18, 0
      %p107 = por %p105, %p106
      %p108 = scmp.ne.s32.totalorder %s94, %s95
      %p109 = scmp.eq.s32.totalorder %s19, 1
      %p110 = por %p108, %p109
      %p112 = scmp.ne.s32.totalorder %s95, %s111
      %p113 = scmp.eq.s32.totalorder %s19, 0
      %p114 = por %p112, %p113
      %s115 = ssub.s32 %s13, %s20
      %p116 = scmp.eq.s32.totalorder %s115, 0
      %s118 = sadd.s32 %s117, 1
      %s119 = scalar_select %p116, %s117, %s118
      %p122 = pneg %p116
      %p123 = scmp.eq.s32.totalorder %s13, 1
      %p124 = por %p122, %p123
      %p125 = scmp.ne.s32.totalorder %s117, %s120
      %p126 = scmp.eq.s32.totalorder %s13, 0
      %p127 = por %p125, %p126
      %p128 = scmp.ne.s32.totalorder %s117, %s120
      %p129 = scmp.eq.s32.totalorder %s18, 1
      %p130 = por %p128, %p129
      %p131 = scmp.ne.s32.totalorder %s120, %s121
      %p132 = scmp.eq.s32.totalorder %s18, 0
      %p133 = por %p131, %p132
      %p134 = scmp.ne.s32.totalorder %s120, %s121
      %p135 = scmp.eq.s32.totalorder %s19, 1
      %p136 = por %p134, %p135
      %p138 = scmp.ne.s32.totalorder %s121, %s137
      %p139 = scmp.eq.s32.totalorder %s19, 0
      %p140 = por %p138, %p139
      %p141 = scmp.le.s32.totalorder 1, %s13
      %p142 = scmp.lt.s32.totalorder %s13, 3
      %p143 = pnand %p141, %p142
      %p144 = pneg %p143
      // Predicated region
      $region9: #{_lambda_.3} parent=5 // pred_check
        _
      $region10: #{_lambda_.3} parent=5 // pred_check_branch
        %146 = sbr.rel (%p143) target = $region12
      $region11: #{_lambda_.3} parent=5 // pred_region
        %s147 = ssub.s32 %s13, 1
        // Predicated region
        $region13: #{_lambda_.3} parent=11 // pred_check
          %p148 = pneg %p60
        $region14: #{_lambda_.3} parent=11 // pred_check_branch
          %150 = sbr.rel (%p148) target = $region16
        $region15: #{_lambda_.3} parent=11 // pred_region
          _
        $region16: #{_lambda_.3} parent=11 // pred_fallthru
          _
        // Predicated region
        $region17: #{_lambda_.3} parent=11 // pred_check
          %p151 = pneg %p81
        $region18: #{_lambda_.3} parent=11 // pred_check_branch
          %153 = sbr.rel (%p151) target = $region20
        $region19: #{_lambda_.3} parent=11 // pred_region
          _
        $region20: #{_lambda_.3} parent=11 // pred_fallthru
          _
      $region12: #{_lambda_.3} parent=5 // pred_fallthru
        _
      %p154 = scmp.lt.s32.totalorder %s13, 2
      // Predicated region
      $region21: #{_lambda_.3} parent=5 // pred_check
        %p155 = pneg %p154
      $region22: #{_lambda_.3} parent=5 // pred_check_branch
        %157 = sbr.rel (%p155) target = $region24
      $region23: #{_lambda_.3} parent=5 // pred_region
        // Predicated region
        $region25: #{_lambda_.3} parent=23 // pred_check
          %p158 = pneg %p33
        $region26: #{_lambda_.3} parent=23 // pred_check_branch
          %160 = sbr.rel (%p158) target = $region28
        $region27: #{_lambda_.3} parent=23 // pred_region
          %s161 = smul.u32 32, %s13
          %p162 = scmp.lt.s32.totalorder %s161, 63
          %s163 = scalar_select %p162, %s161, 63
          %s164 = smul.addr %s163, 4
          %s165 = scalar_lea.vmem %s0, %s164
          %s166 = smul.u32 32, %s13
        $region28: #{_lambda_.3} parent=23 // pred_fallthru
          _
        // Predicated region
        $region29: #{_lambda_.3} parent=23 // pred_check
          %p167 = pneg %p101
        $region30: #{_lambda_.3} parent=23 // pred_check_branch
          %169 = sbr.rel (%p167) target = $region32
        $region31: #{_lambda_.3} parent=23 // pred_region
          %s170 = smul.u32 32, %s13
          %p171 = scmp.lt.s32.totalorder %s170, 63
          %s172 = scalar_select %p171, %s170, 63
          %s173 = smul.addr %s172, 4
          %s174 = scalar_lea.vmem %s3, %s173
          %s175 = smul.u32 32, %s13
        $region32: #{_lambda_.3} parent=23 // pred_fallthru
          _
      $region24: #{_lambda_.3} parent=5 // pred_fallthru
        _
      %p176 = scmp.le.s32.totalorder 1, %s13
      %p177 = scmp.lt.s32.totalorder %s13, 3
      %p178 = pnand %p176, %p177
      %p179 = pneg %p178
      // Predicated region
      $region33: #{_lambda_.3} parent=5 // pred_check
        _
      $region34: #{_lambda_.3} parent=5 // pred_check_branch
        %181 = sbr.rel (%p178) target = $region36
      $region35: #{_lambda_.3} parent=5 // pred_region
        %s182 = ssub.s32 %s13, 1
        %s183 = smul.u32 32, %s18
        %p184 = scmp.lt.s32.totalorder %s183, 63
        %s185 = scalar_select %p184, %s183, 63
        %s186 = smul.addr %s185, 4
        %s187 = scalar_lea.vmem %s0, %s186
        %p188 = pneg %p39
        %p189 = pneg %p36
        %p190 = pneg %p60
        %p191 = pneg %p57
        %p192 = pneg %p81
        %p193 = pneg %p78
        %s194 = smul.u32 32, %s18
        %p195 = scmp.lt.s32.totalorder %s194, 63
        %s196 = scalar_select %p195, %s194, 63
        %s197 = smul.addr %s196, 4
        %s198 = scalar_lea.vmem %s3, %s197
        %p199 = pneg %p107
        %p200 = pneg %p104
        %p201 = pneg %p133
        %p202 = pneg %p130
        %s203 = sand.u32 %s120, 1
        %s204 = scalar_lea.sflag [#allocation3], %s203
        %s205 = sand.u32 %s120, 1
        %s206 = smul.addr %s205, 128
        %s207 = scalar_lea.vmem [#allocation2], %s206
        %s208 = smul.u32 32, %s18
        %p209 = scmp.lt.s32.totalorder %s208, 63
        %s210 = scalar_select %p209, %s208, 63
        %s211 = smul.addr %s210, 4
        %s212 = scalar_lea.vmem %s0, %s211
        %s213 = smul.u32 32, %s18
        %s214 = smul.u32 32, %s18
        %p215 = scmp.lt.s32.totalorder %s214, 63
        %s216 = scalar_select %p215, %s214, 63
        %s217 = smul.addr %s216, 4
        %s218 = scalar_lea.vmem %s3, %s217
        %s219 = smul.u32 32, %s18
        %s220 = smul.u32 32, %s18
        %v222 = vld [vmem:[%s212] sm:$0xf]
        %v223 = vld [vmem:[%s212 + $0x4] sm:$0xf]
        %v224 = vld [vmem:[%s212 + $0x8] sm:$0xf]
        %v225 = vld [vmem:[%s212 + $0xc] sm:$0xf]
        %v226 = vld [vmem:[%s212 + $0x10] sm:$0xf]
        %v227 = vld [vmem:[%s212 + $0x14] sm:$0xf]
        %v228 = vld [vmem:[%s212 + $0x18] sm:$0xf]
        %v229 = vld [vmem:[%s212 + $0x1c] sm:$0xf]
        %v230 = vld [vmem:[%s212 + $0x20] sm:$0xf]
        %v231 = vld [vmem:[%s212 + $0x24] sm:$0xf]
        %v232 = vld [vmem:[%s212 + $0x28] sm:$0xf]
        %v233 = vld [vmem:[%s212 + $0x2c] sm:$0xf]
        %v234 = vld [vmem:[%s212 + $0x30] sm:$0xf]
        %v235 = vld [vmem:[%s212 + $0x34] sm:$0xf]
        %v236 = vld [vmem:[%s212 + $0x38] sm:$0xf]
        %v237 = vld [vmem:[%s212 + $0x3c] sm:$0xf]
        %v238 = vld [vmem:[%s212 + $0x40] sm:$0xf]
        %v239 = vld [vmem:[%s212 + $0x44] sm:$0xf]
        %v240 = vld [vmem:[%s212 + $0x48] sm:$0xf]
        %v241 = vld [vmem:[%s212 + $0x4c] sm:$0xf]
        %v242 = vld [vmem:[%s212 + $0x50] sm:$0xf]
        %v243 = vld [vmem:[%s212 + $0x54] sm:$0xf]
        %v244 = vld [vmem:[%s212 + $0x58] sm:$0xf]
        %v245 = vld [vmem:[%s212 + $0x5c] sm:$0xf]
        %v246 = vld [vmem:[%s212 + $0x60] sm:$0xf]
        %v247 = vld [vmem:[%s212 + $0x64] sm:$0xf]
        %v248 = vld [vmem:[%s212 + $0x68] sm:$0xf]
        %v249 = vld [vmem:[%s212 + $0x6c] sm:$0xf]
        %v250 = vld [vmem:[%s212 + $0x70] sm:$0xf]
        %v251 = vld [vmem:[%s212 + $0x74] sm:$0xf]
        %v252 = vld [vmem:[%s212 + $0x78] sm:$0xf]
        %v253 = vld [vmem:[%s212 + $0x7c] sm:$0xf]
        %v254 = vld [vmem:[%s1] sm:$0xf]
        %v255 = vld [vmem:[%s1 + $0x4] sm:$0xf]
        %v256 = vld [vmem:[%s2] sm:$0x1]
        %v258 = vperm.slane %v256, 0
        %v292 = vunpack.c.l.b16 %v222
        %v293 = vunpack.c.l.b16 %v223
        %v294 = vunpack.c.l.b16 %v224
        %v295 = vunpack.c.l.b16 %v225
        %v296 = vunpack.c.l.b16 %v226
        %v297 = vunpack.c.l.b16 %v227
        %v298 = vunpack.c.l.b16 %v228
        %v299 = vunpack.c.l.b16 %v229
        %v300 = vunpack.c.l.b16 %v230
        %v301 = vunpack.c.l.b16 %v231
        %v302 = vunpack.c.l.b16 %v232
        %v303 = vunpack.c.l.b16 %v233
        %v304 = vunpack.c.l.b16 %v234
        %v305 = vunpack.c.l.b16 %v235
        %v306 = vunpack.c.l.b16 %v236
        %v307 = vunpack.c.l.b16 %v237
        %v308 = vunpack.c.l.b16 %v238
        %v309 = vunpack.c.l.b16 %v239
        %v310 = vunpack.c.l.b16 %v240
        %v311 = vunpack.c.l.b16 %v241
        %v312 = vunpack.c.l.b16 %v242
        %v313 = vunpack.c.l.b16 %v243
        %v314 = vunpack.c.l.b16 %v244
        %v315 = vunpack.c.l.b16 %v245
        %v316 = vunpack.c.l.b16 %v246
        %v317 = vunpack.c.l.b16 %v247
        %v318 = vunpack.c.l.b16 %v248
        %v319 = vunpack.c.l.b16 %v249
        %v320 = vunpack.c.l.b16 %v250
        %v321 = vunpack.c.l.b16 %v251
        %v322 = vunpack.c.l.b16 %v252
        %v323 = vunpack.c.l.b16 %v253
        %v324 = vpack.c.b16 %v293, %v292
        %v325 = vpack.c.b16 %v295, %v294
        %v326 = vpack.c.b16 %v297, %v296
        %v327 = vpack.c.b16 %v299, %v298
        %v328 = vpack.c.b16 %v301, %v300
        %v329 = vpack.c.b16 %v303, %v302
        %v330 = vpack.c.b16 %v305, %v304
        %v331 = vpack.c.b16 %v307, %v306
        %v332 = vpack.c.b16 %v309, %v308
        %v333 = vpack.c.b16 %v311, %v310
        %v334 = vpack.c.b16 %v313, %v312
        %v335 = vpack.c.b16 %v315, %v314
        %v336 = vpack.c.b16 %v317, %v316
        %v337 = vpack.c.b16 %v319, %v318
        %v338 = vpack.c.b16 %v321, %v320
        %v339 = vpack.c.b16 %v323, %v322
        %v342 = vunpack.c.l.b16 %v254
        %v343 = vunpack.c.l.b16 %v255
        %v344 = vpack.c.b16 %v343, %v342
        %vm346 = vcmask 130048
        %v348 = vsel %vm346, %v324, 0
        %v351 = vsel %vm346, %v325, 0
        %v354 = vsel %vm346, %v326, 0
        %v357 = vsel %vm346, %v327, 0
        %v360 = vsel %vm346, %v328, 0
        %v363 = vsel %vm346, %v329, 0
        %v366 = vsel %vm346, %v330, 0
        %v369 = vsel %vm346, %v331, 0
        %v372 = vsel %vm346, %v332, 0
        %v375 = vsel %vm346, %v333, 0
        %v378 = vsel %vm346, %v334, 0
        %v381 = vsel %vm346, %v335, 0
        %v384 = vsel %vm346, %v336, 0
        %v387 = vsel %vm346, %v337, 0
        %v390 = vsel %vm346, %v338, 0
        %v393 = vsel %vm346, %v339, 0
        %395 = vmatpush.bf16.msra.mxu0 0
        %396 = vmatpush.bf16.msra.mxu0 0
        %397 = vmatpush.bf16.msra.mxu0 0
        %398 = vmatpush.bf16.msra.mxu0 0
        %399 = vmatpush.bf16.msra.mxu0 0
        %400 = vmatpush.bf16.msra.mxu0 0
        %401 = vmatpush.bf16.msra.mxu0 0
        %402 = vmatpush.bf16.msra.mxu0 %v344
        %403 = vmatmul.bf16.gmra.mxu0 %v348
        %v404 = vpop.f32.mrf.mxu0
        %v405 = vadd.f32 %v258, %v404
        %v406 = vpop.f32.mrf.mxu0
        %v407 = vadd.f32 %v258, %v406
        %408 = vmatmul.bf16.gmra.mxu0 %v351
        %v409 = vpop.f32.mrf.mxu0
        %v410 = vadd.f32 %v258, %v409
        %v411 = vpop.f32.mrf.mxu0
        %v412 = vadd.f32 %v258, %v411
        %413 = vmatmul.bf16.gmra.mxu0 %v354
        %v414 = vpop.f32.mrf.mxu0
        %v415 = vadd.f32 %v258, %v414
        %v416 = vpop.f32.mrf.mxu0
        %v417 = vadd.f32 %v258, %v416
        %418 = vmatmul.bf16.gmra.mxu0 %v357
        %v419 = vpop.f32.mrf.mxu0
        %v420 = vadd.f32 %v258, %v419
        %v421 = vpop.f32.mrf.mxu0
        %v422 = vadd.f32 %v258, %v421
        %423 = vmatmul.bf16.gmra.mxu0 %v360
        %v424 = vpop.f32.mrf.mxu0
        %v425 = vadd.f32 %v258, %v424
        %v426 = vpop.f32.mrf.mxu0
        %v427 = vadd.f32 %v258, %v426
        %428 = vmatmul.bf16.gmra.mxu0 %v363
        %v429 = vpop.f32.mrf.mxu0
        %v430 = vadd.f32 %v258, %v429
        %v431 = vpop.f32.mrf.mxu0
        %v432 = vadd.f32 %v258, %v431
        %433 = vmatmul.bf16.gmra.mxu0 %v366
        %v434 = vpop.f32.mrf.mxu0
        %v435 = vadd.f32 %v258, %v434
        %v436 = vpop.f32.mrf.mxu0
        %v437 = vadd.f32 %v258, %v436
        %438 = vmatmul.bf16.gmra.mxu0 %v369
        %v439 = vpop.f32.mrf.mxu0
        %v440 = vadd.f32 %v258, %v439
        %v441 = vpop.f32.mrf.mxu0
        %v442 = vadd.f32 %v258, %v441
        %443 = vmatmul.bf16.gmra.mxu0 %v372
        %v444 = vpop.f32.mrf.mxu0
        %v445 = vadd.f32 %v258, %v444
        %v446 = vpop.f32.mrf.mxu0
        %v447 = vadd.f32 %v258, %v446
        %448 = vmatmul.bf16.gmra.mxu0 %v375
        %v449 = vpop.f32.mrf.mxu0
        %v450 = vadd.f32 %v258, %v449
        %v451 = vpop.f32.mrf.mxu0
        %v452 = vadd.f32 %v258, %v451
        %453 = vmatmul.bf16.gmra.mxu0 %v378
        %v454 = vpop.f32.mrf.mxu0
        %v455 = vadd.f32 %v258, %v454
        %v456 = vpop.f32.mrf.mxu0
        %v457 = vadd.f32 %v258, %v456
        %458 = vmatmul.bf16.gmra.mxu0 %v381
        %v459 = vpop.f32.mrf.mxu0
        %v460 = vadd.f32 %v258, %v459
        %v461 = vpop.f32.mrf.mxu0
        %v462 = vadd.f32 %v258, %v461
        %463 = vmatmul.bf16.gmra.mxu0 %v384
        %v464 = vpop.f32.mrf.mxu0
        %v465 = vadd.f32 %v258, %v464
        %v466 = vpop.f32.mrf.mxu0
        %v467 = vadd.f32 %v258, %v466
        %468 = vmatmul.bf16.gmra.mxu0 %v387
        %v469 = vpop.f32.mrf.mxu0
        %v470 = vadd.f32 %v258, %v469
        %v471 = vpop.f32.mrf.mxu0
        %v472 = vadd.f32 %v258, %v471
        %473 = vmatmul.bf16.gmra.mxu0 %v390
        %v474 = vpop.f32.mrf.mxu0
        %v475 = vadd.f32 %v258, %v474
        %v476 = vpop.f32.mrf.mxu0
        %v477 = vadd.f32 %v258, %v476
        %478 = vmatmul.bf16.gmra.mxu0 %v393
        %v479 = vpop.f32.mrf.mxu0
        %v480 = vadd.f32 %v258, %v479
        %v481 = vpop.f32.mrf.mxu0
        %v482 = vadd.f32 %v258, %v481
        %483 = vdwg.mxu0
        %v484 = vld [vmem:[%s218] sm:$0xf]
        %v485 = vld [vmem:[%s218 + $0x4] sm:$0xf]
        %v486 = vld [vmem:[%s218 + $0x8] sm:$0xf]
        %v487 = vld [vmem:[%s218 + $0xc] sm:$0xf]
        %v488 = vld [vmem:[%s218 + $0x10] sm:$0xf]
        %v489 = vld [vmem:[%s218 + $0x14] sm:$0xf]
        %v490 = vld [vmem:[%s218 + $0x18] sm:$0xf]
        %v491 = vld [vmem:[%s218 + $0x1c] sm:$0xf]
        %v492 = vld [vmem:[%s218 + $0x20] sm:$0xf]
        %v493 = vld [vmem:[%s218 + $0x24] sm:$0xf]
        %v494 = vld [vmem:[%s218 + $0x28] sm:$0xf]
        %v495 = vld [vmem:[%s218 + $0x2c] sm:$0xf]
        %v496 = vld [vmem:[%s218 + $0x30] sm:$0xf]
        %v497 = vld [vmem:[%s218 + $0x34] sm:$0xf]
        %v498 = vld [vmem:[%s218 + $0x38] sm:$0xf]
        %v499 = vld [vmem:[%s218 + $0x3c] sm:$0xf]
        %v500 = vld [vmem:[%s218 + $0x40] sm:$0xf]
        %v501 = vld [vmem:[%s218 + $0x44] sm:$0xf]
        %v502 = vld [vmem:[%s218 + $0x48] sm:$0xf]
        %v503 = vld [vmem:[%s218 + $0x4c] sm:$0xf]
        %v504 = vld [vmem:[%s218 + $0x50] sm:$0xf]
        %v505 = vld [vmem:[%s218 + $0x54] sm:$0xf]
        %v506 = vld [vmem:[%s218 + $0x58] sm:$0xf]
        %v507 = vld [vmem:[%s218 + $0x5c] sm:$0xf]
        %v508 = vld [vmem:[%s218 + $0x60] sm:$0xf]
        %v509 = vld [vmem:[%s218 + $0x64] sm:$0xf]
        %v510 = vld [vmem:[%s218 + $0x68] sm:$0xf]
        %v511 = vld [vmem:[%s218 + $0x6c] sm:$0xf]
        %v512 = vld [vmem:[%s218 + $0x70] sm:$0xf]
        %v513 = vld [vmem:[%s218 + $0x74] sm:$0xf]
        %v514 = vld [vmem:[%s218 + $0x78] sm:$0xf]
        %v515 = vld [vmem:[%s218 + $0x7c] sm:$0xf]
        %v516 = vunpack.c.l.bf16 %v484
        %v517 = vunpack.c.l.bf16 %v485
        %v518 = vunpack.c.l.bf16 %v486
        %v519 = vunpack.c.l.bf16 %v487
        %v520 = vunpack.c.l.bf16 %v488
        %v521 = vunpack.c.l.bf16 %v489
        %v522 = vunpack.c.l.bf16 %v490
        %v523 = vunpack.c.l.bf16 %v491
        %v524 = vunpack.c.l.bf16 %v492
        %v525 = vunpack.c.l.bf16 %v493
        %v526 = vunpack.c.l.bf16 %v494
        %v527 = vunpack.c.l.bf16 %v495
        %v528 = vunpack.c.l.bf16 %v496
        %v529 = vunpack.c.l.bf16 %v497
        %v530 = vunpack.c.l.bf16 %v498
        %v531 = vunpack.c.l.bf16 %v499
        %v532 = vunpack.c.l.bf16 %v500
        %v533 = vunpack.c.l.bf16 %v501
        %v534 = vunpack.c.l.bf16 %v502
        %v535 = vunpack.c.l.bf16 %v503
        %v536 = vunpack.c.l.bf16 %v504
        %v537 = vunpack.c.l.bf16 %v505
        %v538 = vunpack.c.l.bf16 %v506
        %v539 = vunpack.c.l.bf16 %v507
        %v540 = vunpack.c.l.bf16 %v508
        %v541 = vunpack.c.l.bf16 %v509
        %v542 = vunpack.c.l.bf16 %v510
        %v543 = vunpack.c.l.bf16 %v511
        %v544 = vunpack.c.l.bf16 %v512
        %v545 = vunpack.c.l.bf16 %v513
        %v546 = vunpack.c.l.bf16 %v514
        %v547 = vunpack.c.l.bf16 %v515
        %v548 = vadd.f32 %v405, %v516
        %v549 = vadd.f32 %v407, %v517
        %v550 = vadd.f32 %v410, %v518
        %v551 = vadd.f32 %v412, %v519
        %v552 = vadd.f32 %v415, %v520
        %v553 = vadd.f32 %v417, %v521
        %v554 = vadd.f32 %v420, %v522
        %v555 = vadd.f32 %v422, %v523
        %v556 = vadd.f32 %v425, %v524
        %v557 = vadd.f32 %v427, %v525
        %v558 = vadd.f32 %v430, %v526
        %v559 = vadd.f32 %v432, %v527
        %v560 = vadd.f32 %v435, %v528
        %v561 = vadd.f32 %v437, %v529
        %v562 = vadd.f32 %v440, %v530
        %v563 = vadd.f32 %v442, %v531
        %v564 = vadd.f32 %v445, %v532
        %v565 = vadd.f32 %v447, %v533
        %v566 = vadd.f32 %v450, %v534
        %v567 = vadd.f32 %v452, %v535
        %v568 = vadd.f32 %v455, %v536
        %v569 = vadd.f32 %v457, %v537
        %v570 = vadd.f32 %v460, %v538
        %v571 = vadd.f32 %v462, %v539
        %v572 = vadd.f32 %v465, %v540
        %v573 = vadd.f32 %v467, %v541
        %v574 = vadd.f32 %v470, %v542
        %v575 = vadd.f32 %v472, %v543
        %v576 = vadd.f32 %v475, %v544
        %v577 = vadd.f32 %v477, %v545
        %v578 = vadd.f32 %v480, %v546
        %v579 = vadd.f32 %v482, %v547
        %v580 = vmax.f32 %v548, 0.0
        %v581 = vmax.f32 %v549, 0.0
        %v582 = vmax.f32 %v550, 0.0
        %v583 = vmax.f32 %v551, 0.0
        %v584 = vmax.f32 %v552, 0.0
        %v585 = vmax.f32 %v553, 0.0
        %v586 = vmax.f32 %v554, 0.0
        %v587 = vmax.f32 %v555, 0.0
        %v588 = vmax.f32 %v556, 0.0
        %v589 = vmax.f32 %v557, 0.0
        %v590 = vmax.f32 %v558, 0.0
        %v591 = vmax.f32 %v559, 0.0
        %v592 = vmax.f32 %v560, 0.0
        %v593 = vmax.f32 %v561, 0.0
        %v594 = vmax.f32 %v562, 0.0
        %v595 = vmax.f32 %v563, 0.0
        %v596 = vmax.f32 %v564, 0.0
        %v597 = vmax.f32 %v565, 0.0
        %v598 = vmax.f32 %v566, 0.0
        %v599 = vmax.f32 %v567, 0.0
        %v600 = vmax.f32 %v568, 0.0
        %v601 = vmax.f32 %v569, 0.0
        %v602 = vmax.f32 %v570, 0.0
        %v603 = vmax.f32 %v571, 0.0
        %v604 = vmax.f32 %v572, 0.0
        %v605 = vmax.f32 %v573, 0.0
        %v606 = vmax.f32 %v574, 0.0
        %v607 = vmax.f32 %v575, 0.0
        %v608 = vmax.f32 %v576, 0.0
        %v609 = vmax.f32 %v577, 0.0
        %v610 = vmax.f32 %v578, 0.0
        %v611 = vmax.f32 %v579, 0.0
        %v612 = vpack.c.bf16 %v580, %v580
        %v613 = vpack.c.bf16 %v581, %v581
        %v614 = vpack.c.bf16 %v582, %v582
        %v615 = vpack.c.bf16 %v583, %v583
        %v616 = vpack.c.bf16 %v584, %v584
        %v617 = vpack.c.bf16 %v585, %v585
        %v618 = vpack.c.bf16 %v586, %v586
        %v619 = vpack.c.bf16 %v587, %v587
        %v620 = vpack.c.bf16 %v588, %v588
        %v621 = vpack.c.bf16 %v589, %v589
        %v622 = vpack.c.bf16 %v590, %v590
        %v623 = vpack.c.bf16 %v591, %v591
        %v624 = vpack.c.bf16 %v592, %v592
        %v625 = vpack.c.bf16 %v593, %v593
        %v626 = vpack.c.bf16 %v594, %v594
        %v627 = vpack.c.bf16 %v595, %v595
        %v628 = vpack.c.bf16 %v596, %v596
        %v629 = vpack.c.bf16 %v597, %v597
        %v630 = vpack.c.bf16 %v598, %v598
        %v631 = vpack.c.bf16 %v599, %v599
        %v632 = vpack.c.bf16 %v600, %v600
        %v633 = vpack.c.bf16 %v601, %v601
        %v634 = vpack.c.bf16 %v602, %v602
        %v635 = vpack.c.bf16 %v603, %v603
        %v636 = vpack.c.bf16 %v604, %v604
        %v637 = vpack.c.bf16 %v605, %v605
        %v638 = vpack.c.bf16 %v606, %v606
        %v639 = vpack.c.bf16 %v607, %v607
        %v640 = vpack.c.bf16 %v608, %v608
        %v641 = vpack.c.bf16 %v609, %v609
        %v642 = vpack.c.bf16 %v610, %v610
        %v643 = vpack.c.bf16 %v611, %v611
        %vm644 = vcmask 519168
        %645 = vst.msk [vmem:[%s207] sm:$0xf] %vm644, %v612
        %646 = vst.msk [vmem:[%s207 + $0x4] sm:$0xf] %vm644, %v613
        %647 = vst.msk [vmem:[%s207 + $0x8] sm:$0xf] %vm644, %v614
        %648 = vst.msk [vmem:[%s207 + $0xc] sm:$0xf] %vm644, %v615
        %649 = vst.msk [vmem:[%s207 + $0x10] sm:$0xf] %vm644, %v616
        %650 = vst.msk [vmem:[%s207 + $0x14] sm:$0xf] %vm644, %v617
        %651 = vst.msk [vmem:[%s207 + $0x18] sm:$0xf] %vm644, %v618
        %652 = vst.msk [vmem:[%s207 + $0x1c] sm:$0xf] %vm644, %v619
        %653 = vst.msk [vmem:[%s207 + $0x20] sm:$0xf] %vm644, %v620
        %654 = vst.msk [vmem:[%s207 + $0x24] sm:$0xf] %vm644, %v621
        %655 = vst.msk [vmem:[%s207 + $0x28] sm:$0xf] %vm644, %v622
        %656 = vst.msk [vmem:[%s207 + $0x2c] sm:$0xf] %vm644, %v623
        %657 = vst.msk [vmem:[%s207 + $0x30] sm:$0xf] %vm644, %v624
        %658 = vst.msk [vmem:[%s207 + $0x34] sm:$0xf] %vm644, %v625
        %659 = vst.msk [vmem:[%s207 + $0x38] sm:$0xf] %vm644, %v626
        %660 = vst.msk [vmem:[%s207 + $0x3c] sm:$0xf] %vm644, %v627
        %661 = vst.msk [vmem:[%s207 + $0x40] sm:$0xf] %vm644, %v628
        %662 = vst.msk [vmem:[%s207 + $0x44] sm:$0xf] %vm644, %v629
        %663 = vst.msk [vmem:[%s207 + $0x48] sm:$0xf] %vm644, %v630
        %664 = vst.msk [vmem:[%s207 + $0x4c] sm:$0xf] %vm644, %v631
        %665 = vst.msk [vmem:[%s207 + $0x50] sm:$0xf] %vm644, %v632
        %666 = vst.msk [vmem:[%s207 + $0x54] sm:$0xf] %vm644, %v633
        %667 = vst.msk [vmem:[%s207 + $0x58] sm:$0xf] %vm644, %v634
        %668 = vst.msk [vmem:[%s207 + $0x5c] sm:$0xf] %vm644, %v635
        %669 = vst.msk [vmem:[%s207 + $0x60] sm:$0xf] %vm644, %v636
        %670 = vst.msk [vmem:[%s207 + $0x64] sm:$0xf] %vm644, %v637
        %671 = vst.msk [vmem:[%s207 + $0x68] sm:$0xf] %vm644, %v638
        %672 = vst.msk [vmem:[%s207 + $0x6c] sm:$0xf] %vm644, %v639
        %673 = vst.msk [vmem:[%s207 + $0x70] sm:$0xf] %vm644, %v640
        %674 = vst.msk [vmem:[%s207 + $0x74] sm:$0xf] %vm644, %v641
        %675 = vst.msk [vmem:[%s207 + $0x78] sm:$0xf] %vm644, %v642
        %676 = vst.msk [vmem:[%s207 + $0x7c] sm:$0xf] %vm644, %v643
        %s677 = sand.u32 %s120, 1
        %s678 = scalar_lea.sflag [#allocation3], %s677
        %s679 = sand.u32 %s120, 1
        %s680 = smul.addr %s679, 128
        %s681 = scalar_lea.vmem [#allocation2], %s680
        // Predicated region
        $region37: #{_lambda_.3} parent=35 // pred_check
          %p682 = pneg %p130
        $region38: #{_lambda_.3} parent=35 // pred_check_branch
          %684 = sbr.rel (%p682) target = $region40
        $region39: #{_lambda_.3} parent=35 // pred_region
          %s685 = smul.u32 32, %s18
          %687 = vsyncadd %s678, 0
          %s688 = smul.addr %s685, 4
          %s689 = scalar_lea.hbm %s4, %s688
          %s690 = sshll.u32 %s681, 4
          %s691 = int_to_ptr.vmem [resolvable:$true] %s690
          %s692 = sshll.u32 %s689, 4
          %s693 = int_to_ptr.hbm [resolvable:$true] %s692
          %698 = dma.vmem_to_hbm [thread:$0]  %s691, 2048, %s693, %s678, 64, 64, 4
        $region40: #{_lambda_.3} parent=35 // pred_fallthru
          _
      $region36: #{_lambda_.3} parent=5 // pred_fallthru
        _
      %p699 = scmp.le.s32.totalorder 2, %s13
      // Predicated region
      $region41: #{_lambda_.3} parent=5 // pred_check
        %p700 = pneg %p699
      $region42: #{_lambda_.3} parent=5 // pred_check_branch
        %702 = sbr.rel (%p700) target = $region44
      $region43: #{_lambda_.3} parent=5 // pred_region
        %s703 = ssub.s32 %s13, 2
        // Predicated region
        $region45: #{_lambda_.3} parent=43 // pred_check
          %p704 = pneg %p136
        $region46: #{_lambda_.3} parent=43 // pred_check_branch
          %706 = sbr.rel (%p704) target = $region48
        $region47: #{_lambda_.3} parent=43 // pred_region
          %s707 = sand.u32 %s121, 1
          %s708 = scalar_lea.sflag [#allocation3], %s707
          %s709 = sand.u32 %s121, 1
          %s710 = smul.addr %s709, 128
          %s711 = scalar_lea.vmem [#allocation2], %s710
          %713 = dma.done %s708, 2048
        $region48: #{_lambda_.3} parent=43 // pred_fallthru
          _
      $region44: #{_lambda_.3} parent=5 // pred_fallthru
        _
    $region6: #{_lambda_.3} parent=1 // loop_footer
      %s17 = sadd.s32 1, %s13
    $region7: #{_lambda_.3} parent=1 // loop_footer_branch
      %12 = sbr.rel target = $region3
    $region8: #{_lambda_.3} parent=1 // loop_exit
      _
    %714 = vsyncpa [#allocation3], 1
    %s715 = scalar_lea.sflag [#allocation3], 1
    %716 = vsyncpa %s715, 1

// kernel: _lambda_.2
$region0: #{_lambda_.2}
  #allocation0 [shape = 'u32[]', space=smem, size = 0x4, offset = 0x4, fixed_abs, tag = 'smem constant byte address 0x4 - core index']
  #allocation1 [shape = 'u32[72,128]{1,0:T(1,128)}', space=vmem, size = 0x9000, scoped, tag = 'internal scratch']
  %s0 = inlined_call_operand.vmem [shape: bf16[2,434,65], index: 0, kind: input, shape index: {}]
  %s1 = inlined_call_operand.vmem [shape: bf16[65,16], index: 1, kind: input, shape index: {}]
  %s2 = inlined_call_operand.vmem [shape: bf16[9,16,16], index: 2, kind: input, shape index: {}]
  %s3 = inlined_call_operand.vmem [shape: f32[1,16], index: 3, kind: input, shape index: {}]
  %s4 = inlined_call_operand.vmem [shape: bf16[2,384,16], index: 4, kind: output, shape index: {}]
  %s5 = sld [smem:[#allocation0]]
  $region49: #{_lambda_.2} parent=0
    _
  %s7 = ssub.s32 1, %s5
  %s8 = scalar_select 0, %s7, %s5
  loop: start=0, step=1, limit=4
  $region2: #{_lambda_.2} parent=0 // loop_pre_header
    _
  $region3: #{_lambda_.2} parent=0 // loop_header
    %s10 = sphi 0, %s14
    %p11 = scmp.ge.s32.totalorder %s10, 4
    %s17 = sphi 0, %s29
    %s18 = sphi 0, %s25
    %s19 = sphi 0, %s17
    %s20 = sphi 0, %s18
    %s21 = sphi 0, %s19
    %s22 = sphi 0, %s20
    %s32 = sphi 0, %s34
    %s35 = sphi 0, %s32
    %s36 = sphi 0, %s35
    %s52 = sphi 0, %s36
    %s56 = sphi 0, %s56
    %s58 = sphi 0, %s56
    %s59 = sphi 0, %s58
    %s73 = sphi 0, %s59
    %s77 = sphi 0, %s77
    %s79 = sphi 0, %s77
    %s80 = sphi 0, %s79
    %s94 = sphi 0, %s80
    %s98 = sphi 0, %s98
    %s100 = sphi 0, %s98
    %s101 = sphi 0, %s100
    %s115 = sphi 0, %s101
    %s123 = sphi 0, %s125
    %s126 = sphi 0, %s123
    %s127 = sphi 0, %s126
    %s143 = sphi 0, %s127
  $region4: #{_lambda_.2} parent=0 // loop_header_branch
    %13 = sbr.rel (%p11) target = $region8
  $region5: #{_lambda_.2} parent=0 // loop_body
    %s15 = ssub.s32 %s10, 1
    %s16 = ssub.s32 %s10, 2
    %s23 = sadd.s32 1, %s18
    %p24 = scmp.ge.s32.totalorder %s23, 1
    %s25 = scalar_select %p24, 0, %s23
    %s26 = sadd.s32 1, %s17
    %s27 = scalar_select %p24, %s26, %s17
    %p28 = scmp.ge.s32.totalorder %s27, 2
    %s29 = scalar_select %p28, 0, %s27
    %s30 = ssub.s32 %s17, %s29
    %p31 = scmp.eq.s32.totalorder %s30, 0
    %s33 = sadd.s32 %s32, 1
    %s34 = scalar_select %p31, %s32, %s33
    %p37 = pneg %p31
    %p38 = scmp.eq.s32.totalorder %s10, 1
    %p39 = por %p37, %p38
    %p40 = scmp.ne.s32.totalorder %s32, %s35
    %p41 = scmp.eq.s32.totalorder %s10, 0
    %p42 = por %p40, %p41
    %p43 = scmp.ne.s32.totalorder %s32, %s35
    %p44 = scmp.eq.s32.totalorder %s15, 1
    %p45 = por %p43, %p44
    %p46 = scmp.ne.s32.totalorder %s35, %s36
    %p47 = scmp.eq.s32.totalorder %s15, 0
    %p48 = por %p46, %p47
    %p49 = scmp.ne.s32.totalorder %s35, %s36
    %p50 = scmp.eq.s32.totalorder %s16, 1
    %p51 = por %p49, %p50
    %p53 = scmp.ne.s32.totalorder %s36, %s52
    %p54 = scmp.eq.s32.totalorder %s16, 0
    %p55 = por %p53, %p54
    %s57 = sadd.s32 %s56, 1
    %p60 = scmp.eq.s32.totalorder %s10, 1
    %p61 = scmp.ne.s32.totalorder %s56, %s58
    %p62 = scmp.eq.s32.totalorder %s10, 0
    %p63 = por %p61, %p62
    %p64 = scmp.ne.s32.totalorder %s56, %s58
    %p65 = scmp.eq.s32.totalorder %s15, 1
    %p66 = por %p64, %p65
    %p67 = scmp.ne.s32.totalorder %s58, %s59
    %p68 = scmp.eq.s32.totalorder %s15, 0
    %p69 = por %p67, %p68
    %p70 = scmp.ne.s32.totalorder %s58, %s59
    %p71 = scmp.eq.s32.totalorder %s16, 1
    %p72 = por %p70, %p71
    %p74 = scmp.ne.s32.totalorder %s59, %s73
    %p75 = scmp.eq.s32.totalorder %s16, 0
    %p76 = por %p74, %p75
    %s78 = sadd.s32 %s77, 1
    %p81 = scmp.eq.s32.totalorder %s10, 1
    %p82 = scmp.ne.s32.totalorder %s77, %s79
    %p83 = scmp.eq.s32.totalorder %s10, 0
    %p84 = por %p82, %p83
    %p85 = scmp.ne.s32.totalorder %s77, %s79
    %p86 = scmp.eq.s32.totalorder %s15, 1
    %p87 = por %p85, %p86
    %p88 = scmp.ne.s32.totalorder %s79, %s80
    %p89 = scmp.eq.s32.totalorder %s15, 0
    %p90 = por %p88, %p89
    %p91 = scmp.ne.s32.totalorder %s79, %s80
    %p92 = scmp.eq.s32.totalorder %s16, 1
    %p93 = por %p91, %p92
    %p95 = scmp.ne.s32.totalorder %s80, %s94
    %p96 = scmp.eq.s32.totalorder %s16, 0
    %p97 = por %p95, %p96
    %s99 = sadd.s32 %s98, 1
    %p102 = scmp.eq.s32.totalorder %s10, 1
    %p103 = scmp.ne.s32.totalorder %s98, %s100
    %p104 = scmp.eq.s32.totalorder %s10, 0
    %p105 = por %p103, %p104
    %p106 = scmp.ne.s32.totalorder %s98, %s100
    %p107 = scmp.eq.s32.totalorder %s15, 1
    %p108 = por %p106, %p107
    %p109 = scmp.ne.s32.totalorder %s100, %s101
    %p110 = scmp.eq.s32.totalorder %s15, 0
    %p111 = por %p109, %p110
    %p112 = scmp.ne.s32.totalorder %s100, %s101
    %p113 = scmp.eq.s32.totalorder %s16, 1
    %p114 = por %p112, %p113
    %p116 = scmp.ne.s32.totalorder %s101, %s115
    %p117 = scmp.eq.s32.totalorder %s16, 0
    %p118 = por %p116, %p117
    %s119 = ssub.s32 %s17, %s29
    %s120 = ssub.s32 %s18, %s25
    %s121 = sor.u32 %s119, %s120
    %p122 = scmp.eq.s32.totalorder %s121, 0
    %s124 = sadd.s32 %s123, 1
    %s125 = scalar_select %p122, %s123, %s124
    %p128 = pneg %p122
    %p129 = scmp.eq.s32.totalorder %s10, 1
    %p130 = por %p128, %p129
    %p131 = scmp.ne.s32.totalorder %s123, %s126
    %p132 = scmp.eq.s32.totalorder %s10, 0
    %p133 = por %p131, %p132
    %p134 = scmp.ne.s32.totalorder %s123, %s126
    %p135 = scmp.eq.s32.totalorder %s15, 1
    %p136 = por %p134, %p135
    %p137 = scmp.ne.s32.totalorder %s126, %s127
    %p138 = scmp.eq.s32.totalorder %s15, 0
    %p139 = por %p137, %p138
    %p140 = scmp.ne.s32.totalorder %s126, %s127
    %p141 = scmp.eq.s32.totalorder %s16, 1
    %p142 = por %p140, %p141
    %p144 = scmp.ne.s32.totalorder %s127, %s143
    %p145 = scmp.eq.s32.totalorder %s16, 0
    %p146 = por %p144, %p145
    %p147 = scmp.le.s32.totalorder 1, %s10
    %p148 = scmp.lt.s32.totalorder %s10, 3
    %p149 = pnand %p147, %p148
    %p150 = pneg %p149
    // Predicated region
    $region9: #{_lambda_.2} parent=5 // pred_check
      _
    $region10: #{_lambda_.2} parent=5 // pred_check_branch
      %152 = sbr.rel (%p149) target = $region12
    $region11: #{_lambda_.2} parent=5 // pred_region
      %s153 = ssub.s32 %s10, 1
      // Predicated region
      $region13: #{_lambda_.2} parent=11 // pred_check
        %p154 = pneg %p69
      $region14: #{_lambda_.2} parent=11 // pred_check_branch
        %156 = sbr.rel (%p154) target = $region16
      $region15: #{_lambda_.2} parent=11 // pred_region
        _
      $region16: #{_lambda_.2} parent=11 // pred_fallthru
        _
      // Predicated region
      $region17: #{_lambda_.2} parent=11 // pred_check
        %p157 = pneg %p90
      $region18: #{_lambda_.2} parent=11 // pred_check_branch
        %159 = sbr.rel (%p157) target = $region20
      $region19: #{_lambda_.2} parent=11 // pred_region
        _
      $region20: #{_lambda_.2} parent=11 // pred_fallthru
        _
      // Predicated region
      $region21: #{_lambda_.2} parent=11 // pred_check
        %p160 = pneg %p111
      $region22: #{_lambda_.2} parent=11 // pred_check_branch
        %162 = sbr.rel (%p160) target = $region24
      $region23: #{_lambda_.2} parent=11 // pred_region
        _
      $region24: #{_lambda_.2} parent=11 // pred_fallthru
        _
    $region12: #{_lambda_.2} parent=5 // pred_fallthru
      _
    %p163 = scmp.lt.s32.totalorder %s10, 2
    // Predicated region
    $region25: #{_lambda_.2} parent=5 // pred_check
      %p164 = pneg %p163
    $region26: #{_lambda_.2} parent=5 // pred_check_branch
      %166 = sbr.rel (%p164) target = $region28
    $region27: #{_lambda_.2} parent=5 // pred_region
      // Predicated region
      $region29: #{_lambda_.2} parent=27 // pred_check
        %p167 = pneg %p42
      $region30: #{_lambda_.2} parent=27 // pred_check_branch
        %169 = sbr.rel (%p167) target = $region32
      $region31: #{_lambda_.2} parent=27 // pred_region
        %p170 = scmp.lt.s32.totalorder %s17, 1
        %s171 = scalar_select %p170, %s17, 1
        %s172 = smul.addr %s171, 55
        %s173 = smul.addr %s172, 4
        %s174 = scalar_lea.vmem %s0, %s173
      $region32: #{_lambda_.2} parent=27 // pred_fallthru
        _
    $region28: #{_lambda_.2} parent=5 // pred_fallthru
      _
    %p175 = scmp.le.s32.totalorder 1, %s10
    %p176 = scmp.lt.s32.totalorder %s10, 3
    %p177 = pnand %p175, %p176
    %p178 = pneg %p177
    // Predicated region
    $region33: #{_lambda_.2} parent=5 // pred_check
      _
    $region34: #{_lambda_.2} parent=5 // pred_check_branch
      %180 = sbr.rel (%p177) target = $region36
    $region35: #{_lambda_.2} parent=5 // pred_region
      %s181 = ssub.s32 %s10, 1
      %p182 = scmp.lt.s32.totalorder %s19, 1
      %s183 = scalar_select %p182, %s19, 1
      %s184 = smul.addr %s183, 55
      %s185 = smul.addr %s184, 4
      %s186 = scalar_lea.vmem %s0, %s185
      %p187 = pneg %p48
      %p188 = pneg %p45
      %p189 = pneg %p69
      %p190 = pneg %p66
      %p191 = pneg %p90
      %p192 = pneg %p87
      %p193 = pneg %p111
      %p194 = pneg %p108
      %p195 = pneg %p139
      %p196 = pneg %p136
      %s197 = smul.u32 48, %s20
      %p198 = scmp.lt.s32.totalorder %s19, 1
      %s199 = scalar_select %p198, %s19, 1
      %p200 = scmp.lt.s32.totalorder %s197, 47
      %s201 = scalar_select %p200, %s197, 47
      %s202 = smul.addr %s199, 48
      %s203 = sadd.s32 %s201, %s202
      %s204 = smul.addr %s203, 4
      %s205 = scalar_lea.vmem %s4, %s204
      %p206 = scmp.lt.s32.totalorder %s19, 1
      %s207 = scalar_select %p206, %s19, 1
      %s208 = smul.addr %s207, 55
      %s209 = smul.addr %s208, 4
      %s210 = scalar_lea.vmem %s0, %s209
      %s211 = smul.u32 48, %s20
      %p212 = scmp.lt.s32.totalorder %s19, 1
      %s213 = scalar_select %p212, %s19, 1
      %p214 = scmp.lt.s32.totalorder %s211, 47
      %s215 = scalar_select %p214, %s211, 47
      %s216 = smul.addr %s213, 48
      %s217 = sadd.s32 %s215, %s216
      %s218 = smul.addr %s217, 4
      %s219 = scalar_lea.vmem %s4, %s218
      %s220 = smul.u32 48, %s20
      %s222 = smul.u32 %s20, 384
      %v223 = vld [vmem:[%s1] sm:$0xf]
      %v224 = vld [vmem:[%s1 + $0x4] sm:$0xf]
      %v225 = vld [vmem:[%s1 + $0x8] sm:$0xf]
      %v226 = vld [vmem:[%s1 + $0xc] sm:$0xf]
      %v227 = vld [vmem:[%s1 + $0x10] sm:$0xf]
      %v228 = vld [vmem:[%s1 + $0x14] sm:$0xf]
      %v229 = vld [vmem:[%s1 + $0x18] sm:$0xf]
      %v230 = vld [vmem:[%s1 + $0x1c] sm:$0xf]
      %v231 = vld [vmem:[%s1 + $0x20] sm:$0x1]
      %s232 = sshra.s32 %s222, 3
      %s233 = sand.u32 %s222, 7
      %s234 = smul.addr %s232, 4
      %s235 = scalar_lea.vmem %s210, %s234
      %v236 = vld [vmem:[%s235] sm:$0xf]
      %v237 = vld [vmem:[%s235 + $0x4] sm:$0xf]
      %v238 = vld [vmem:[%s235 + $0x8] sm:$0xf]
      %v239 = vld [vmem:[%s235 + $0xc] sm:$0xf]
      %v240 = vld [vmem:[%s235 + $0x10] sm:$0xf]
      %v241 = vld [vmem:[%s235 + $0x14] sm:$0xf]
      %v242 = vld [vmem:[%s235 + $0x18] sm:$0xf]
      %v243 = vld [vmem:[%s235 + $0x1c] sm:$0xf]
      %v244 = vld [vmem:[%s235 + $0x20] sm:$0xf]
      %v245 = vld [vmem:[%s235 + $0x24] sm:$0xf]
      %v246 = vld [vmem:[%s235 + $0x28] sm:$0xf]
      %v247 = vld [vmem:[%s235 + $0x2c] sm:$0xf]
      %v248 = vld [vmem:[%s235 + $0x30] sm:$0xf]
      %v249 = vld [vmem:[%s235 + $0x34] sm:$0xf]
      %v250 = vld [vmem:[%s235 + $0x38] sm:$0xf]
      %v251 = vld [vmem:[%s235 + $0x3c] sm:$0xf]
      %v252 = vld [vmem:[%s235 + $0x40] sm:$0xf]
      %v253 = vld [vmem:[%s235 + $0x44] sm:$0xf]
      %v254 = vld [vmem:[%s235 + $0x48] sm:$0xf]
      %v255 = vld [vmem:[%s235 + $0x4c] sm:$0xf]
      %v256 = vld [vmem:[%s235 + $0x50] sm:$0xf]
      %v257 = vld [vmem:[%s235 + $0x54] sm:$0xf]
      %v258 = vld [vmem:[%s235 + $0x58] sm:$0xf]
      %v259 = vld [vmem:[%s235 + $0x5c] sm:$0xf]
      %v260 = vld [vmem:[%s235 + $0x60] sm:$0xf]
      %v261 = vld [vmem:[%s235 + $0x64] sm:$0xf]
      %v262 = vld [vmem:[%s235 + $0x68] sm:$0xf]
      %v263 = vld [vmem:[%s235 + $0x6c] sm:$0xf]
      %v264 = vld [vmem:[%s235 + $0x70] sm:$0xf]
      %v265 = vld [vmem:[%s235 + $0x74] sm:$0xf]
      %v266 = vld [vmem:[%s235 + $0x78] sm:$0xf]
      %v267 = vld [vmem:[%s235 + $0x7c] sm:$0xf]
      %v268 = vld [vmem:[%s235 + $0x80] sm:$0xf]
      %v269 = vld [vmem:[%s235 + $0x84] sm:$0xf]
      %v270 = vld [vmem:[%s235 + $0x88] sm:$0xf]
      %v271 = vld [vmem:[%s235 + $0x8c] sm:$0xf]
      %v272 = vld [vmem:[%s235 + $0x90] sm:$0xf]
      %v273 = vld [vmem:[%s235 + $0x94] sm:$0xf]
      %v274 = vld [vmem:[%s235 + $0x98] sm:$0xf]
      %v275 = vld [vmem:[%s235 + $0x9c] sm:$0xf]
      %v276 = vld [vmem:[%s235 + $0xa0] sm:$0xf]
      %v277 = vld [vmem:[%s235 + $0xa4] sm:$0xf]
      %v278 = vld [vmem:[%s235 + $0xa8] sm:$0xf]
      %v279 = vld [vmem:[%s235 + $0xac] sm:$0xf]
      %v280 = vld [vmem:[%s235 + $0xb0] sm:$0xf]
      %v281 = vld [vmem:[%s235 + $0xb4] sm:$0xf]
      %v282 = vld [vmem:[%s235 + $0xb8] sm:$0xf]
      %v283 = vld [vmem:[%s235 + $0xbc] sm:$0xf]
      %v284 = vld [vmem:[%s235 + $0xc0] sm:$0xf]
      %v285 = vld [vmem:[%s235 + $0xc4] sm:$0xf]
      %v286 = vld [vmem:[%s235 + $0xc8] sm:$0xf]
      %v287 = vld [vmem:[%s235 + $0xcc] sm:$0xf]
      %v288 = vld [vmem:[%s235 + $0xd0] sm:$0xf]
      %v289 = vld [vmem:[%s235 + $0xd4] sm:$0xf]
      %v290 = vld [vmem:[%s235 + $0xd8] sm:$0x1]
      %v346 = vunpack.c.l.b16 %v236
      %v347 = vunpack.c.l.b16 %v237
      %v348 = vunpack.c.l.b16 %v238
      %v349 = vunpack.c.l.b16 %v239
      %v350 = vunpack.c.l.b16 %v240
      %v351 = vunpack.c.l.b16 %v241
      %v352 = vunpack.c.l.b16 %v242
      %v353 = vunpack.c.l.b16 %v243
      %v354 = vunpack.c.l.b16 %v244
      %v355 = vunpack.c.l.b16 %v245
      %v356 = vunpack.c.l.b16 %v246
      %v357 = vunpack.c.l.b16 %v247
      %v358 = vunpack.c.l.b16 %v248
      %v359 = vunpack.c.l.b16 %v249
      %v360 = vunpack.c.l.b16 %v250
      %v361 = vunpack.c.l.b16 %v251
      %v362 = vunpack.c.l.b16 %v252
      %v363 = vunpack.c.l.b16 %v253
      %v364 = vunpack.c.l.b16 %v254
      %v365 = vunpack.c.l.b16 %v255
      %v366 = vunpack.c.l.b16 %v256
      %v367 = vunpack.c.l.b16 %v257
      %v368 = vunpack.c.l.b16 %v258
      %v369 = vunpack.c.l.b16 %v259
      %v370 = vunpack.c.l.b16 %v260
      %v371 = vunpack.c.l.b16 %v261
      %v372 = vunpack.c.l.b16 %v262
      %v373 = vunpack.c.l.b16 %v263
      %v374 = vunpack.c.l.b16 %v264
      %v375 = vunpack.c.l.b16 %v265
      %v376 = vunpack.c.l.b16 %v266
      %v377 = vunpack.c.l.b16 %v267
      %v378 = vunpack.c.l.b16 %v268
      %v379 = vunpack.c.l.b16 %v269
      %v380 = vunpack.c.l.b16 %v270
      %v381 = vunpack.c.l.b16 %v271
      %v382 = vunpack.c.l.b16 %v272
      %v383 = vunpack.c.l.b16 %v273
      %v384 = vunpack.c.l.b16 %v274
      %v385 = vunpack.c.l.b16 %v275
      %v386 = vunpack.c.l.b16 %v276
      %v387 = vunpack.c.l.b16 %v277
      %v388 = vunpack.c.l.b16 %v278
      %v389 = vunpack.c.l.b16 %v279
      %v390 = vunpack.c.l.b16 %v280
      %v391 = vunpack.c.l.b16 %v281
      %v392 = vunpack.c.l.b16 %v282
      %v393 = vunpack.c.l.b16 %v283
      %v394 = vunpack.c.l.b16 %v284
      %v395 = vunpack.c.l.b16 %v285
      %v396 = vunpack.c.l.b16 %v286
      %v397 = vunpack.c.l.b16 %v287
      %v398 = vunpack.c.l.b16 %v288
      %v399 = vunpack.c.l.b16 %v289
      %v400 = vunpack.c.l.b16 %v290
      %v401 = vpack.c.b16 %v347, %v346
      %v402 = vpack.c.b16 %v349, %v348
      %v403 = vpack.c.b16 %v351, %v350
      %v404 = vpack.c.b16 %v353, %v352
      %v405 = vpack.c.b16 %v355, %v354
      %v406 = vpack.c.b16 %v357, %v356
      %v407 = vpack.c.b16 %v359, %v358
      %v408 = vpack.c.b16 %v361, %v360
      %v409 = vpack.c.b16 %v363, %v362
      %v410 = vpack.c.b16 %v365, %v364
      %v411 = vpack.c.b16 %v367, %v366
      %v412 = vpack.c.b16 %v369, %v368
      %v413 = vpack.c.b16 %v371, %v370
      %v414 = vpack.c.b16 %v373, %v372
      %v415 = vpack.c.b16 %v375, %v374
      %v416 = vpack.c.b16 %v377, %v376
      %v417 = vpack.c.b16 %v379, %v378
      %v418 = vpack.c.b16 %v381, %v380
      %v419 = vpack.c.b16 %v383, %v382
      %v420 = vpack.c.b16 %v385, %v384
      %v421 = vpack.c.b16 %v387, %v386
      %v422 = vpack.c.b16 %v389, %v388
      %v423 = vpack.c.b16 %v391, %v390
      %v424 = vpack.c.b16 %v393, %v392
      %v425 = vpack.c.b16 %v395, %v394
      %v426 = vpack.c.b16 %v397, %v396
      %v427 = vpack.c.b16 %v399, %v398
      %v428 = vpack.c.b16 %v400, %v400
      %v438 = vunpack.c.l.b16 %v223
      %v439 = vunpack.c.l.b16 %v224
      %v440 = vunpack.c.l.b16 %v225
      %v441 = vunpack.c.l.b16 %v226
      %v442 = vunpack.c.l.b16 %v227
      %v443 = vunpack.c.l.b16 %v228
      %v444 = vunpack.c.l.b16 %v229
      %v445 = vunpack.c.l.b16 %v230
      %v446 = vunpack.c.l.b16 %v231
      %v447 = vpack.c.b16 %v439, %v438
      %v448 = vpack.c.b16 %v441, %v440
      %v449 = vpack.c.b16 %v443, %v442
      %v450 = vpack.c.b16 %v445, %v444
      %v451 = vpack.c.b16 %v446, %v446
      %vm456 = vcmask 531456
      %v458 = vsel %vm456, %v401, 0
      %v461 = vsel %vm456, %v402, 0
      %v464 = vsel %vm456, %v403, 0
      %v467 = vsel %vm456, %v404, 0
      %v470 = vsel %vm456, %v405, 0
      %v473 = vsel %vm456, %v406, 0
      %v476 = vsel %vm456, %v407, 0
      %v479 = vsel %vm456, %v408, 0
      %v482 = vsel %vm456, %v409, 0
      %v485 = vsel %vm456, %v410, 0
      %v488 = vsel %vm456, %v411, 0
      %v491 = vsel %vm456, %v412, 0
      %v494 = vsel %vm456, %v413, 0
      %v497 = vsel %vm456, %v414, 0
      %v500 = vsel %vm456, %v415, 0
      %v503 = vsel %vm456, %v416, 0
      %v506 = vsel %vm456, %v417, 0
      %v509 = vsel %vm456, %v418, 0
      %v512 = vsel %vm456, %v419, 0
      %v515 = vsel %vm456, %v420, 0
      %v518 = vsel %vm456, %v421, 0
      %v521 = vsel %vm456, %v422, 0
      %v524 = vsel %vm456, %v423, 0
      %v527 = vsel %vm456, %v424, 0
      %v530 = vsel %vm456, %v425, 0
      %v533 = vsel %vm456, %v426, 0
      %v536 = vsel %vm456, %v427, 0
      %v539 = vsel %vm456, %v428, 0
      %vm541 = vcmask 1040384
      %v542 = vsel 0, 4294967295, 65535
      %v543 = vsel %vm541, %v542, 0
      %v545 = vand.u32 %v451, %v543
      %547 = vmatpush.bf16.msra.mxu0 0
      %548 = vmatpush.bf16.msra.mxu0 0
      %549 = vmatpush.bf16.msra.mxu0 0
      %550 = vmatpush.bf16.msra.mxu0 %v545
      %551 = vmatpush.bf16.msra.mxu0 %v450
      %552 = vmatpush.bf16.msra.mxu0 %v449
      %553 = vmatpush.bf16.msra.mxu0 %v448
      %554 = vmatpush.bf16.msra.mxu0 %v447
      %555 = vmatmul.bf16.gmra.mxu0 %v458
      %v556 = vpop.f32.mrf.mxu0
      %v557 = vadd.f32 0.0, %v556
      %v558 = vpop.f32.mrf.mxu0
      %v559 = vadd.f32 0.0, %v558
      %560 = vmatmul.bf16.gmra.mxu0 %v461
      %v561 = vpop.f32.mrf.mxu0
      %v562 = vadd.f32 0.0, %v561
      %v563 = vpop.f32.mrf.mxu0
      %v564 = vadd.f32 0.0, %v563
      %565 = vmatmul.bf16.gmra.mxu0 %v464
      %v566 = vpop.f32.mrf.mxu0
      %v567 = vadd.f32 0.0, %v566
      %v568 = vpop.f32.mrf.mxu0
      %v569 = vadd.f32 0.0, %v568
      %570 = vmatmul.bf16.gmra.mxu0 %v467
      %v571 = vpop.f32.mrf.mxu0
      %v572 = vadd.f32 0.0, %v571
      %v573 = vpop.f32.mrf.mxu0
      %v574 = vadd.f32 0.0, %v573
      %575 = vmatmul.bf16.gmra.mxu0 %v470
      %v576 = vpop.f32.mrf.mxu0
      %v577 = vadd.f32 0.0, %v576
      %v578 = vpop.f32.mrf.mxu0
      %v579 = vadd.f32 0.0, %v578
      %580 = vmatmul.bf16.gmra.mxu0 %v473
      %v581 = vpop.f32.mrf.mxu0
      %v582 = vadd.f32 0.0, %v581
      %v583 = vpop.f32.mrf.mxu0
      %v584 = vadd.f32 0.0, %v583
      %585 = vmatmul.bf16.gmra.mxu0 %v476
      %v586 = vpop.f32.mrf.mxu0
      %v587 = vadd.f32 0.0, %v586
      %v588 = vpop.f32.mrf.mxu0
      %v589 = vadd.f32 0.0, %v588
      %590 = vmatmul.bf16.gmra.mxu0 %v479
      %v591 = vpop.f32.mrf.mxu0
      %v592 = vadd.f32 0.0, %v591
      %v593 = vpop.f32.mrf.mxu0
      %v594 = vadd.f32 0.0, %v593
      %595 = vmatmul.bf16.gmra.mxu0 %v482
      %v596 = vpop.f32.mrf.mxu0
      %v597 = vadd.f32 0.0, %v596
      %v598 = vpop.f32.mrf.mxu0
      %v599 = vadd.f32 0.0, %v598
      %600 = vmatmul.bf16.gmra.mxu0 %v485
      %v601 = vpop.f32.mrf.mxu0
      %v602 = vadd.f32 0.0, %v601
      %v603 = vpop.f32.mrf.mxu0
      %v604 = vadd.f32 0.0, %v603
      %605 = vmatmul.bf16.gmra.mxu0 %v488
      %v606 = vpop.f32.mrf.mxu0
      %v607 = vadd.f32 0.0, %v606
      %v608 = vpop.f32.mrf.mxu0
      %v609 = vadd.f32 0.0, %v608
      %610 = vmatmul.bf16.gmra.mxu0 %v491
      %v611 = vpop.f32.mrf.mxu0
      %v612 = vadd.f32 0.0, %v611
      %v613 = vpop.f32.mrf.mxu0
      %v614 = vadd.f32 0.0, %v613
      %615 = vmatmul.bf16.gmra.mxu0 %v494
      %v616 = vpop.f32.mrf.mxu0
      %v617 = vadd.f32 0.0, %v616
      %v618 = vpop.f32.mrf.mxu0
      %v619 = vadd.f32 0.0, %v618
      %620 = vmatmul.bf16.gmra.mxu0 %v497
      %v621 = vpop.f32.mrf.mxu0
      %v622 = vadd.f32 0.0, %v621
      %v623 = vpop.f32.mrf.mxu0
      %v624 = vadd.f32 0.0, %v623
      %625 = vmatmul.bf16.gmra.mxu0 %v500
      %v626 = vpop.f32.mrf.mxu0
      %v627 = vadd.f32 0.0, %v626
      %v628 = vpop.f32.mrf.mxu0
      %v629 = vadd.f32 0.0, %v628
      %630 = vmatmul.bf16.gmra.mxu0 %v503
      %v631 = vpop.f32.mrf.mxu0
      %v632 = vadd.f32 0.0, %v631
      %v633 = vpop.f32.mrf.mxu0
      %v634 = vadd.f32 0.0, %v633
      %635 = vmatmul.bf16.gmra.mxu0 %v506
      %v636 = vpop.f32.mrf.mxu0
      %v637 = vadd.f32 0.0, %v636
      %v638 = vpop.f32.mrf.mxu0
      %v639 = vadd.f32 0.0, %v638
      %640 = vmatmul.bf16.gmra.mxu0 %v509
      %v641 = vpop.f32.mrf.mxu0
      %v642 = vadd.f32 0.0, %v641
      %v643 = vpop.f32.mrf.mxu0
      %v644 = vadd.f32 0.0, %v643
      %645 = vmatmul.bf16.gmra.mxu0 %v512
      %v646 = vpop.f32.mrf.mxu0
      %v647 = vadd.f32 0.0, %v646
      %v648 = vpop.f32.mrf.mxu0
      %v649 = vadd.f32 0.0, %v648
      %650 = vmatmul.bf16.gmra.mxu0 %v515
      %v651 = vpop.f32.mrf.mxu0
      %v652 = vadd.f32 0.0, %v651
      %v653 = vpop.f32.mrf.mxu0
      %v654 = vadd.f32 0.0, %v653
      %655 = vmatmul.bf16.gmra.mxu0 %v518
      %v656 = vpop.f32.mrf.mxu0
      %v657 = vadd.f32 0.0, %v656
      %v658 = vpop.f32.mrf.mxu0
      %v659 = vadd.f32 0.0, %v658
      %660 = vmatmul.bf16.gmra.mxu0 %v521
      %v661 = vpop.f32.mrf.mxu0
      %v662 = vadd.f32 0.0, %v661
      %v663 = vpop.f32.mrf.mxu0
      %v664 = vadd.f32 0.0, %v663
      %665 = vmatmul.bf16.gmra.mxu0 %v524
      %v666 = vpop.f32.mrf.mxu0
      %v667 = vadd.f32 0.0, %v666
      %v668 = vpop.f32.mrf.mxu0
      %v669 = vadd.f32 0.0, %v668
      %670 = vmatmul.bf16.gmra.mxu0 %v527
      %v671 = vpop.f32.mrf.mxu0
      %v672 = vadd.f32 0.0, %v671
      %v673 = vpop.f32.mrf.mxu0
      %v674 = vadd.f32 0.0, %v673
      %675 = vmatmul.bf16.gmra.mxu0 %v530
      %v676 = vpop.f32.mrf.mxu0
      %v677 = vadd.f32 0.0, %v676
      %v678 = vpop.f32.mrf.mxu0
      %v679 = vadd.f32 0.0, %v678
      %680 = vmatmul.bf16.gmra.mxu0 %v533
      %v681 = vpop.f32.mrf.mxu0
      %v682 = vadd.f32 0.0, %v681
      %v683 = vpop.f32.mrf.mxu0
      %v684 = vadd.f32 0.0, %v683
      %685 = vmatmul.bf16.gmra.mxu0 %v536
      %v686 = vpop.f32.mrf.mxu0
      %v687 = vadd.f32 0.0, %v686
      %v688 = vpop.f32.mrf.mxu0
      %v689 = vadd.f32 0.0, %v688
      %690 = vmatmul.bf16.gmra.mxu0 %v539
      %v691 = vpop.f32.mrf.mxu0
      %v692 = vadd.f32 0.0, %v691
      %v693 = vpop.f32.mrf.mxu0
      %694 = vdwg.mxu0
      %v695 = vmax.f32 %v557, 0.0
      %v696 = vmax.f32 %v559, 0.0
      %v697 = vmax.f32 %v562, 0.0
      %v698 = vmax.f32 %v564, 0.0
      %v699 = vmax.f32 %v567, 0.0
      %v700 = vmax.f32 %v569, 0.0
      %v701 = vmax.f32 %v572, 0.0
      %v702 = vmax.f32 %v574, 0.0
      %v703 = vmax.f32 %v577, 0.0
      %v704 = vmax.f32 %v579, 0.0
      %v705 = vmax.f32 %v582, 0.0
      %v706 = vmax.f32 %v584, 0.0
      %v707 = vmax.f32 %v587, 0.0
      %v708 = vmax.f32 %v589, 0.0
      %v709 = vmax.f32 %v592, 0.0
      %v710 = vmax.f32 %v594, 0.0
      %v711 = vmax.f32 %v597, 0.0
      %v712 = vmax.f32 %v599, 0.0
      %v713 = vmax.f32 %v602, 0.0
      %v714 = vmax.f32 %v604, 0.0
      %v715 = vmax.f32 %v607, 0.0
      %v716 = vmax.f32 %v609, 0.0
      %v717 = vmax.f32 %v612, 0.0
      %v718 = vmax.f32 %v614, 0.0
      %v719 = vmax.f32 %v617, 0.0
      %v720 = vmax.f32 %v619, 0.0
      %v721 = vmax.f32 %v622, 0.0
      %v722 = vmax.f32 %v624, 0.0
      %v723 = vmax.f32 %v627, 0.0
      %v724 = vmax.f32 %v629, 0.0
      %v725 = vmax.f32 %v632, 0.0
      %v726 = vmax.f32 %v634, 0.0
      %v727 = vmax.f32 %v637, 0.0
      %v728 = vmax.f32 %v639, 0.0
      %v729 = vmax.f32 %v642, 0.0
      %v730 = vmax.f32 %v644, 0.0
      %v731 = vmax.f32 %v647, 0.0
      %v732 = vmax.f32 %v649, 0.0
      %v733 = vmax.f32 %v652, 0.0
      %v734 = vmax.f32 %v654, 0.0
      %v735 = vmax.f32 %v657, 0.0
      %v736 = vmax.f32 %v659, 0.0
      %v737 = vmax.f32 %v662, 0.0
      %v738 = vmax.f32 %v664, 0.0
      %v739 = vmax.f32 %v667, 0.0
      %v740 = vmax.f32 %v669, 0.0
      %v741 = vmax.f32 %v672, 0.0
      %v742 = vmax.f32 %v674, 0.0
      %v743 = vmax.f32 %v677, 0.0
      %v744 = vmax.f32 %v679, 0.0
      %v745 = vmax.f32 %v682, 0.0
      %v746 = vmax.f32 %v684, 0.0
      %v747 = vmax.f32 %v687, 0.0
      %v748 = vmax.f32 %v689, 0.0
      %v749 = vmax.f32 %v692, 0.0
      %v750 = vpack.c.bf16 %v695, %v695
      %v751 = vpack.c.bf16 %v696, %v696
      %v752 = vpack.c.bf16 %v697, %v697
      %v753 = vpack.c.bf16 %v698, %v698
      %v754 = vpack.c.bf16 %v699, %v699
      %v755 = vpack.c.bf16 %v700, %v700
      %v756 = vpack.c.bf16 %v701, %v701
      %v757 = vpack.c.bf16 %v702, %v702
      %v758 = vpack.c.bf16 %v703, %v703
      %v759 = vpack.c.bf16 %v704, %v704
      %v760 = vpack.c.bf16 %v705, %v705
      %v761 = vpack.c.bf16 %v706, %v706
      %v762 = vpack.c.bf16 %v707, %v707
      %v763 = vpack.c.bf16 %v708, %v708
      %v764 = vpack.c.bf16 %v709, %v709
      %v765 = vpack.c.bf16 %v710, %v710
      %v766 = vpack.c.bf16 %v711, %v711
      %v767 = vpack.c.bf16 %v712, %v712
      %v768 = vpack.c.bf16 %v713, %v713
      %v769 = vpack.c.bf16 %v714, %v714
      %v770 = vpack.c.bf16 %v715, %v715
      %v771 = vpack.c.bf16 %v716, %v716
      %v772 = vpack.c.bf16 %v717, %v717
      %v773 = vpack.c.bf16 %v718, %v718
      %v774 = vpack.c.bf16 %v719, %v719
      %v775 = vpack.c.bf16 %v720, %v720
      %v776 = vpack.c.bf16 %v721, %v721
      %v777 = vpack.c.bf16 %v722, %v722
      %v778 = vpack.c.bf16 %v723, %v723
      %v779 = vpack.c.bf16 %v724, %v724
      %v780 = vpack.c.bf16 %v725, %v725
      %v781 = vpack.c.bf16 %v726, %v726
      %v782 = vpack.c.bf16 %v727, %v727
      %v783 = vpack.c.bf16 %v728, %v728
      %v784 = vpack.c.bf16 %v729, %v729
      %v785 = vpack.c.bf16 %v730, %v730
      %v786 = vpack.c.bf16 %v731, %v731
      %v787 = vpack.c.bf16 %v732, %v732
      %v788 = vpack.c.bf16 %v733, %v733
      %v789 = vpack.c.bf16 %v734, %v734
      %v790 = vpack.c.bf16 %v735, %v735
      %v791 = vpack.c.bf16 %v736, %v736
      %v792 = vpack.c.bf16 %v737, %v737
      %v793 = vpack.c.bf16 %v738, %v738
      %v794 = vpack.c.bf16 %v739, %v739
      %v795 = vpack.c.bf16 %v740, %v740
      %v796 = vpack.c.bf16 %v741, %v741
      %v797 = vpack.c.bf16 %v742, %v742
      %v798 = vpack.c.bf16 %v743, %v743
      %v799 = vpack.c.bf16 %v744, %v744
      %v800 = vpack.c.bf16 %v745, %v745
      %v801 = vpack.c.bf16 %v746, %v746
      %v802 = vpack.c.bf16 %v747, %v747
      %v803 = vpack.c.bf16 %v748, %v748
      %v804 = vpack.c.bf16 %v749, %v749
      %v805 = vld [vmem:[%s2] sm:$0xf]
      %v806 = vld [vmem:[%s2 + $0x4] sm:$0xf]
      %s807 = scalar_lea.vmem %s2, 8
      %v808 = vld [vmem:[%s807] sm:$0xf]
      %v809 = vld [vmem:[%s807 + $0x4] sm:$0xf]
      %v859 = vunpack.c.l.b16 %v750
      %v860 = vunpack.c.l.b16 %v751
      %v861 = vunpack.c.l.b16 %v752
      %v862 = vunpack.c.l.b16 %v753
      %v863 = vunpack.c.l.b16 %v754
      %v864 = vunpack.c.l.b16 %v755
      %v865 = vunpack.c.l.b16 %v756
      %v866 = vunpack.c.l.b16 %v757
      %v867 = vunpack.c.l.b16 %v758
      %v868 = vunpack.c.l.b16 %v759
      %v869 = vunpack.c.l.b16 %v760
      %v870 = vunpack.c.l.b16 %v761
      %v871 = vunpack.c.l.b16 %v762
      %v872 = vunpack.c.l.b16 %v763
      %v873 = vunpack.c.l.b16 %v764
      %v874 = vunpack.c.l.b16 %v765
      %v875 = vunpack.c.l.b16 %v766
      %v876 = vunpack.c.l.b16 %v767
      %v877 = vunpack.c.l.b16 %v768
      %v878 = vunpack.c.l.b16 %v769
      %v879 = vunpack.c.l.b16 %v770
      %v880 = vunpack.c.l.b16 %v771
      %v881 = vunpack.c.l.b16 %v772
      %v882 = vunpack.c.l.b16 %v773
      %v883 = vunpack.c.l.b16 %v774
      %v884 = vunpack.c.l.b16 %v775
      %v885 = vunpack.c.l.b16 %v776
      %v886 = vunpack.c.l.b16 %v777
      %v887 = vunpack.c.l.b16 %v778
      %v888 = vunpack.c.l.b16 %v779
      %v889 = vunpack.c.l.b16 %v780
      %v890 = vunpack.c.l.b16 %v781
      %v891 = vunpack.c.l.b16 %v782
      %v892 = vunpack.c.l.b16 %v783
      %v893 = vunpack.c.l.b16 %v784
      %v894 = vunpack.c.l.b16 %v785
      %v895 = vunpack.c.l.b16 %v786
      %v896 = vunpack.c.l.b16 %v787
      %v897 = vunpack.c.l.b16 %v788
      %v898 = vunpack.c.l.b16 %v789
      %v899 = vunpack.c.l.b16 %v790
      %v900 = vunpack.c.l.b16 %v791
      %v901 = vunpack.c.l.b16 %v792
      %v902 = vunpack.c.l.b16 %v793
      %v903 = vunpack.c.l.b16 %v794
      %v904 = vunpack.c.l.b16 %v795
      %v905 = vunpack.c.l.b16 %v796
      %v906 = vunpack.c.l.b16 %v797
      %v907 = vunpack.c.l.b16 %v798
      %v908 = vpack.c.b16 %v860, %v859
      %v909 = vpack.c.b16 %v862, %v861
      %v910 = vpack.c.b16 %v864, %v863
      %v911 = vpack.c.b16 %v866, %v865
      %v912 = vpack.c.b16 %v868, %v867
      %v913 = vpack.c.b16 %v870, %v869
      %v914 = vpack.c.b16 %v872, %v871
      %v915 = vpack.c.b16 %v874, %v873
      %v916 = vpack.c.b16 %v876, %v875
      %v917 = vpack.c.b16 %v878, %v877
      %v918 = vpack.c.b16 %v880, %v879
      %v919 = vpack.c.b16 %v882, %v881
      %v920 = vpack.c.b16 %v884, %v883
      %v921 = vpack.c.b16 %v886, %v885
      %v922 = vpack.c.b16 %v888, %v887
      %v923 = vpack.c.b16 %v890, %v889
      %v924 = vpack.c.b16 %v892, %v891
      %v925 = vpack.c.b16 %v894, %v893
      %v926 = vpack.c.b16 %v896, %v895
      %v927 = vpack.c.b16 %v898, %v897
      %v928 = vpack.c.b16 %v900, %v899
      %v929 = vpack.c.b16 %v902, %v901
      %v930 = vpack.c.b16 %v904, %v903
      %v931 = vpack.c.b16 %v906, %v905
      %v932 = vpack.c.b16 %v907, %v907
      %vm933 = vsmask.f32 7424
      %v935 = vshrl.u32 %v908, 16
      %v937 = vshll.u32 %v908, 16
      %v939 = vrot.slane %v937, 1
      %v940 = vor.u32 %v935, %v939
      %v942 = vshll.u32 %v909, 16
      %v944 = vrot.slane %v942, 1
      %v945 = vsel %vm933, %v940, %v944
      %v946 = vshrl.u32 %v909, 16
      %v948 = vor.u32 %v946, %v944
      %v950 = vshll.u32 %v910, 16
      %v952 = vrot.slane %v950, 1
      %v953 = vsel %vm933, %v948, %v952
      %v954 = vshrl.u32 %v910, 16
      %v956 = vor.u32 %v954, %v952
      %v958 = vshll.u32 %v911, 16
      %v960 = vrot.slane %v958, 1
      %v961 = vsel %vm933, %v956, %v960
      %v962 = vshrl.u32 %v911, 16
      %v964 = vor.u32 %v962, %v960
      %v966 = vshll.u32 %v912, 16
      %v968 = vrot.slane %v966, 1
      %v969 = vsel %vm933, %v964, %v968
      %v970 = vshrl.u32 %v912, 16
      %v972 = vor.u32 %v970, %v968
      %v974 = vshll.u32 %v913, 16
      %v976 = vrot.slane %v974, 1
      %v977 = vsel %vm933, %v972, %v976
      %v978 = vshrl.u32 %v913, 16
      %v980 = vor.u32 %v978, %v976
      %v982 = vshll.u32 %v914, 16
      %v984 = vrot.slane %v982, 1
      %v985 = vsel %vm933, %v980, %v984
      %v986 = vshrl.u32 %v914, 16
      %v988 = vor.u32 %v986, %v984
      %v990 = vshll.u32 %v915, 16
      %v992 = vrot.slane %v990, 1
      %v993 = vsel %vm933, %v988, %v992
      %v994 = vshrl.u32 %v915, 16
      %v996 = vor.u32 %v994, %v992
      %v998 = vshll.u32 %v916, 16
      %v1000 = vrot.slane %v998, 1
      %v1001 = vsel %vm933, %v996, %v1000
      %v1002 = vshrl.u32 %v916, 16
      %v1004 = vor.u32 %v1002, %v1000
      %v1006 = vshll.u32 %v917, 16
      %v1008 = vrot.slane %v1006, 1
      %v1009 = vsel %vm933, %v1004, %v1008
      %v1010 = vshrl.u32 %v917, 16
      %v1012 = vor.u32 %v1010, %v1008
      %v1014 = vshll.u32 %v918, 16
      %v1016 = vrot.slane %v1014, 1
      %v1017 = vsel %vm933, %v1012, %v1016
      %v1018 = vshrl.u32 %v918, 16
      %v1020 = vor.u32 %v1018, %v1016
      %v1022 = vshll.u32 %v919, 16
      %v1024 = vrot.slane %v1022, 1
      %v1025 = vsel %vm933, %v1020, %v1024
      %v1026 = vshrl.u32 %v919, 16
      %v1028 = vor.u32 %v1026, %v1024
      %v1030 = vshll.u32 %v920, 16
      %v1032 = vrot.slane %v1030, 1
      %v1033 = vsel %vm933, %v1028, %v1032
      %v1034 = vshrl.u32 %v920, 16
      %v1036 = vor.u32 %v1034, %v1032
      %v1038 = vshll.u32 %v921, 16
      %v1040 = vrot.slane %v1038, 1
      %v1041 = vsel %vm933, %v1036, %v1040
      %v1042 = vshrl.u32 %v921, 16
      %v1044 = vor.u32 %v1042, %v1040
      %v1046 = vshll.u32 %v922, 16
      %v1048 = vrot.slane %v1046, 1
      %v1049 = vsel %vm933, %v1044, %v1048
      %v1050 = vshrl.u32 %v922, 16
      %v1052 = vor.u32 %v1050, %v1048
      %v1054 = vshll.u32 %v923, 16
      %v1056 = vrot.slane %v1054, 1
      %v1057 = vsel %vm933, %v1052, %v1056
      %v1058 = vshrl.u32 %v923, 16
      %v1060 = vor.u32 %v1058, %v1056
      %v1062 = vshll.u32 %v924, 16
      %v1064 = vrot.slane %v1062, 1
      %v1065 = vsel %vm933, %v1060, %v1064
      %v1066 = vshrl.u32 %v924, 16
      %v1068 = vor.u32 %v1066, %v1064
      %v1070 = vshll.u32 %v925, 16
      %v1072 = vrot.slane %v1070, 1
      %v1073 = vsel %vm933, %v1068, %v1072
      %v1074 = vshrl.u32 %v925, 16
      %v1076 = vor.u32 %v1074, %v1072
      %v1078 = vshll.u32 %v926, 16
      %v1080 = vrot.slane %v1078, 1
      %v1081 = vsel %vm933, %v1076, %v1080
      %v1082 = vshrl.u32 %v926, 16
      %v1084 = vor.u32 %v1082, %v1080
      %v1086 = vshll.u32 %v927, 16
      %v1088 = vrot.slane %v1086, 1
      %v1089 = vsel %vm933, %v1084, %v1088
      %v1090 = vshrl.u32 %v927, 16
      %v1092 = vor.u32 %v1090, %v1088
      %v1094 = vshll.u32 %v928, 16
      %v1096 = vrot.slane %v1094, 1
      %v1097 = vsel %vm933, %v1092, %v1096
      %v1098 = vshrl.u32 %v928, 16
      %v1100 = vor.u32 %v1098, %v1096
      %v1102 = vshll.u32 %v929, 16
      %v1104 = vrot.slane %v1102, 1
      %v1105 = vsel %vm933, %v1100, %v1104
      %v1106 = vshrl.u32 %v929, 16
      %v1108 = vor.u32 %v1106, %v1104
      %v1110 = vshll.u32 %v930, 16
      %v1112 = vrot.slane %v1110, 1
      %v1113 = vsel %vm933, %v1108, %v1112
      %v1114 = vshrl.u32 %v930, 16
      %v1116 = vor.u32 %v1114, %v1112
      %v1118 = vshll.u32 %v931, 16
      %v1120 = vrot.slane %v1118, 1
      %v1121 = vsel %vm933, %v1116, %v1120
      %v1122 = vshrl.u32 %v931, 16
      %v1124 = vor.u32 %v1122, %v1120
      %v1126 = vshll.u32 %v932, 16
      %v1128 = vrot.slane %v1126, 1
      %v1129 = vsel %vm933, %v1124, %v1128
      %v1132 = vunpack.c.l.b16 %v808
      %v1133 = vunpack.c.l.b16 %v809
      %v1134 = vpack.c.b16 %v1133, %v1132
      %vm1136 = vcmask 130048
      %v1138 = vsel %vm1136, %v945, 0
      %v1141 = vsel %vm1136, %v953, 0
      %v1144 = vsel %vm1136, %v961, 0
      %v1147 = vsel %vm1136, %v969, 0
      %v1150 = vsel %vm1136, %v977, 0
      %v1153 = vsel %vm1136, %v985, 0
      %v1156 = vsel %vm1136, %v993, 0
      %v1159 = vsel %vm1136, %v1001, 0
      %v1162 = vsel %vm1136, %v1009, 0
      %v1165 = vsel %vm1136, %v1017, 0
      %v1168 = vsel %vm1136, %v1025, 0
      %v1171 = vsel %vm1136, %v1033, 0
      %v1174 = vsel %vm1136, %v1041, 0
      %v1177 = vsel %vm1136, %v1049, 0
      %v1180 = vsel %vm1136, %v1057, 0
      %v1183 = vsel %vm1136, %v1065, 0
      %v1186 = vsel %vm1136, %v1073, 0
      %v1189 = vsel %vm1136, %v1081, 0
      %v1192 = vsel %vm1136, %v1089, 0
      %v1195 = vsel %vm1136, %v1097, 0
      %v1198 = vsel %vm1136, %v1105, 0
      %v1201 = vsel %vm1136, %v1113, 0
      %v1204 = vsel %vm1136, %v1121, 0
      %v1207 = vsel %vm1136, %v1129, 0
      %1209 = vmatpush.bf16.msra.mxu0 0
      %1210 = vmatpush.bf16.msra.mxu0 0
      %1211 = vmatpush.bf16.msra.mxu0 0
      %1212 = vmatpush.bf16.msra.mxu0 0
      %1213 = vmatpush.bf16.msra.mxu0 0
      %1214 = vmatpush.bf16.msra.mxu0 0
      %1215 = vmatpush.bf16.msra.mxu0 0
      %1216 = vmatpush.bf16.msra.mxu0 %v1134
      %1217 = vmatmul.bf16.gmra.mxu0 %v1138
      %v1218 = vpop.f32.mrf.mxu0
      %v1219 = vadd.f32 0.0, %v1218
      %v1220 = vpop.f32.mrf.mxu0
      %v1221 = vadd.f32 0.0, %v1220
      %1222 = vmatmul.bf16.gmra.mxu0 %v1141
      %v1223 = vpop.f32.mrf.mxu0
      %v1224 = vadd.f32 0.0, %v1223
      %v1225 = vpop.f32.mrf.mxu0
      %v1226 = vadd.f32 0.0, %v1225
      %1227 = vmatmul.bf16.gmra.mxu0 %v1144
      %v1228 = vpop.f32.mrf.mxu0
      %v1229 = vadd.f32 0.0, %v1228
      %v1230 = vpop.f32.mrf.mxu0
      %v1231 = vadd.f32 0.0, %v1230
      %1232 = vmatmul.bf16.gmra.mxu0 %v1147
      %v1233 = vpop.f32.mrf.mxu0
      %v1234 = vadd.f32 0.0, %v1233
      %v1235 = vpop.f32.mrf.mxu0
      %v1236 = vadd.f32 0.0, %v1235
      %1237 = vmatmul.bf16.gmra.mxu0 %v1150
      %v1238 = vpop.f32.mrf.mxu0
      %v1239 = vadd.f32 0.0, %v1238
      %v1240 = vpop.f32.mrf.mxu0
      %v1241 = vadd.f32 0.0, %v1240
      %1242 = vmatmul.bf16.gmra.mxu0 %v1153
      %v1243 = vpop.f32.mrf.mxu0
      %v1244 = vadd.f32 0.0, %v1243
      %v1245 = vpop.f32.mrf.mxu0
      %v1246 = vadd.f32 0.0, %v1245
      %1247 = vmatmul.bf16.gmra.mxu0 %v1156
      %v1248 = vpop.f32.mrf.mxu0
      %v1249 = vadd.f32 0.0, %v1248
      %v1250 = vpop.f32.mrf.mxu0
      %v1251 = vadd.f32 0.0, %v1250
      %1252 = vmatmul.bf16.gmra.mxu0 %v1159
      %v1253 = vpop.f32.mrf.mxu0
      %v1254 = vadd.f32 0.0, %v1253
      %v1255 = vpop.f32.mrf.mxu0
      %v1256 = vadd.f32 0.0, %v1255
      %1257 = vmatmul.bf16.gmra.mxu0 %v1162
      %v1258 = vpop.f32.mrf.mxu0
      %v1259 = vadd.f32 0.0, %v1258
      %v1260 = vpop.f32.mrf.mxu0
      %v1261 = vadd.f32 0.0, %v1260
      %1262 = vmatmul.bf16.gmra.mxu0 %v1165
      %v1263 = vpop.f32.mrf.mxu0
      %v1264 = vadd.f32 0.0, %v1263
      %v1265 = vpop.f32.mrf.mxu0
      %v1266 = vadd.f32 0.0, %v1265
      %1267 = vmatmul.bf16.gmra.mxu0 %v1168
      %v1268 = vpop.f32.mrf.mxu0
      %v1269 = vadd.f32 0.0, %v1268
      %v1270 = vpop.f32.mrf.mxu0
      %v1271 = vadd.f32 0.0, %v1270
      %1272 = vmatmul.bf16.gmra.mxu0 %v1171
      %v1273 = vpop.f32.mrf.mxu0
      %v1274 = vadd.f32 0.0, %v1273
      %v1275 = vpop.f32.mrf.mxu0
      %v1276 = vadd.f32 0.0, %v1275
      %1277 = vmatmul.bf16.gmra.mxu0 %v1174
      %v1278 = vpop.f32.mrf.mxu0
      %v1279 = vadd.f32 0.0, %v1278
      %v1280 = vpop.f32.mrf.mxu0
      %v1281 = vadd.f32 0.0, %v1280
      %1282 = vmatmul.bf16.gmra.mxu0 %v1177
      %v1283 = vpop.f32.mrf.mxu0
      %v1284 = vadd.f32 0.0, %v1283
      %v1285 = vpop.f32.mrf.mxu0
      %v1286 = vadd.f32 0.0, %v1285
      %1287 = vmatmul.bf16.gmra.mxu0 %v1180
      %v1288 = vpop.f32.mrf.mxu0
      %v1289 = vadd.f32 0.0, %v1288
      %v1290 = vpop.f32.mrf.mxu0
      %v1291 = vadd.f32 0.0, %v1290
      %1292 = vmatmul.bf16.gmra.mxu0 %v1183
      %v1293 = vpop.f32.mrf.mxu0
      %v1294 = vadd.f32 0.0, %v1293
      %v1295 = vpop.f32.mrf.mxu0
      %v1296 = vadd.f32 0.0, %v1295
      %1297 = vmatmul.bf16.gmra.mxu0 %v1186
      %v1298 = vpop.f32.mrf.mxu0
      %v1299 = vadd.f32 0.0, %v1298
      %v1300 = vpop.f32.mrf.mxu0
      %v1301 = vadd.f32 0.0, %v1300
      %1302 = vmatmul.bf16.gmra.mxu0 %v1189
      %v1303 = vpop.f32.mrf.mxu0
      %v1304 = vadd.f32 0.0, %v1303
      %v1305 = vpop.f32.mrf.mxu0
      %v1306 = vadd.f32 0.0, %v1305
      %1307 = vmatmul.bf16.gmra.mxu0 %v1192
      %v1308 = vpop.f32.mrf.mxu0
      %v1309 = vadd.f32 0.0, %v1308
      %v1310 = vpop.f32.mrf.mxu0
      %v1311 = vadd.f32 0.0, %v1310
      %1312 = vmatmul.bf16.gmra.mxu0 %v1195
      %v1313 = vpop.f32.mrf.mxu0
      %v1314 = vadd.f32 0.0, %v1313
      %v1315 = vpop.f32.mrf.mxu0
      %v1316 = vadd.f32 0.0, %v1315
      %1317 = vmatmul.bf16.gmra.mxu0 %v1198
      %v1318 = vpop.f32.mrf.mxu0
      %v1319 = vadd.f32 0.0, %v1318
      %v1320 = vpop.f32.mrf.mxu0
      %v1321 = vadd.f32 0.0, %v1320
      %1322 = vmatmul.bf16.gmra.mxu0 %v1201
      %v1323 = vpop.f32.mrf.mxu0
      %v1324 = vadd.f32 0.0, %v1323
      %v1325 = vpop.f32.mrf.mxu0
      %v1326 = vadd.f32 0.0, %v1325
      %1327 = vmatmul.bf16.gmra.mxu0 %v1204
      %v1328 = vpop.f32.mrf.mxu0
      %v1329 = vadd.f32 0.0, %v1328
      %v1330 = vpop.f32.mrf.mxu0
      %v1331 = vadd.f32 0.0, %v1330
      %1332 = vmatmul.bf16.gmra.mxu0 %v1207
      %v1333 = vpop.f32.mrf.mxu0
      %v1334 = vadd.f32 0.0, %v1333
      %v1335 = vpop.f32.mrf.mxu0
      %v1336 = vadd.f32 0.0, %v1335
      %1337 = vdwg.mxu0
      %v1340 = vunpack.c.l.b16 %v805
      %v1341 = vunpack.c.l.b16 %v806
      %v1342 = vpack.c.b16 %v1341, %v1340
      %v1344 = vsel %vm1136, %v908, 0
      %v1346 = vsel %vm1136, %v909, 0
      %v1348 = vsel %vm1136, %v910, 0
      %v1350 = vsel %vm1136, %v911, 0
      %v1352 = vsel %vm1136, %v912, 0
      %v1354 = vsel %vm1136, %v913, 0
      %v1356 = vsel %vm1136, %v914, 0
      %v1358 = vsel %vm1136, %v915, 0
      %v1360 = vsel %vm1136, %v916, 0
      %v1362 = vsel %vm1136, %v917, 0
      %v1364 = vsel %vm1136, %v918, 0
      %v1366 = vsel %vm1136, %v919, 0
      %v1368 = vsel %vm1136, %v920, 0
      %v1370 = vsel %vm1136, %v921, 0
      %v1372 = vsel %vm1136, %v922, 0
      %v1374 = vsel %vm1136, %v923, 0
      %v1376 = vsel %vm1136, %v924, 0
      %v1378 = vsel %vm1136, %v925, 0
      %v1380 = vsel %vm1136, %v926, 0
      %v1382 = vsel %vm1136, %v927, 0
      %v1384 = vsel %vm1136, %v928, 0
      %v1386 = vsel %vm1136, %v929, 0
      %v1388 = vsel %vm1136, %v930, 0
      %v1390 = vsel %vm1136, %v931, 0
      %1392 = vmatpush.bf16.msra.mxu0 0
      %1393 = vmatpush.bf16.msra.mxu0 0
      %1394 = vmatpush.bf16.msra.mxu0 0
      %1395 = vmatpush.bf16.msra.mxu0 0
      %1396 = vmatpush.bf16.msra.mxu0 0
      %1397 = vmatpush.bf16.msra.mxu0 0
      %1398 = vmatpush.bf16.msra.mxu0 0
      %1399 = vmatpush.bf16.msra.mxu0 %v1342
      %1400 = vmatmul.bf16.gmra.mxu0 %v1344
      %v1401 = vpop.f32.mrf.mxu0
      %v1402 = vadd.f32 %v1219, %v1401
      %v1403 = vpop.f32.mrf.mxu0
      %v1404 = vadd.f32 %v1221, %v1403
      %1405 = vmatmul.bf16.gmra.mxu0 %v1346
      %v1406 = vpop.f32.mrf.mxu0
      %v1407 = vadd.f32 %v1224, %v1406
      %v1408 = vpop.f32.mrf.mxu0
      %v1409 = vadd.f32 %v1226, %v1408
      %1410 = vmatmul.bf16.gmra.mxu0 %v1348
      %v1411 = vpop.f32.mrf.mxu0
      %v1412 = vadd.f32 %v1229, %v1411
      %v1413 = vpop.f32.mrf.mxu0
      %v1414 = vadd.f32 %v1231, %v1413
      %1415 = vmatmul.bf16.gmra.mxu0 %v1350
      %v1416 = vpop.f32.mrf.mxu0
      %v1417 = vadd.f32 %v1234, %v1416
      %v1418 = vpop.f32.mrf.mxu0
      %v1419 = vadd.f32 %v1236, %v1418
      %1420 = vmatmul.bf16.gmra.mxu0 %v1352
      %v1421 = vpop.f32.mrf.mxu0
      %v1422 = vadd.f32 %v1239, %v1421
      %v1423 = vpop.f32.mrf.mxu0
      %v1424 = vadd.f32 %v1241, %v1423
      %1425 = vmatmul.bf16.gmra.mxu0 %v1354
      %v1426 = vpop.f32.mrf.mxu0
      %v1427 = vadd.f32 %v1244, %v1426
      %v1428 = vpop.f32.mrf.mxu0
      %v1429 = vadd.f32 %v1246, %v1428
      %1430 = vmatmul.bf16.gmra.mxu0 %v1356
      %v1431 = vpop.f32.mrf.mxu0
      %v1432 = vadd.f32 %v1249, %v1431
      %v1433 = vpop.f32.mrf.mxu0
      %v1434 = vadd.f32 %v1251, %v1433
      %1435 = vmatmul.bf16.gmra.mxu0 %v1358
      %v1436 = vpop.f32.mrf.mxu0
      %v1437 = vadd.f32 %v1254, %v1436
      %v1438 = vpop.f32.mrf.mxu0
      %v1439 = vadd.f32 %v1256, %v1438
      %1440 = vmatmul.bf16.gmra.mxu0 %v1360
      %v1441 = vpop.f32.mrf.mxu0
      %v1442 = vadd.f32 %v1259, %v1441
      %v1443 = vpop.f32.mrf.mxu0
      %v1444 = vadd.f32 %v1261, %v1443
      %1445 = vmatmul.bf16.gmra.mxu0 %v1362
      %v1446 = vpop.f32.mrf.mxu0
      %v1447 = vadd.f32 %v1264, %v1446
      %v1448 = vpop.f32.mrf.mxu0
      %v1449 = vadd.f32 %v1266, %v1448
      %1450 = vmatmul.bf16.gmra.mxu0 %v1364
      %v1451 = vpop.f32.mrf.mxu0
      %v1452 = vadd.f32 %v1269, %v1451
      %v1453 = vpop.f32.mrf.mxu0
      %v1454 = vadd.f32 %v1271, %v1453
      %1455 = vmatmul.bf16.gmra.mxu0 %v1366
      %v1456 = vpop.f32.mrf.mxu0
      %v1457 = vadd.f32 %v1274, %v1456
      %v1458 = vpop.f32.mrf.mxu0
      %v1459 = vadd.f32 %v1276, %v1458
      %1460 = vmatmul.bf16.gmra.mxu0 %v1368
      %v1461 = vpop.f32.mrf.mxu0
      %v1462 = vadd.f32 %v1279, %v1461
      %v1463 = vpop.f32.mrf.mxu0
      %v1464 = vadd.f32 %v1281, %v1463
      %1465 = vmatmul.bf16.gmra.mxu0 %v1370
      %v1466 = vpop.f32.mrf.mxu0
      %v1467 = vadd.f32 %v1284, %v1466
      %v1468 = vpop.f32.mrf.mxu0
      %v1469 = vadd.f32 %v1286, %v1468
      %1470 = vmatmul.bf16.gmra.mxu0 %v1372
      %v1471 = vpop.f32.mrf.mxu0
      %v1472 = vadd.f32 %v1289, %v1471
      %v1473 = vpop.f32.mrf.mxu0
      %v1474 = vadd.f32 %v1291, %v1473
      %1475 = vmatmul.bf16.gmra.mxu0 %v1374
      %v1476 = vpop.f32.mrf.mxu0
      %v1477 = vadd.f32 %v1294, %v1476
      %v1478 = vpop.f32.mrf.mxu0
      %v1479 = vadd.f32 %v1296, %v1478
      %1480 = vmatmul.bf16.gmra.mxu0 %v1376
      %v1481 = vpop.f32.mrf.mxu0
      %v1482 = vadd.f32 %v1299, %v1481
      %v1483 = vpop.f32.mrf.mxu0
      %v1484 = vadd.f32 %v1301, %v1483
      %1485 = vmatmul.bf16.gmra.mxu0 %v1378
      %v1486 = vpop.f32.mrf.mxu0
      %v1487 = vadd.f32 %v1304, %v1486
      %v1488 = vpop.f32.mrf.mxu0
      %v1489 = vadd.f32 %v1306, %v1488
      %1490 = vmatmul.bf16.gmra.mxu0 %v1380
      %v1491 = vpop.f32.mrf.mxu0
      %v1492 = vadd.f32 %v1309, %v1491
      %v1493 = vpop.f32.mrf.mxu0
      %v1494 = vadd.f32 %v1311, %v1493
      %1495 = vmatmul.bf16.gmra.mxu0 %v1382
      %v1496 = vpop.f32.mrf.mxu0
      %v1497 = vadd.f32 %v1314, %v1496
      %v1498 = vpop.f32.mrf.mxu0
      %v1499 = vadd.f32 %v1316, %v1498
      %1500 = vmatmul.bf16.gmra.mxu0 %v1384
      %v1501 = vpop.f32.mrf.mxu0
      %v1502 = vadd.f32 %v1319, %v1501
      %v1503 = vpop.f32.mrf.mxu0
      %v1504 = vadd.f32 %v1321, %v1503
      %1505 = vmatmul.bf16.gmra.mxu0 %v1386
      %v1506 = vpop.f32.mrf.mxu0
      %v1507 = vadd.f32 %v1324, %v1506
      %v1508 = vpop.f32.mrf.mxu0
      %v1509 = vadd.f32 %v1326, %v1508
      %1510 = vmatmul.bf16.gmra.mxu0 %v1388
      %v1511 = vpop.f32.mrf.mxu0
      %v1512 = vadd.f32 %v1329, %v1511
      %v1513 = vpop.f32.mrf.mxu0
      %v1514 = vadd.f32 %v1331, %v1513
      %1515 = vmatmul.bf16.gmra.mxu0 %v1390
      %v1516 = vpop.f32.mrf.mxu0
      %v1517 = vadd.f32 %v1334, %v1516
      %v1518 = vpop.f32.mrf.mxu0
      %v1519 = vadd.f32 %v1336, %v1518
      %1520 = vdwg.mxu0
      %s1521 = scalar_lea.vmem %s2, 16
      %v1522 = vld [vmem:[%s1521] sm:$0xf]
      %v1523 = vld [vmem:[%s1521 + $0x4] sm:$0xf]
      %vm1524 = vcmask 1046528
      %v1525 = vrot.slane %v908, 1
      %v1526 = vrot.slane %v909, 1
      %v1527 = vsel %vm1524, %v1525, %v1526
      %v1528 = vrot.slane %v910, 1
      %v1529 = vsel %vm1524, %v1526, %v1528
      %v1530 = vrot.slane %v911, 1
      %v1531 = vsel %vm1524, %v1528, %v1530
      %v1532 = vrot.slane %v912, 1
      %v1533 = vsel %vm1524, %v1530, %v1532
      %v1534 = vrot.slane %v913, 1
      %v1535 = vsel %vm1524, %v1532, %v1534
      %v1536 = vrot.slane %v914, 1
      %v1537 = vsel %vm1524, %v1534, %v1536
      %v1538 = vrot.slane %v915, 1
      %v1539 = vsel %vm1524, %v1536, %v1538
      %v1540 = vrot.slane %v916, 1
      %v1541 = vsel %vm1524, %v1538, %v1540
      %v1542 = vrot.slane %v917, 1
      %v1543 = vsel %vm1524, %v1540, %v1542
      %v1544 = vrot.slane %v918, 1
      %v1545 = vsel %vm1524, %v1542, %v1544
      %v1546 = vrot.slane %v919, 1
      %v1547 = vsel %vm1524, %v1544, %v1546
      %v1548 = vrot.slane %v920, 1
      %v1549 = vsel %vm1524, %v1546, %v1548
      %v1550 = vrot.slane %v921, 1
      %v1551 = vsel %vm1524, %v1548, %v1550
      %v1552 = vrot.slane %v922, 1
      %v1553 = vsel %vm1524, %v1550, %v1552
      %v1554 = vrot.slane %v923, 1
      %v1555 = vsel %vm1524, %v1552, %v1554
      %v1556 = vrot.slane %v924, 1
      %v1557 = vsel %vm1524, %v1554, %v1556
      %v1558 = vrot.slane %v925, 1
      %v1559 = vsel %vm1524, %v1556, %v1558
      %v1560 = vrot.slane %v926, 1
      %v1561 = vsel %vm1524, %v1558, %v1560
      %v1562 = vrot.slane %v927, 1
      %v1563 = vsel %vm1524, %v1560, %v1562
      %v1564 = vrot.slane %v928, 1
      %v1565 = vsel %vm1524, %v1562, %v1564
      %v1566 = vrot.slane %v929, 1
      %v1567 = vsel %vm1524, %v1564, %v1566
      %v1568 = vrot.slane %v930, 1
      %v1569 = vsel %vm1524, %v1566, %v1568
      %v1570 = vrot.slane %v931, 1
      %v1571 = vsel %vm1524, %v1568, %v1570
      %v1572 = vrot.slane %v932, 1
      %v1573 = vsel %vm1524, %v1570, %v1572
      %v1576 = vunpack.c.l.b16 %v1522
      %v1577 = vunpack.c.l.b16 %v1523
      %v1578 = vpack.c.b16 %v1577, %v1576
      %v1581 = vsel %vm1136, %v1527, 0
      %v1584 = vsel %vm1136, %v1529, 0
      %v1587 = vsel %vm1136, %v1531, 0
      %v1590 = vsel %vm1136, %v1533, 0
      %v1593 = vsel %vm1136, %v1535, 0
      %v1596 = vsel %vm1136, %v1537, 0
      %v1599 = vsel %vm1136, %v1539, 0
      %v1602 = vsel %vm1136, %v1541, 0
      %v1605 = vsel %vm1136, %v1543, 0
      %v1608 = vsel %vm1136, %v1545, 0
      %v1611 = vsel %vm1136, %v1547, 0
      %v1614 = vsel %vm1136, %v1549, 0
      %v1617 = vsel %vm1136, %v1551, 0
      %v1620 = vsel %vm1136, %v1553, 0
      %v1623 = vsel %vm1136, %v1555, 0
      %v1626 = vsel %vm1136, %v1557, 0
      %v1629 = vsel %vm1136, %v1559, 0
      %v1632 = vsel %vm1136, %v1561, 0
      %v1635 = vsel %vm1136, %v1563, 0
      %v1638 = vsel %vm1136, %v1565, 0
      %v1641 = vsel %vm1136, %v1567, 0
      %v1644 = vsel %vm1136, %v1569, 0
      %v1647 = vsel %vm1136, %v1571, 0
      %v1650 = vsel %vm1136, %v1573, 0
      %1652 = vmatpush.bf16.msra.mxu0 0
      %1653 = vmatpush.bf16.msra.mxu0 0
      %1654 = vmatpush.bf16.msra.mxu0 0
      %1655 = vmatpush.bf16.msra.mxu0 0
      %1656 = vmatpush.bf16.msra.mxu0 0
      %1657 = vmatpush.bf16.msra.mxu0 0
      %1658 = vmatpush.bf16.msra.mxu0 0
      %1659 = vmatpush.bf16.msra.mxu0 %v1578
      %1660 = vmatmul.bf16.gmra.mxu0 %v1581
      %v1661 = vpop.f32.mrf.mxu0
      %v1662 = vadd.f32 0.0, %v1661
      %v1663 = vpop.f32.mrf.mxu0
      %v1664 = vadd.f32 0.0, %v1663
      %1665 = vmatmul.bf16.gmra.mxu0 %v1584
      %v1666 = vpop.f32.mrf.mxu0
      %v1667 = vadd.f32 0.0, %v1666
      %v1668 = vpop.f32.mrf.mxu0
      %v1669 = vadd.f32 0.0, %v1668
      %1670 = vmatmul.bf16.gmra.mxu0 %v1587
      %v1671 = vpop.f32.mrf.mxu0
      %v1672 = vadd.f32 0.0, %v1671
      %v1673 = vpop.f32.mrf.mxu0
      %v1674 = vadd.f32 0.0, %v1673
      %1675 = vmatmul.bf16.gmra.mxu0 %v1590
      %v1676 = vpop.f32.mrf.mxu0
      %v1677 = vadd.f32 0.0, %v1676
      %v1678 = vpop.f32.mrf.mxu0
      %v1679 = vadd.f32 0.0, %v1678
      %1680 = vmatmul.bf16.gmra.mxu0 %v1593
      %v1681 = vpop.f32.mrf.mxu0
      %v1682 = vadd.f32 0.0, %v1681
      %v1683 = vpop.f32.mrf.mxu0
      %v1684 = vadd.f32 0.0, %v1683
      %1685 = vmatmul.bf16.gmra.mxu0 %v1596
      %v1686 = vpop.f32.mrf.mxu0
      %v1687 = vadd.f32 0.0, %v1686
      %v1688 = vpop.f32.mrf.mxu0
      %v1689 = vadd.f32 0.0, %v1688
      %1690 = vmatmul.bf16.gmra.mxu0 %v1599
      %v1691 = vpop.f32.mrf.mxu0
      %v1692 = vadd.f32 0.0, %v1691
      %v1693 = vpop.f32.mrf.mxu0
      %v1694 = vadd.f32 0.0, %v1693
      %1695 = vmatmul.bf16.gmra.mxu0 %v1602
      %v1696 = vpop.f32.mrf.mxu0
      %v1697 = vadd.f32 0.0, %v1696
      %v1698 = vpop.f32.mrf.mxu0
      %v1699 = vadd.f32 0.0, %v1698
      %1700 = vmatmul.bf16.gmra.mxu0 %v1605
      %v1701 = vpop.f32.mrf.mxu0
      %v1702 = vadd.f32 0.0, %v1701
      %v1703 = vpop.f32.mrf.mxu0
      %v1704 = vadd.f32 0.0, %v1703
      %1705 = vmatmul.bf16.gmra.mxu0 %v1608
      %v1706 = vpop.f32.mrf.mxu0
      %v1707 = vadd.f32 0.0, %v1706
      %v1708 = vpop.f32.mrf.mxu0
      %v1709 = vadd.f32 0.0, %v1708
      %1710 = vmatmul.bf16.gmra.mxu0 %v1611
      %v1711 = vpop.f32.mrf.mxu0
      %v1712 = vadd.f32 0.0, %v1711
      %v1713 = vpop.f32.mrf.mxu0
      %v1714 = vadd.f32 0.0, %v1713
      %1715 = vmatmul.bf16.gmra.mxu0 %v1614
      %v1716 = vpop.f32.mrf.mxu0
      %v1717 = vadd.f32 0.0, %v1716
      %v1718 = vpop.f32.mrf.mxu0
      %v1719 = vadd.f32 0.0, %v1718
      %1720 = vmatmul.bf16.gmra.mxu0 %v1617
      %v1721 = vpop.f32.mrf.mxu0
      %v1722 = vadd.f32 0.0, %v1721
      %v1723 = vpop.f32.mrf.mxu0
      %v1724 = vadd.f32 0.0, %v1723
      %1725 = vmatmul.bf16.gmra.mxu0 %v1620
      %v1726 = vpop.f32.mrf.mxu0
      %v1727 = vadd.f32 0.0, %v1726
      %v1728 = vpop.f32.mrf.mxu0
      %v1729 = vadd.f32 0.0, %v1728
      %1730 = vmatmul.bf16.gmra.mxu0 %v1623
      %v1731 = vpop.f32.mrf.mxu0
      %v1732 = vadd.f32 0.0, %v1731
      %v1733 = vpop.f32.mrf.mxu0
      %v1734 = vadd.f32 0.0, %v1733
      %1735 = vmatmul.bf16.gmra.mxu0 %v1626
      %v1736 = vpop.f32.mrf.mxu0
      %v1737 = vadd.f32 0.0, %v1736
      %v1738 = vpop.f32.mrf.mxu0
      %v1739 = vadd.f32 0.0, %v1738
      %1740 = vmatmul.bf16.gmra.mxu0 %v1629
      %v1741 = vpop.f32.mrf.mxu0
      %v1742 = vadd.f32 0.0, %v1741
      %v1743 = vpop.f32.mrf.mxu0
      %v1744 = vadd.f32 0.0, %v1743
      %1745 = vmatmul.bf16.gmra.mxu0 %v1632
      %v1746 = vpop.f32.mrf.mxu0
      %v1747 = vadd.f32 0.0, %v1746
      %v1748 = vpop.f32.mrf.mxu0
      %v1749 = vadd.f32 0.0, %v1748
      %1750 = vmatmul.bf16.gmra.mxu0 %v1635
      %v1751 = vpop.f32.mrf.mxu0
      %v1752 = vadd.f32 0.0, %v1751
      %v1753 = vpop.f32.mrf.mxu0
      %v1754 = vadd.f32 0.0, %v1753
      %1755 = vmatmul.bf16.gmra.mxu0 %v1638
      %v1756 = vpop.f32.mrf.mxu0
      %v1757 = vadd.f32 0.0, %v1756
      %v1758 = vpop.f32.mrf.mxu0
      %v1759 = vadd.f32 0.0, %v1758
      %1760 = vmatmul.bf16.gmra.mxu0 %v1641
      %v1761 = vpop.f32.mrf.mxu0
      %v1762 = vadd.f32 0.0, %v1761
      %v1763 = vpop.f32.mrf.mxu0
      %v1764 = vadd.f32 0.0, %v1763
      %1765 = vmatmul.bf16.gmra.mxu0 %v1644
      %v1766 = vpop.f32.mrf.mxu0
      %v1767 = vadd.f32 0.0, %v1766
      %v1768 = vpop.f32.mrf.mxu0
      %v1769 = vadd.f32 0.0, %v1768
      %1770 = vmatmul.bf16.gmra.mxu0 %v1647
      %v1771 = vpop.f32.mrf.mxu0
      %v1772 = vadd.f32 0.0, %v1771
      %v1773 = vpop.f32.mrf.mxu0
      %v1774 = vadd.f32 0.0, %v1773
      %1775 = vmatmul.bf16.gmra.mxu0 %v1650
      %v1776 = vpop.f32.mrf.mxu0
      %v1777 = vadd.f32 0.0, %v1776
      %v1778 = vpop.f32.mrf.mxu0
      %v1779 = vadd.f32 0.0, %v1778
      %1780 = vdwg.mxu0
      %v1781 = vadd.f32 %v1402, %v1662
      %v1782 = vadd.f32 %v1404, %v1664
      %v1783 = vadd.f32 %v1407, %v1667
      %v1784 = vadd.f32 %v1409, %v1669
      %v1785 = vadd.f32 %v1412, %v1672
      %v1786 = vadd.f32 %v1414, %v1674
      %v1787 = vadd.f32 %v1417, %v1677
      %v1788 = vadd.f32 %v1419, %v1679
      %v1789 = vadd.f32 %v1422, %v1682
      %v1790 = vadd.f32 %v1424, %v1684
      %v1791 = vadd.f32 %v1427, %v1687
      %v1792 = vadd.f32 %v1429, %v1689
      %v1793 = vadd.f32 %v1432, %v1692
      %v1794 = vadd.f32 %v1434, %v1694
      %v1795 = vadd.f32 %v1437, %v1697
      %v1796 = vadd.f32 %v1439, %v1699
      %v1797 = vadd.f32 %v1442, %v1702
      %v1798 = vadd.f32 %v1444, %v1704
      %v1799 = vadd.f32 %v1447, %v1707
      %v1800 = vadd.f32 %v1449, %v1709
      %v1801 = vadd.f32 %v1452, %v1712
      %v1802 = vadd.f32 %v1454, %v1714
      %v1803 = vadd.f32 %v1457, %v1717
      %v1804 = vadd.f32 %v1459, %v1719
      %v1805 = vadd.f32 %v1462, %v1722
      %v1806 = vadd.f32 %v1464, %v1724
      %v1807 = vadd.f32 %v1467, %v1727
      %v1808 = vadd.f32 %v1469, %v1729
      %v1809 = vadd.f32 %v1472, %v1732
      %v1810 = vadd.f32 %v1474, %v1734
      %v1811 = vadd.f32 %v1477, %v1737
      %v1812 = vadd.f32 %v1479, %v1739
      %v1813 = vadd.f32 %v1482, %v1742
      %v1814 = vadd.f32 %v1484, %v1744
      %v1815 = vadd.f32 %v1487, %v1747
      %v1816 = vadd.f32 %v1489, %v1749
      %v1817 = vadd.f32 %v1492, %v1752
      %v1818 = vadd.f32 %v1494, %v1754
      %v1819 = vadd.f32 %v1497, %v1757
      %v1820 = vadd.f32 %v1499, %v1759
      %v1821 = vadd.f32 %v1502, %v1762
      %v1822 = vadd.f32 %v1504, %v1764
      %v1823 = vadd.f32 %v1507, %v1767
      %v1824 = vadd.f32 %v1509, %v1769
      %v1825 = vadd.f32 %v1512, %v1772
      %v1826 = vadd.f32 %v1514, %v1774
      %v1827 = vadd.f32 %v1517, %v1777
      %v1828 = vadd.f32 %v1519, %v1779
      %s1829 = scalar_lea.vmem %s2, 24
      %v1830 = vld [vmem:[%s1829] sm:$0xf]
      %v1831 = vld [vmem:[%s1829 + $0x4] sm:$0xf]
      %v1834 = vunpack.c.l.b16 %v799
      %v1835 = vunpack.c.l.b16 %v800
      %v1836 = vpack.c.b16 %v863, %v862
      %v1837 = vpack.c.b16 %v865, %v864
      %v1838 = vpack.c.b16 %v867, %v866
      %v1839 = vpack.c.b16 %v869, %v868
      %v1840 = vpack.c.b16 %v871, %v870
      %v1841 = vpack.c.b16 %v873, %v872
      %v1842 = vpack.c.b16 %v875, %v874
      %v1843 = vpack.c.b16 %v877, %v876
      %v1844 = vpack.c.b16 %v879, %v878
      %v1845 = vpack.c.b16 %v881, %v880
      %v1846 = vpack.c.b16 %v883, %v882
      %v1847 = vpack.c.b16 %v885, %v884
      %v1848 = vpack.c.b16 %v887, %v886
      %v1849 = vpack.c.b16 %v889, %v888
      %v1850 = vpack.c.b16 %v891, %v890
      %v1851 = vpack.c.b16 %v893, %v892
      %v1852 = vpack.c.b16 %v895, %v894
      %v1853 = vpack.c.b16 %v897, %v896
      %v1854 = vpack.c.b16 %v899, %v898
      %v1855 = vpack.c.b16 %v901, %v900
      %v1856 = vpack.c.b16 %v903, %v902
      %v1857 = vpack.c.b16 %v905, %v904
      %v1858 = vpack.c.b16 %v907, %v906
      %v1859 = vpack.c.b16 %v1835, %v1834
      %v1862 = vunpack.c.l.b16 %v1830
      %v1863 = vunpack.c.l.b16 %v1831
      %v1864 = vpack.c.b16 %v1863, %v1862
      %v1867 = vsel %vm1136, %v1836, 0
      %v1870 = vsel %vm1136, %v1837, 0
      %v1873 = vsel %vm1136, %v1838, 0
      %v1876 = vsel %vm1136, %v1839, 0
      %v1879 = vsel %vm1136, %v1840, 0
      %v1882 = vsel %vm1136, %v1841, 0
      %v1885 = vsel %vm1136, %v1842, 0
      %v1888 = vsel %vm1136, %v1843, 0
      %v1891 = vsel %vm1136, %v1844, 0
      %v1894 = vsel %vm1136, %v1845, 0
      %v1897 = vsel %vm1136, %v1846, 0
      %v1900 = vsel %vm1136, %v1847, 0
      %v1903 = vsel %vm1136, %v1848, 0
      %v1906 = vsel %vm1136, %v1849, 0
      %v1909 = vsel %vm1136, %v1850, 0
      %v1912 = vsel %vm1136, %v1851, 0
      %v1915 = vsel %vm1136, %v1852, 0
      %v1918 = vsel %vm1136, %v1853, 0
      %v1921 = vsel %vm1136, %v1854, 0
      %v1924 = vsel %vm1136, %v1855, 0
      %v1927 = vsel %vm1136, %v1856, 0
      %v1930 = vsel %vm1136, %v1857, 0
      %v1933 = vsel %vm1136, %v1858, 0
      %v1936 = vsel %vm1136, %v1859, 0
      %1938 = vmatpush.bf16.msra.mxu0 0
      %1939 = vmatpush.bf16.msra.mxu0 0
      %1940 = vmatpush.bf16.msra.mxu0 0
      %1941 = vmatpush.bf16.msra.mxu0 0
      %1942 = vmatpush.bf16.msra.mxu0 0
      %1943 = vmatpush.bf16.msra.mxu0 0
      %1944 = vmatpush.bf16.msra.mxu0 0
      %1945 = vmatpush.bf16.msra.mxu0 %v1864
      %1946 = vmatmul.bf16.gmra.mxu0 %v1867
      %v1947 = vpop.f32.mrf.mxu0
      %v1948 = vadd.f32 0.0, %v1947
      %v1949 = vpop.f32.mrf.mxu0
      %v1950 = vadd.f32 0.0, %v1949
      %1951 = vmatmul.bf16.gmra.mxu0 %v1870
      %v1952 = vpop.f32.mrf.mxu0
      %v1953 = vadd.f32 0.0, %v1952
      %v1954 = vpop.f32.mrf.mxu0
      %v1955 = vadd.f32 0.0, %v1954
      %1956 = vmatmul.bf16.gmra.mxu0 %v1873
      %v1957 = vpop.f32.mrf.mxu0
      %v1958 = vadd.f32 0.0, %v1957
      %v1959 = vpop.f32.mrf.mxu0
      %v1960 = vadd.f32 0.0, %v1959
      %1961 = vmatmul.bf16.gmra.mxu0 %v1876
      %v1962 = vpop.f32.mrf.mxu0
      %v1963 = vadd.f32 0.0, %v1962
      %v1964 = vpop.f32.mrf.mxu0
      %v1965 = vadd.f32 0.0, %v1964
      %1966 = vmatmul.bf16.gmra.mxu0 %v1879
      %v1967 = vpop.f32.mrf.mxu0
      %v1968 = vadd.f32 0.0, %v1967
      %v1969 = vpop.f32.mrf.mxu0
      %v1970 = vadd.f32 0.0, %v1969
      %1971 = vmatmul.bf16.gmra.mxu0 %v1882
      %v1972 = vpop.f32.mrf.mxu0
      %v1973 = vadd.f32 0.0, %v1972
      %v1974 = vpop.f32.mrf.mxu0
      %v1975 = vadd.f32 0.0, %v1974
      %1976 = vmatmul.bf16.gmra.mxu0 %v1885
      %v1977 = vpop.f32.mrf.mxu0
      %v1978 = vadd.f32 0.0, %v1977
      %v1979 = vpop.f32.mrf.mxu0
      %v1980 = vadd.f32 0.0, %v1979
      %1981 = vmatmul.bf16.gmra.mxu0 %v1888
      %v1982 = vpop.f32.mrf.mxu0
      %v1983 = vadd.f32 0.0, %v1982
      %v1984 = vpop.f32.mrf.mxu0
      %v1985 = vadd.f32 0.0, %v1984
      %1986 = vmatmul.bf16.gmra.mxu0 %v1891
      %v1987 = vpop.f32.mrf.mxu0
      %v1988 = vadd.f32 0.0, %v1987
      %v1989 = vpop.f32.mrf.mxu0
      %v1990 = vadd.f32 0.0, %v1989
      %1991 = vmatmul.bf16.gmra.mxu0 %v1894
      %v1992 = vpop.f32.mrf.mxu0
      %v1993 = vadd.f32 0.0, %v1992
      %v1994 = vpop.f32.mrf.mxu0
      %v1995 = vadd.f32 0.0, %v1994
      %1996 = vmatmul.bf16.gmra.mxu0 %v1897
      %v1997 = vpop.f32.mrf.mxu0
      %v1998 = vadd.f32 0.0, %v1997
      %v1999 = vpop.f32.mrf.mxu0
      %v2000 = vadd.f32 0.0, %v1999
      %2001 = vmatmul.bf16.gmra.mxu0 %v1900
      %v2002 = vpop.f32.mrf.mxu0
      %v2003 = vadd.f32 0.0, %v2002
      %v2004 = vpop.f32.mrf.mxu0
      %v2005 = vadd.f32 0.0, %v2004
      %2006 = vmatmul.bf16.gmra.mxu0 %v1903
      %v2007 = vpop.f32.mrf.mxu0
      %v2008 = vadd.f32 0.0, %v2007
      %v2009 = vpop.f32.mrf.mxu0
      %v2010 = vadd.f32 0.0, %v2009
      %2011 = vmatmul.bf16.gmra.mxu0 %v1906
      %v2012 = vpop.f32.mrf.mxu0
      %v2013 = vadd.f32 0.0, %v2012
      %v2014 = vpop.f32.mrf.mxu0
      %v2015 = vadd.f32 0.0, %v2014
      %2016 = vmatmul.bf16.gmra.mxu0 %v1909
      %v2017 = vpop.f32.mrf.mxu0
      %v2018 = vadd.f32 0.0, %v2017
      %v2019 = vpop.f32.mrf.mxu0
      %v2020 = vadd.f32 0.0, %v2019
      %2021 = vmatmul.bf16.gmra.mxu0 %v1912
      %v2022 = vpop.f32.mrf.mxu0
      %v2023 = vadd.f32 0.0, %v2022
      %v2024 = vpop.f32.mrf.mxu0
      %v2025 = vadd.f32 0.0, %v2024
      %2026 = vmatmul.bf16.gmra.mxu0 %v1915
      %v2027 = vpop.f32.mrf.mxu0
      %v2028 = vadd.f32 0.0, %v2027
      %v2029 = vpop.f32.mrf.mxu0
      %v2030 = vadd.f32 0.0, %v2029
      %2031 = vmatmul.bf16.gmra.mxu0 %v1918
      %v2032 = vpop.f32.mrf.mxu0
      %v2033 = vadd.f32 0.0, %v2032
      %v2034 = vpop.f32.mrf.mxu0
      %v2035 = vadd.f32 0.0, %v2034
      %2036 = vmatmul.bf16.gmra.mxu0 %v1921
      %v2037 = vpop.f32.mrf.mxu0
      %v2038 = vadd.f32 0.0, %v2037
      %v2039 = vpop.f32.mrf.mxu0
      %v2040 = vadd.f32 0.0, %v2039
      %2041 = vmatmul.bf16.gmra.mxu0 %v1924
      %v2042 = vpop.f32.mrf.mxu0
      %v2043 = vadd.f32 0.0, %v2042
      %v2044 = vpop.f32.mrf.mxu0
      %v2045 = vadd.f32 0.0, %v2044
      %2046 = vmatmul.bf16.gmra.mxu0 %v1927
      %v2047 = vpop.f32.mrf.mxu0
      %v2048 = vadd.f32 0.0, %v2047
      %v2049 = vpop.f32.mrf.mxu0
      %v2050 = vadd.f32 0.0, %v2049
      %2051 = vmatmul.bf16.gmra.mxu0 %v1930
      %v2052 = vpop.f32.mrf.mxu0
      %v2053 = vadd.f32 0.0, %v2052
      %v2054 = vpop.f32.mrf.mxu0
      %v2055 = vadd.f32 0.0, %v2054
      %2056 = vmatmul.bf16.gmra.mxu0 %v1933
      %v2057 = vpop.f32.mrf.mxu0
      %v2058 = vadd.f32 0.0, %v2057
      %v2059 = vpop.f32.mrf.mxu0
      %v2060 = vadd.f32 0.0, %v2059
      %2061 = vmatmul.bf16.gmra.mxu0 %v1936
      %v2062 = vpop.f32.mrf.mxu0
      %v2063 = vadd.f32 0.0, %v2062
      %v2064 = vpop.f32.mrf.mxu0
      %v2065 = vadd.f32 0.0, %v2064
      %2066 = vdwg.mxu0
      %v2067 = vadd.f32 %v1781, %v1948
      %v2068 = vadd.f32 %v1782, %v1950
      %v2069 = vadd.f32 %v1783, %v1953
      %v2070 = vadd.f32 %v1784, %v1955
      %v2071 = vadd.f32 %v1785, %v1958
      %v2072 = vadd.f32 %v1786, %v1960
      %v2073 = vadd.f32 %v1787, %v1963
      %v2074 = vadd.f32 %v1788, %v1965
      %v2075 = vadd.f32 %v1789, %v1968
      %v2076 = vadd.f32 %v1790, %v1970
      %v2077 = vadd.f32 %v1791, %v1973
      %v2078 = vadd.f32 %v1792, %v1975
      %v2079 = vadd.f32 %v1793, %v1978
      %v2080 = vadd.f32 %v1794, %v1980
      %v2081 = vadd.f32 %v1795, %v1983
      %v2082 = vadd.f32 %v1796, %v1985
      %v2083 = vadd.f32 %v1797, %v1988
      %v2084 = vadd.f32 %v1798, %v1990
      %v2085 = vadd.f32 %v1799, %v1993
      %v2086 = vadd.f32 %v1800, %v1995
      %v2087 = vadd.f32 %v1801, %v1998
      %v2088 = vadd.f32 %v1802, %v2000
      %v2089 = vadd.f32 %v1803, %v2003
      %v2090 = vadd.f32 %v1804, %v2005
      %v2091 = vadd.f32 %v1805, %v2008
      %v2092 = vadd.f32 %v1806, %v2010
      %v2093 = vadd.f32 %v1807, %v2013
      %v2094 = vadd.f32 %v1808, %v2015
      %v2095 = vadd.f32 %v1809, %v2018
      %v2096 = vadd.f32 %v1810, %v2020
      %v2097 = vadd.f32 %v1811, %v2023
      %v2098 = vadd.f32 %v1812, %v2025
      %v2099 = vadd.f32 %v1813, %v2028
      %v2100 = vadd.f32 %v1814, %v2030
      %v2101 = vadd.f32 %v1815, %v2033
      %v2102 = vadd.f32 %v1816, %v2035
      %v2103 = vadd.f32 %v1817, %v2038
      %v2104 = vadd.f32 %v1818, %v2040
      %v2105 = vadd.f32 %v1819, %v2043
      %v2106 = vadd.f32 %v1820, %v2045
      %v2107 = vadd.f32 %v1821, %v2048
      %v2108 = vadd.f32 %v1822, %v2050
      %v2109 = vadd.f32 %v1823, %v2053
      %v2110 = vadd.f32 %v1824, %v2055
      %v2111 = vadd.f32 %v1825, %v2058
      %v2112 = vadd.f32 %v1826, %v2060
      %v2113 = vadd.f32 %v1827, %v2063
      %v2114 = vadd.f32 %v1828, %v2065
      %s2115 = scalar_lea.vmem %s2, 32
      %v2116 = vld [vmem:[%s2115] sm:$0xf]
      %v2117 = vld [vmem:[%s2115 + $0x4] sm:$0xf]
      %v2119 = vunpack.c.l.b16 %v801
      %v2120 = vpack.c.b16 %v2119, %v2119
      %v2121 = vshrl.u32 %v1836, 16
      %v2123 = vshll.u32 %v1836, 16
      %v2125 = vrot.slane %v2123, 1
      %v2126 = vor.u32 %v2121, %v2125
      %v2127 = vshll.u32 %v1837, 16
      %v2129 = vrot.slane %v2127, 1
      %v2130 = vsel %vm933, %v2126, %v2129
      %v2131 = vshrl.u32 %v1837, 16
      %v2133 = vor.u32 %v2131, %v2129
      %v2134 = vshll.u32 %v1838, 16
      %v2136 = vrot.slane %v2134, 1
      %v2137 = vsel %vm933, %v2133, %v2136
      %v2138 = vshrl.u32 %v1838, 16
      %v2140 = vor.u32 %v2138, %v2136
      %v2141 = vshll.u32 %v1839, 16
      %v2143 = vrot.slane %v2141, 1
      %v2144 = vsel %vm933, %v2140, %v2143
      %v2145 = vshrl.u32 %v1839, 16
      %v2147 = vor.u32 %v2145, %v2143
      %v2148 = vshll.u32 %v1840, 16
      %v2150 = vrot.slane %v2148, 1
      %v2151 = vsel %vm933, %v2147, %v2150
      %v2152 = vshrl.u32 %v1840, 16
      %v2154 = vor.u32 %v2152, %v2150
      %v2155 = vshll.u32 %v1841, 16
      %v2157 = vrot.slane %v2155, 1
      %v2158 = vsel %vm933, %v2154, %v2157
      %v2159 = vshrl.u32 %v1841, 16
      %v2161 = vor.u32 %v2159, %v2157
      %v2162 = vshll.u32 %v1842, 16
      %v2164 = vrot.slane %v2162, 1
      %v2165 = vsel %vm933, %v2161, %v2164
      %v2166 = vshrl.u32 %v1842, 16
      %v2168 = vor.u32 %v2166, %v2164
      %v2169 = vshll.u32 %v1843, 16
      %v2171 = vrot.slane %v2169, 1
      %v2172 = vsel %vm933, %v2168, %v2171
      %v2173 = vshrl.u32 %v1843, 16
      %v2175 = vor.u32 %v2173, %v2171
      %v2176 = vshll.u32 %v1844, 16
      %v2178 = vrot.slane %v2176, 1
      %v2179 = vsel %vm933, %v2175, %v2178
      %v2180 = vshrl.u32 %v1844, 16
      %v2182 = vor.u32 %v2180, %v2178
      %v2183 = vshll.u32 %v1845, 16
      %v2185 = vrot.slane %v2183, 1
      %v2186 = vsel %vm933, %v2182, %v2185
      %v2187 = vshrl.u32 %v1845, 16
      %v2189 = vor.u32 %v2187, %v2185
      %v2190 = vshll.u32 %v1846, 16
      %v2192 = vrot.slane %v2190, 1
      %v2193 = vsel %vm933, %v2189, %v2192
      %v2194 = vshrl.u32 %v1846, 16
      %v2196 = vor.u32 %v2194, %v2192
      %v2197 = vshll.u32 %v1847, 16
      %v2199 = vrot.slane %v2197, 1
      %v2200 = vsel %vm933, %v2196, %v2199
      %v2201 = vshrl.u32 %v1847, 16
      %v2203 = vor.u32 %v2201, %v2199
      %v2204 = vshll.u32 %v1848, 16
      %v2206 = vrot.slane %v2204, 1
      %v2207 = vsel %vm933, %v2203, %v2206
      %v2208 = vshrl.u32 %v1848, 16
      %v2210 = vor.u32 %v2208, %v2206
      %v2211 = vshll.u32 %v1849, 16
      %v2213 = vrot.slane %v2211, 1
      %v2214 = vsel %vm933, %v2210, %v2213
      %v2215 = vshrl.u32 %v1849, 16
      %v2217 = vor.u32 %v2215, %v2213
      %v2218 = vshll.u32 %v1850, 16
      %v2220 = vrot.slane %v2218, 1
      %v2221 = vsel %vm933, %v2217, %v2220
      %v2222 = vshrl.u32 %v1850, 16
      %v2224 = vor.u32 %v2222, %v2220
      %v2225 = vshll.u32 %v1851, 16
      %v2227 = vrot.slane %v2225, 1
      %v2228 = vsel %vm933, %v2224, %v2227
      %v2229 = vshrl.u32 %v1851, 16
      %v2231 = vor.u32 %v2229, %v2227
      %v2232 = vshll.u32 %v1852, 16
      %v2234 = vrot.slane %v2232, 1
      %v2235 = vsel %vm933, %v2231, %v2234
      %v2236 = vshrl.u32 %v1852, 16
      %v2238 = vor.u32 %v2236, %v2234
      %v2239 = vshll.u32 %v1853, 16
      %v2241 = vrot.slane %v2239, 1
      %v2242 = vsel %vm933, %v2238, %v2241
      %v2243 = vshrl.u32 %v1853, 16
      %v2245 = vor.u32 %v2243, %v2241
      %v2246 = vshll.u32 %v1854, 16
      %v2248 = vrot.slane %v2246, 1
      %v2249 = vsel %vm933, %v2245, %v2248
      %v2250 = vshrl.u32 %v1854, 16
      %v2252 = vor.u32 %v2250, %v2248
      %v2253 = vshll.u32 %v1855, 16
      %v2255 = vrot.slane %v2253, 1
      %v2256 = vsel %vm933, %v2252, %v2255
      %v2257 = vshrl.u32 %v1855, 16
      %v2259 = vor.u32 %v2257, %v2255
      %v2260 = vshll.u32 %v1856, 16
      %v2262 = vrot.slane %v2260, 1
      %v2263 = vsel %vm933, %v2259, %v2262
      %v2264 = vshrl.u32 %v1856, 16
      %v2266 = vor.u32 %v2264, %v2262
      %v2267 = vshll.u32 %v1857, 16
      %v2269 = vrot.slane %v2267, 1
      %v2270 = vsel %vm933, %v2266, %v2269
      %v2271 = vshrl.u32 %v1857, 16
      %v2273 = vor.u32 %v2271, %v2269
      %v2274 = vshll.u32 %v1858, 16
      %v2276 = vrot.slane %v2274, 1
      %v2277 = vsel %vm933, %v2273, %v2276
      %v2278 = vshrl.u32 %v1858, 16
      %v2280 = vor.u32 %v2278, %v2276
      %v2281 = vshll.u32 %v1859, 16
      %v2283 = vrot.slane %v2281, 1
      %v2284 = vsel %vm933, %v2280, %v2283
      %v2285 = vshrl.u32 %v1859, 16
      %v2287 = vor.u32 %v2285, %v2283
      %v2289 = vshll.u32 %v2120, 16
      %v2291 = vrot.slane %v2289, 1
      %v2292 = vsel %vm933, %v2287, %v2291
      %v2295 = vunpack.c.l.b16 %v2116
      %v2296 = vunpack.c.l.b16 %v2117
      %v2297 = vpack.c.b16 %v2296, %v2295
      %v2300 = vsel %vm1136, %v2130, 0
      %v2303 = vsel %vm1136, %v2137, 0
      %v2306 = vsel %vm1136, %v2144, 0
      %v2309 = vsel %vm1136, %v2151, 0
      %v2312 = vsel %vm1136, %v2158, 0
      %v2315 = vsel %vm1136, %v2165, 0
      %v2318 = vsel %vm1136, %v2172, 0
      %v2321 = vsel %vm1136, %v2179, 0
      %v2324 = vsel %vm1136, %v2186, 0
      %v2327 = vsel %vm1136, %v2193, 0
      %v2330 = vsel %vm1136, %v2200, 0
      %v2333 = vsel %vm1136, %v2207, 0
      %v2336 = vsel %vm1136, %v2214, 0
      %v2339 = vsel %vm1136, %v2221, 0
      %v2342 = vsel %vm1136, %v2228, 0
      %v2345 = vsel %vm1136, %v2235, 0
      %v2348 = vsel %vm1136, %v2242, 0
      %v2351 = vsel %vm1136, %v2249, 0
      %v2354 = vsel %vm1136, %v2256, 0
      %v2357 = vsel %vm1136, %v2263, 0
      %v2360 = vsel %vm1136, %v2270, 0
      %v2363 = vsel %vm1136, %v2277, 0
      %v2366 = vsel %vm1136, %v2284, 0
      %v2369 = vsel %vm1136, %v2292, 0
      %2371 = vmatpush.bf16.msra.mxu0 0
      %2372 = vmatpush.bf16.msra.mxu0 0
      %2373 = vmatpush.bf16.msra.mxu0 0
      %2374 = vmatpush.bf16.msra.mxu0 0
      %2375 = vmatpush.bf16.msra.mxu0 0
      %2376 = vmatpush.bf16.msra.mxu0 0
      %2377 = vmatpush.bf16.msra.mxu0 0
      %2378 = vmatpush.bf16.msra.mxu0 %v2297
      %2379 = vmatmul.bf16.gmra.mxu0 %v2300
      %v2380 = vpop.f32.mrf.mxu0
      %v2381 = vadd.f32 0.0, %v2380
      %v2382 = vpop.f32.mrf.mxu0
      %v2383 = vadd.f32 0.0, %v2382
      %2384 = vmatmul.bf16.gmra.mxu0 %v2303
      %v2385 = vpop.f32.mrf.mxu0
      %v2386 = vadd.f32 0.0, %v2385
      %v2387 = vpop.f32.mrf.mxu0
      %v2388 = vadd.f32 0.0, %v2387
      %2389 = vmatmul.bf16.gmra.mxu0 %v2306
      %v2390 = vpop.f32.mrf.mxu0
      %v2391 = vadd.f32 0.0, %v2390
      %v2392 = vpop.f32.mrf.mxu0
      %v2393 = vadd.f32 0.0, %v2392
      %2394 = vmatmul.bf16.gmra.mxu0 %v2309
      %v2395 = vpop.f32.mrf.mxu0
      %v2396 = vadd.f32 0.0, %v2395
      %v2397 = vpop.f32.mrf.mxu0
      %v2398 = vadd.f32 0.0, %v2397
      %2399 = vmatmul.bf16.gmra.mxu0 %v2312
      %v2400 = vpop.f32.mrf.mxu0
      %v2401 = vadd.f32 0.0, %v2400
      %v2402 = vpop.f32.mrf.mxu0
      %v2403 = vadd.f32 0.0, %v2402
      %2404 = vmatmul.bf16.gmra.mxu0 %v2315
      %v2405 = vpop.f32.mrf.mxu0
      %v2406 = vadd.f32 0.0, %v2405
      %v2407 = vpop.f32.mrf.mxu0
      %v2408 = vadd.f32 0.0, %v2407
      %2409 = vmatmul.bf16.gmra.mxu0 %v2318
      %v2410 = vpop.f32.mrf.mxu0
      %v2411 = vadd.f32 0.0, %v2410
      %v2412 = vpop.f32.mrf.mxu0
      %v2413 = vadd.f32 0.0, %v2412
      %2414 = vmatmul.bf16.gmra.mxu0 %v2321
      %v2415 = vpop.f32.mrf.mxu0
      %v2416 = vadd.f32 0.0, %v2415
      %v2417 = vpop.f32.mrf.mxu0
      %v2418 = vadd.f32 0.0, %v2417
      %2419 = vmatmul.bf16.gmra.mxu0 %v2324
      %v2420 = vpop.f32.mrf.mxu0
      %v2421 = vadd.f32 0.0, %v2420
      %v2422 = vpop.f32.mrf.mxu0
      %v2423 = vadd.f32 0.0, %v2422
      %2424 = vmatmul.bf16.gmra.mxu0 %v2327
      %v2425 = vpop.f32.mrf.mxu0
      %v2426 = vadd.f32 0.0, %v2425
      %v2427 = vpop.f32.mrf.mxu0
      %v2428 = vadd.f32 0.0, %v2427
      %2429 = vmatmul.bf16.gmra.mxu0 %v2330
      %v2430 = vpop.f32.mrf.mxu0
      %v2431 = vadd.f32 0.0, %v2430
      %v2432 = vpop.f32.mrf.mxu0
      %v2433 = vadd.f32 0.0, %v2432
      %2434 = vmatmul.bf16.gmra.mxu0 %v2333
      %v2435 = vpop.f32.mrf.mxu0
      %v2436 = vadd.f32 0.0, %v2435
      %v2437 = vpop.f32.mrf.mxu0
      %v2438 = vadd.f32 0.0, %v2437
      %2439 = vmatmul.bf16.gmra.mxu0 %v2336
      %v2440 = vpop.f32.mrf.mxu0
      %v2441 = vadd.f32 0.0, %v2440
      %v2442 = vpop.f32.mrf.mxu0
      %v2443 = vadd.f32 0.0, %v2442
      %2444 = vmatmul.bf16.gmra.mxu0 %v2339
      %v2445 = vpop.f32.mrf.mxu0
      %v2446 = vadd.f32 0.0, %v2445
      %v2447 = vpop.f32.mrf.mxu0
      %v2448 = vadd.f32 0.0, %v2447
      %2449 = vmatmul.bf16.gmra.mxu0 %v2342
      %v2450 = vpop.f32.mrf.mxu0
      %v2451 = vadd.f32 0.0, %v2450
      %v2452 = vpop.f32.mrf.mxu0
      %v2453 = vadd.f32 0.0, %v2452
      %2454 = vmatmul.bf16.gmra.mxu0 %v2345
      %v2455 = vpop.f32.mrf.mxu0
      %v2456 = vadd.f32 0.0, %v2455
      %v2457 = vpop.f32.mrf.mxu0
      %v2458 = vadd.f32 0.0, %v2457
      %2459 = vmatmul.bf16.gmra.mxu0 %v2348
      %v2460 = vpop.f32.mrf.mxu0
      %v2461 = vadd.f32 0.0, %v2460
      %v2462 = vpop.f32.mrf.mxu0
      %v2463 = vadd.f32 0.0, %v2462
      %2464 = vmatmul.bf16.gmra.mxu0 %v2351
      %v2465 = vpop.f32.mrf.mxu0
      %v2466 = vadd.f32 0.0, %v2465
      %v2467 = vpop.f32.mrf.mxu0
      %v2468 = vadd.f32 0.0, %v2467
      %2469 = vmatmul.bf16.gmra.mxu0 %v2354
      %v2470 = vpop.f32.mrf.mxu0
      %v2471 = vadd.f32 0.0, %v2470
      %v2472 = vpop.f32.mrf.mxu0
      %v2473 = vadd.f32 0.0, %v2472
      %2474 = vmatmul.bf16.gmra.mxu0 %v2357
      %v2475 = vpop.f32.mrf.mxu0
      %v2476 = vadd.f32 0.0, %v2475
      %v2477 = vpop.f32.mrf.mxu0
      %v2478 = vadd.f32 0.0, %v2477
      %2479 = vmatmul.bf16.gmra.mxu0 %v2360
      %v2480 = vpop.f32.mrf.mxu0
      %v2481 = vadd.f32 0.0, %v2480
      %v2482 = vpop.f32.mrf.mxu0
      %v2483 = vadd.f32 0.0, %v2482
      %2484 = vmatmul.bf16.gmra.mxu0 %v2363
      %v2485 = vpop.f32.mrf.mxu0
      %v2486 = vadd.f32 0.0, %v2485
      %v2487 = vpop.f32.mrf.mxu0
      %v2488 = vadd.f32 0.0, %v2487
      %2489 = vmatmul.bf16.gmra.mxu0 %v2366
      %v2490 = vpop.f32.mrf.mxu0
      %v2491 = vadd.f32 0.0, %v2490
      %v2492 = vpop.f32.mrf.mxu0
      %v2493 = vadd.f32 0.0, %v2492
      %2494 = vmatmul.bf16.gmra.mxu0 %v2369
      %v2495 = vpop.f32.mrf.mxu0
      %v2496 = vadd.f32 0.0, %v2495
      %v2497 = vpop.f32.mrf.mxu0
      %v2498 = vadd.f32 0.0, %v2497
      %2499 = vdwg.mxu0
      %v2500 = vadd.f32 %v2067, %v2381
      %v2501 = vadd.f32 %v2068, %v2383
      %v2502 = vadd.f32 %v2069, %v2386
      %v2503 = vadd.f32 %v2070, %v2388
      %v2504 = vadd.f32 %v2071, %v2391
      %v2505 = vadd.f32 %v2072, %v2393
      %v2506 = vadd.f32 %v2073, %v2396
      %v2507 = vadd.f32 %v2074, %v2398
      %v2508 = vadd.f32 %v2075, %v2401
      %v2509 = vadd.f32 %v2076, %v2403
      %v2510 = vadd.f32 %v2077, %v2406
      %v2511 = vadd.f32 %v2078, %v2408
      %v2512 = vadd.f32 %v2079, %v2411
      %v2513 = vadd.f32 %v2080, %v2413
      %v2514 = vadd.f32 %v2081, %v2416
      %v2515 = vadd.f32 %v2082, %v2418
      %v2516 = vadd.f32 %v2083, %v2421
      %v2517 = vadd.f32 %v2084, %v2423
      %v2518 = vadd.f32 %v2085, %v2426
      %v2519 = vadd.f32 %v2086, %v2428
      %v2520 = vadd.f32 %v2087, %v2431
      %v2521 = vadd.f32 %v2088, %v2433
      %v2522 = vadd.f32 %v2089, %v2436
      %v2523 = vadd.f32 %v2090, %v2438
      %v2524 = vadd.f32 %v2091, %v2441
      %v2525 = vadd.f32 %v2092, %v2443
      %v2526 = vadd.f32 %v2093, %v2446
      %v2527 = vadd.f32 %v2094, %v2448
      %v2528 = vadd.f32 %v2095, %v2451
      %v2529 = vadd.f32 %v2096, %v2453
      %v2530 = vadd.f32 %v2097, %v2456
      %v2531 = vadd.f32 %v2098, %v2458
      %v2532 = vadd.f32 %v2099, %v2461
      %v2533 = vadd.f32 %v2100, %v2463
      %v2534 = vadd.f32 %v2101, %v2466
      %v2535 = vadd.f32 %v2102, %v2468
      %v2536 = vadd.f32 %v2103, %v2471
      %v2537 = vadd.f32 %v2104, %v2473
      %v2538 = vadd.f32 %v2105, %v2476
      %v2539 = vadd.f32 %v2106, %v2478
      %v2540 = vadd.f32 %v2107, %v2481
      %v2541 = vadd.f32 %v2108, %v2483
      %v2542 = vadd.f32 %v2109, %v2486
      %v2543 = vadd.f32 %v2110, %v2488
      %v2544 = vadd.f32 %v2111, %v2491
      %v2545 = vadd.f32 %v2112, %v2493
      %v2546 = vadd.f32 %v2113, %v2496
      %v2547 = vadd.f32 %v2114, %v2498
      %s2548 = scalar_lea.vmem %s2, 40
      %v2549 = vld [vmem:[%s2548] sm:$0xf]
      %v2550 = vld [vmem:[%s2548 + $0x4] sm:$0xf]
      %v2551 = vrot.slane %v1836, 1
      %v2552 = vrot.slane %v1837, 1
      %v2553 = vsel %vm1524, %v2551, %v2552
      %v2554 = vrot.slane %v1838, 1
      %v2555 = vsel %vm1524, %v2552, %v2554
      %v2556 = vrot.slane %v1839, 1
      %v2557 = vsel %vm1524, %v2554, %v2556
      %v2558 = vrot.slane %v1840, 1
      %v2559 = vsel %vm1524, %v2556, %v2558
      %v2560 = vrot.slane %v1841, 1
      %v2561 = vsel %vm1524, %v2558, %v2560
      %v2562 = vrot.slane %v1842, 1
      %v2563 = vsel %vm1524, %v2560, %v2562
      %v2564 = vrot.slane %v1843, 1
      %v2565 = vsel %vm1524, %v2562, %v2564
      %v2566 = vrot.slane %v1844, 1
      %v2567 = vsel %vm1524, %v2564, %v2566
      %v2568 = vrot.slane %v1845, 1
      %v2569 = vsel %vm1524, %v2566, %v2568
      %v2570 = vrot.slane %v1846, 1
      %v2571 = vsel %vm1524, %v2568, %v2570
      %v2572 = vrot.slane %v1847, 1
      %v2573 = vsel %vm1524, %v2570, %v2572
      %v2574 = vrot.slane %v1848, 1
      %v2575 = vsel %vm1524, %v2572, %v2574
      %v2576 = vrot.slane %v1849, 1
      %v2577 = vsel %vm1524, %v2574, %v2576
      %v2578 = vrot.slane %v1850, 1
      %v2579 = vsel %vm1524, %v2576, %v2578
      %v2580 = vrot.slane %v1851, 1
      %v2581 = vsel %vm1524, %v2578, %v2580
      %v2582 = vrot.slane %v1852, 1
      %v2583 = vsel %vm1524, %v2580, %v2582
      %v2584 = vrot.slane %v1853, 1
      %v2585 = vsel %vm1524, %v2582, %v2584
      %v2586 = vrot.slane %v1854, 1
      %v2587 = vsel %vm1524, %v2584, %v2586
      %v2588 = vrot.slane %v1855, 1
      %v2589 = vsel %vm1524, %v2586, %v2588
      %v2590 = vrot.slane %v1856, 1
      %v2591 = vsel %vm1524, %v2588, %v2590
      %v2592 = vrot.slane %v1857, 1
      %v2593 = vsel %vm1524, %v2590, %v2592
      %v2594 = vrot.slane %v1858, 1
      %v2595 = vsel %vm1524, %v2592, %v2594
      %v2596 = vrot.slane %v1859, 1
      %v2597 = vsel %vm1524, %v2594, %v2596
      %v2598 = vrot.slane %v2120, 1
      %v2599 = vsel %vm1524, %v2596, %v2598
      %v2602 = vunpack.c.l.b16 %v2549
      %v2603 = vunpack.c.l.b16 %v2550
      %v2604 = vpack.c.b16 %v2603, %v2602
      %v2607 = vsel %vm1136, %v2553, 0
      %v2610 = vsel %vm1136, %v2555, 0
      %v2613 = vsel %vm1136, %v2557, 0
      %v2616 = vsel %vm1136, %v2559, 0
      %v2619 = vsel %vm1136, %v2561, 0
      %v2622 = vsel %vm1136, %v2563, 0
      %v2625 = vsel %vm1136, %v2565, 0
      %v2628 = vsel %vm1136, %v2567, 0
      %v2631 = vsel %vm1136, %v2569, 0
      %v2634 = vsel %vm1136, %v2571, 0
      %v2637 = vsel %vm1136, %v2573, 0
      %v2640 = vsel %vm1136, %v2575, 0
      %v2643 = vsel %vm1136, %v2577, 0
      %v2646 = vsel %vm1136, %v2579, 0
      %v2649 = vsel %vm1136, %v2581, 0
      %v2652 = vsel %vm1136, %v2583, 0
      %v2655 = vsel %vm1136, %v2585, 0
      %v2658 = vsel %vm1136, %v2587, 0
      %v2661 = vsel %vm1136, %v2589, 0
      %v2664 = vsel %vm1136, %v2591, 0
      %v2667 = vsel %vm1136, %v2593, 0
      %v2670 = vsel %vm1136, %v2595, 0
      %v2673 = vsel %vm1136, %v2597, 0
      %v2676 = vsel %vm1136, %v2599, 0
      %2678 = vmatpush.bf16.msra.mxu0 0
      %2679 = vmatpush.bf16.msra.mxu0 0
      %2680 = vmatpush.bf16.msra.mxu0 0
      %2681 = vmatpush.bf16.msra.mxu0 0
      %2682 = vmatpush.bf16.msra.mxu0 0
      %2683 = vmatpush.bf16.msra.mxu0 0
      %2684 = vmatpush.bf16.msra.mxu0 0
      %2685 = vmatpush.bf16.msra.mxu0 %v2604
      %2686 = vmatmul.bf16.gmra.mxu0 %v2607
      %v2687 = vpop.f32.mrf.mxu0
      %v2688 = vadd.f32 0.0, %v2687
      %v2689 = vpop.f32.mrf.mxu0
      %v2690 = vadd.f32 0.0, %v2689
      %2691 = vmatmul.bf16.gmra.mxu0 %v2610
      %v2692 = vpop.f32.mrf.mxu0
      %v2693 = vadd.f32 0.0, %v2692
      %v2694 = vpop.f32.mrf.mxu0
      %v2695 = vadd.f32 0.0, %v2694
      %2696 = vmatmul.bf16.gmra.mxu0 %v2613
      %v2697 = vpop.f32.mrf.mxu0
      %v2698 = vadd.f32 0.0, %v2697
      %v2699 = vpop.f32.mrf.mxu0
      %v2700 = vadd.f32 0.0, %v2699
      %2701 = vmatmul.bf16.gmra.mxu0 %v2616
      %v2702 = vpop.f32.mrf.mxu0
      %v2703 = vadd.f32 0.0, %v2702
      %v2704 = vpop.f32.mrf.mxu0
      %v2705 = vadd.f32 0.0, %v2704
      %2706 = vmatmul.bf16.gmra.mxu0 %v2619
      %v2707 = vpop.f32.mrf.mxu0
      %v2708 = vadd.f32 0.0, %v2707
      %v2709 = vpop.f32.mrf.mxu0
      %v2710 = vadd.f32 0.0, %v2709
      %2711 = vmatmul.bf16.gmra.mxu0 %v2622
      %v2712 = vpop.f32.mrf.mxu0
      %v2713 = vadd.f32 0.0, %v2712
      %v2714 = vpop.f32.mrf.mxu0
      %v2715 = vadd.f32 0.0, %v2714
      %2716 = vmatmul.bf16.gmra.mxu0 %v2625
      %v2717 = vpop.f32.mrf.mxu0
      %v2718 = vadd.f32 0.0, %v2717
      %v2719 = vpop.f32.mrf.mxu0
      %v2720 = vadd.f32 0.0, %v2719
      %2721 = vmatmul.bf16.gmra.mxu0 %v2628
      %v2722 = vpop.f32.mrf.mxu0
      %v2723 = vadd.f32 0.0, %v2722
      %v2724 = vpop.f32.mrf.mxu0
      %v2725 = vadd.f32 0.0, %v2724
      %2726 = vmatmul.bf16.gmra.mxu0 %v2631
      %v2727 = vpop.f32.mrf.mxu0
      %v2728 = vadd.f32 0.0, %v2727
      %v2729 = vpop.f32.mrf.mxu0
      %v2730 = vadd.f32 0.0, %v2729
      %2731 = vmatmul.bf16.gmra.mxu0 %v2634
      %v2732 = vpop.f32.mrf.mxu0
      %v2733 = vadd.f32 0.0, %v2732
      %v2734 = vpop.f32.mrf.mxu0
      %v2735 = vadd.f32 0.0, %v2734
      %2736 = vmatmul.bf16.gmra.mxu0 %v2637
      %v2737 = vpop.f32.mrf.mxu0
      %v2738 = vadd.f32 0.0, %v2737
      %v2739 = vpop.f32.mrf.mxu0
      %v2740 = vadd.f32 0.0, %v2739
      %2741 = vmatmul.bf16.gmra.mxu0 %v2640
      %v2742 = vpop.f32.mrf.mxu0
      %v2743 = vadd.f32 0.0, %v2742
      %v2744 = vpop.f32.mrf.mxu0
      %v2745 = vadd.f32 0.0, %v2744
      %2746 = vmatmul.bf16.gmra.mxu0 %v2643
      %v2747 = vpop.f32.mrf.mxu0
      %v2748 = vadd.f32 0.0, %v2747
      %v2749 = vpop.f32.mrf.mxu0
      %v2750 = vadd.f32 0.0, %v2749
      %2751 = vmatmul.bf16.gmra.mxu0 %v2646
      %v2752 = vpop.f32.mrf.mxu0
      %v2753 = vadd.f32 0.0, %v2752
      %v2754 = vpop.f32.mrf.mxu0
      %v2755 = vadd.f32 0.0, %v2754
      %2756 = vmatmul.bf16.gmra.mxu0 %v2649
      %v2757 = vpop.f32.mrf.mxu0
      %v2758 = vadd.f32 0.0, %v2757
      %v2759 = vpop.f32.mrf.mxu0
      %v2760 = vadd.f32 0.0, %v2759
      %2761 = vmatmul.bf16.gmra.mxu0 %v2652
      %v2762 = vpop.f32.mrf.mxu0
      %v2763 = vadd.f32 0.0, %v2762
      %v2764 = vpop.f32.mrf.mxu0
      %v2765 = vadd.f32 0.0, %v2764
      %2766 = vmatmul.bf16.gmra.mxu0 %v2655
      %v2767 = vpop.f32.mrf.mxu0
      %v2768 = vadd.f32 0.0, %v2767
      %v2769 = vpop.f32.mrf.mxu0
      %v2770 = vadd.f32 0.0, %v2769
      %2771 = vmatmul.bf16.gmra.mxu0 %v2658
      %v2772 = vpop.f32.mrf.mxu0
      %v2773 = vadd.f32 0.0, %v2772
      %v2774 = vpop.f32.mrf.mxu0
      %v2775 = vadd.f32 0.0, %v2774
      %2776 = vmatmul.bf16.gmra.mxu0 %v2661
      %v2777 = vpop.f32.mrf.mxu0
      %v2778 = vadd.f32 0.0, %v2777
      %v2779 = vpop.f32.mrf.mxu0
      %v2780 = vadd.f32 0.0, %v2779
      %2781 = vmatmul.bf16.gmra.mxu0 %v2664
      %v2782 = vpop.f32.mrf.mxu0
      %v2783 = vadd.f32 0.0, %v2782
      %v2784 = vpop.f32.mrf.mxu0
      %v2785 = vadd.f32 0.0, %v2784
      %2786 = vmatmul.bf16.gmra.mxu0 %v2667
      %v2787 = vpop.f32.mrf.mxu0
      %v2788 = vadd.f32 0.0, %v2787
      %v2789 = vpop.f32.mrf.mxu0
      %v2790 = vadd.f32 0.0, %v2789
      %2791 = vmatmul.bf16.gmra.mxu0 %v2670
      %v2792 = vpop.f32.mrf.mxu0
      %v2793 = vadd.f32 0.0, %v2792
      %v2794 = vpop.f32.mrf.mxu0
      %v2795 = vadd.f32 0.0, %v2794
      %2796 = vmatmul.bf16.gmra.mxu0 %v2673
      %v2797 = vpop.f32.mrf.mxu0
      %v2798 = vadd.f32 0.0, %v2797
      %v2799 = vpop.f32.mrf.mxu0
      %v2800 = vadd.f32 0.0, %v2799
      %2801 = vmatmul.bf16.gmra.mxu0 %v2676
      %v2802 = vpop.f32.mrf.mxu0
      %v2803 = vadd.f32 0.0, %v2802
      %v2804 = vpop.f32.mrf.mxu0
      %v2805 = vadd.f32 0.0, %v2804
      %2806 = vdwg.mxu0
      %v2807 = vadd.f32 %v2500, %v2688
      %v2808 = vadd.f32 %v2501, %v2690
      %v2809 = vadd.f32 %v2502, %v2693
      %v2810 = vadd.f32 %v2503, %v2695
      %v2811 = vadd.f32 %v2504, %v2698
      %v2812 = vadd.f32 %v2505, %v2700
      %v2813 = vadd.f32 %v2506, %v2703
      %v2814 = vadd.f32 %v2507, %v2705
      %v2815 = vadd.f32 %v2508, %v2708
      %v2816 = vadd.f32 %v2509, %v2710
      %v2817 = vadd.f32 %v2510, %v2713
      %v2818 = vadd.f32 %v2511, %v2715
      %v2819 = vadd.f32 %v2512, %v2718
      %v2820 = vadd.f32 %v2513, %v2720
      %v2821 = vadd.f32 %v2514, %v2723
      %v2822 = vadd.f32 %v2515, %v2725
      %v2823 = vadd.f32 %v2516, %v2728
      %v2824 = vadd.f32 %v2517, %v2730
      %v2825 = vadd.f32 %v2518, %v2733
      %v2826 = vadd.f32 %v2519, %v2735
      %v2827 = vadd.f32 %v2520, %v2738
      %v2828 = vadd.f32 %v2521, %v2740
      %v2829 = vadd.f32 %v2522, %v2743
      %v2830 = vadd.f32 %v2523, %v2745
      %v2831 = vadd.f32 %v2524, %v2748
      %v2832 = vadd.f32 %v2525, %v2750
      %v2833 = vadd.f32 %v2526, %v2753
      %v2834 = vadd.f32 %v2527, %v2755
      %v2835 = vadd.f32 %v2528, %v2758
      %v2836 = vadd.f32 %v2529, %v2760
      %v2837 = vadd.f32 %v2530, %v2763
      %v2838 = vadd.f32 %v2531, %v2765
      %v2839 = vadd.f32 %v2532, %v2768
      %v2840 = vadd.f32 %v2533, %v2770
      %v2841 = vadd.f32 %v2534, %v2773
      %v2842 = vadd.f32 %v2535, %v2775
      %v2843 = vadd.f32 %v2536, %v2778
      %v2844 = vadd.f32 %v2537, %v2780
      %v2845 = vadd.f32 %v2538, %v2783
      %v2846 = vadd.f32 %v2539, %v2785
      %v2847 = vadd.f32 %v2540, %v2788
      %v2848 = vadd.f32 %v2541, %v2790
      %v2849 = vadd.f32 %v2542, %v2793
      %v2850 = vadd.f32 %v2543, %v2795
      %v2851 = vadd.f32 %v2544, %v2798
      %v2852 = vadd.f32 %v2545, %v2800
      %v2853 = vadd.f32 %v2546, %v2803
      %v2854 = vadd.f32 %v2547, %v2805
      %s2855 = scalar_lea.vmem %s2, 48
      %v2856 = vld [vmem:[%s2855] sm:$0xf]
      %v2857 = vld [vmem:[%s2855 + $0x4] sm:$0xf]
      %v2860 = vunpack.c.l.b16 %v802
      %v2861 = vunpack.c.l.b16 %v803
      %v2862 = vpack.c.b16 %v1834, %v907
      %v2863 = vpack.c.b16 %v2119, %v1835
      %v2864 = vpack.c.b16 %v2861, %v2860
      %v2867 = vunpack.c.l.b16 %v2856
      %v2868 = vunpack.c.l.b16 %v2857
      %v2869 = vpack.c.b16 %v2868, %v2867
      %v2872 = vsel %vm1136, %v2862, 0
      %v2875 = vsel %vm1136, %v2863, 0
      %v2878 = vsel %vm1136, %v2864, 0
      %2880 = vmatpush.bf16.msra.mxu0 0
      %2881 = vmatpush.bf16.msra.mxu0 0
      %2882 = vmatpush.bf16.msra.mxu0 0
      %2883 = vmatpush.bf16.msra.mxu0 0
      %2884 = vmatpush.bf16.msra.mxu0 0
      %2885 = vmatpush.bf16.msra.mxu0 0
      %2886 = vmatpush.bf16.msra.mxu0 0
      %2887 = vmatpush.bf16.msra.mxu0 %v2869
      %2888 = vmatmul.bf16.gmra.mxu0 %v1350
      %v2889 = vpop.f32.mrf.mxu0
      %v2890 = vadd.f32 0.0, %v2889
      %v2891 = vpop.f32.mrf.mxu0
      %v2892 = vadd.f32 0.0, %v2891
      %2893 = vmatmul.bf16.gmra.mxu0 %v1352
      %v2894 = vpop.f32.mrf.mxu0
      %v2895 = vadd.f32 0.0, %v2894
      %v2896 = vpop.f32.mrf.mxu0
      %v2897 = vadd.f32 0.0, %v2896
      %2898 = vmatmul.bf16.gmra.mxu0 %v1354
      %v2899 = vpop.f32.mrf.mxu0
      %v2900 = vadd.f32 0.0, %v2899
      %v2901 = vpop.f32.mrf.mxu0
      %v2902 = vadd.f32 0.0, %v2901
      %2903 = vmatmul.bf16.gmra.mxu0 %v1356
      %v2904 = vpop.f32.mrf.mxu0
      %v2905 = vadd.f32 0.0, %v2904
      %v2906 = vpop.f32.mrf.mxu0
      %v2907 = vadd.f32 0.0, %v2906
      %2908 = vmatmul.bf16.gmra.mxu0 %v1358
      %v2909 = vpop.f32.mrf.mxu0
      %v2910 = vadd.f32 0.0, %v2909
      %v2911 = vpop.f32.mrf.mxu0
      %v2912 = vadd.f32 0.0, %v2911
      %2913 = vmatmul.bf16.gmra.mxu0 %v1360
      %v2914 = vpop.f32.mrf.mxu0
      %v2915 = vadd.f32 0.0, %v2914
      %v2916 = vpop.f32.mrf.mxu0
      %v2917 = vadd.f32 0.0, %v2916
      %2918 = vmatmul.bf16.gmra.mxu0 %v1362
      %v2919 = vpop.f32.mrf.mxu0
      %v2920 = vadd.f32 0.0, %v2919
      %v2921 = vpop.f32.mrf.mxu0
      %v2922 = vadd.f32 0.0, %v2921
      %2923 = vmatmul.bf16.gmra.mxu0 %v1364
      %v2924 = vpop.f32.mrf.mxu0
      %v2925 = vadd.f32 0.0, %v2924
      %v2926 = vpop.f32.mrf.mxu0
      %v2927 = vadd.f32 0.0, %v2926
      %2928 = vmatmul.bf16.gmra.mxu0 %v1366
      %v2929 = vpop.f32.mrf.mxu0
      %v2930 = vadd.f32 0.0, %v2929
      %v2931 = vpop.f32.mrf.mxu0
      %v2932 = vadd.f32 0.0, %v2931
      %2933 = vmatmul.bf16.gmra.mxu0 %v1368
      %v2934 = vpop.f32.mrf.mxu0
      %v2935 = vadd.f32 0.0, %v2934
      %v2936 = vpop.f32.mrf.mxu0
      %v2937 = vadd.f32 0.0, %v2936
      %2938 = vmatmul.bf16.gmra.mxu0 %v1370
      %v2939 = vpop.f32.mrf.mxu0
      %v2940 = vadd.f32 0.0, %v2939
      %v2941 = vpop.f32.mrf.mxu0
      %v2942 = vadd.f32 0.0, %v2941
      %2943 = vmatmul.bf16.gmra.mxu0 %v1372
      %v2944 = vpop.f32.mrf.mxu0
      %v2945 = vadd.f32 0.0, %v2944
      %v2946 = vpop.f32.mrf.mxu0
      %v2947 = vadd.f32 0.0, %v2946
      %2948 = vmatmul.bf16.gmra.mxu0 %v1374
      %v2949 = vpop.f32.mrf.mxu0
      %v2950 = vadd.f32 0.0, %v2949
      %v2951 = vpop.f32.mrf.mxu0
      %v2952 = vadd.f32 0.0, %v2951
      %2953 = vmatmul.bf16.gmra.mxu0 %v1376
      %v2954 = vpop.f32.mrf.mxu0
      %v2955 = vadd.f32 0.0, %v2954
      %v2956 = vpop.f32.mrf.mxu0
      %v2957 = vadd.f32 0.0, %v2956
      %2958 = vmatmul.bf16.gmra.mxu0 %v1378
      %v2959 = vpop.f32.mrf.mxu0
      %v2960 = vadd.f32 0.0, %v2959
      %v2961 = vpop.f32.mrf.mxu0
      %v2962 = vadd.f32 0.0, %v2961
      %2963 = vmatmul.bf16.gmra.mxu0 %v1380
      %v2964 = vpop.f32.mrf.mxu0
      %v2965 = vadd.f32 0.0, %v2964
      %v2966 = vpop.f32.mrf.mxu0
      %v2967 = vadd.f32 0.0, %v2966
      %2968 = vmatmul.bf16.gmra.mxu0 %v1382
      %v2969 = vpop.f32.mrf.mxu0
      %v2970 = vadd.f32 0.0, %v2969
      %v2971 = vpop.f32.mrf.mxu0
      %v2972 = vadd.f32 0.0, %v2971
      %2973 = vmatmul.bf16.gmra.mxu0 %v1384
      %v2974 = vpop.f32.mrf.mxu0
      %v2975 = vadd.f32 0.0, %v2974
      %v2976 = vpop.f32.mrf.mxu0
      %v2977 = vadd.f32 0.0, %v2976
      %2978 = vmatmul.bf16.gmra.mxu0 %v1386
      %v2979 = vpop.f32.mrf.mxu0
      %v2980 = vadd.f32 0.0, %v2979
      %v2981 = vpop.f32.mrf.mxu0
      %v2982 = vadd.f32 0.0, %v2981
      %2983 = vmatmul.bf16.gmra.mxu0 %v1388
      %v2984 = vpop.f32.mrf.mxu0
      %v2985 = vadd.f32 0.0, %v2984
      %v2986 = vpop.f32.mrf.mxu0
      %v2987 = vadd.f32 0.0, %v2986
      %2988 = vmatmul.bf16.gmra.mxu0 %v1390
      %v2989 = vpop.f32.mrf.mxu0
      %v2990 = vadd.f32 0.0, %v2989
      %v2991 = vpop.f32.mrf.mxu0
      %v2992 = vadd.f32 0.0, %v2991
      %2993 = vmatmul.bf16.gmra.mxu0 %v2872
      %v2994 = vpop.f32.mrf.mxu0
      %v2995 = vadd.f32 0.0, %v2994
      %v2996 = vpop.f32.mrf.mxu0
      %v2997 = vadd.f32 0.0, %v2996
      %2998 = vmatmul.bf16.gmra.mxu0 %v2875
      %v2999 = vpop.f32.mrf.mxu0
      %v3000 = vadd.f32 0.0, %v2999
      %v3001 = vpop.f32.mrf.mxu0
      %v3002 = vadd.f32 0.0, %v3001
      %3003 = vmatmul.bf16.gmra.mxu0 %v2878
      %v3004 = vpop.f32.mrf.mxu0
      %v3005 = vadd.f32 0.0, %v3004
      %v3006 = vpop.f32.mrf.mxu0
      %v3007 = vadd.f32 0.0, %v3006
      %3008 = vdwg.mxu0
      %v3009 = vadd.f32 %v2807, %v2890
      %v3010 = vadd.f32 %v2808, %v2892
      %v3011 = vadd.f32 %v2809, %v2895
      %v3012 = vadd.f32 %v2810, %v2897
      %v3013 = vadd.f32 %v2811, %v2900
      %v3014 = vadd.f32 %v2812, %v2902
      %v3015 = vadd.f32 %v2813, %v2905
      %v3016 = vadd.f32 %v2814, %v2907
      %v3017 = vadd.f32 %v2815, %v2910
      %v3018 = vadd.f32 %v2816, %v2912
      %v3019 = vadd.f32 %v2817, %v2915
      %v3020 = vadd.f32 %v2818, %v2917
      %v3021 = vadd.f32 %v2819, %v2920
      %v3022 = vadd.f32 %v2820, %v2922
      %v3023 = vadd.f32 %v2821, %v2925
      %v3024 = vadd.f32 %v2822, %v2927
      %v3025 = vadd.f32 %v2823, %v2930
      %v3026 = vadd.f32 %v2824, %v2932
      %v3027 = vadd.f32 %v2825, %v2935
      %v3028 = vadd.f32 %v2826, %v2937
      %v3029 = vadd.f32 %v2827, %v2940
      %v3030 = vadd.f32 %v2828, %v2942
      %v3031 = vadd.f32 %v2829, %v2945
      %v3032 = vadd.f32 %v2830, %v2947
      %v3033 = vadd.f32 %v2831, %v2950
      %v3034 = vadd.f32 %v2832, %v2952
      %v3035 = vadd.f32 %v2833, %v2955
      %v3036 = vadd.f32 %v2834, %v2957
      %v3037 = vadd.f32 %v2835, %v2960
      %v3038 = vadd.f32 %v2836, %v2962
      %v3039 = vadd.f32 %v2837, %v2965
      %v3040 = vadd.f32 %v2838, %v2967
      %v3041 = vadd.f32 %v2839, %v2970
      %v3042 = vadd.f32 %v2840, %v2972
      %v3043 = vadd.f32 %v2841, %v2975
      %v3044 = vadd.f32 %v2842, %v2977
      %v3045 = vadd.f32 %v2843, %v2980
      %v3046 = vadd.f32 %v2844, %v2982
      %v3047 = vadd.f32 %v2845, %v2985
      %v3048 = vadd.f32 %v2846, %v2987
      %v3049 = vadd.f32 %v2847, %v2990
      %v3050 = vadd.f32 %v2848, %v2992
      %v3051 = vadd.f32 %v2849, %v2995
      %v3052 = vadd.f32 %v2850, %v2997
      %v3053 = vadd.f32 %v2851, %v3000
      %v3054 = vadd.f32 %v2852, %v3002
      %v3055 = vadd.f32 %v2853, %v3005
      %v3056 = vadd.f32 %v2854, %v3007
      %s3057 = scalar_lea.vmem %s2, 56
      %v3058 = vld [vmem:[%s3057] sm:$0xf]
      %v3059 = vld [vmem:[%s3057 + $0x4] sm:$0xf]
      %v3061 = vunpack.c.l.b16 %v804
      %v3062 = vpack.c.b16 %v3061, %v3061
      %v3063 = vshll.u32 %v2862, 16
      %v3065 = vrot.slane %v3063, 1
      %v3066 = vsel %vm933, %v1124, %v3065
      %v3067 = vshrl.u32 %v2862, 16
      %v3069 = vor.u32 %v3067, %v3065
      %v3070 = vshll.u32 %v2863, 16
      %v3072 = vrot.slane %v3070, 1
      %v3073 = vsel %vm933, %v3069, %v3072
      %v3074 = vshrl.u32 %v2863, 16
      %v3076 = vor.u32 %v3074, %v3072
      %v3077 = vshll.u32 %v2864, 16
      %v3079 = vrot.slane %v3077, 1
      %v3080 = vsel %vm933, %v3076, %v3079
      %v3081 = vshrl.u32 %v2864, 16
      %v3083 = vor.u32 %v3081, %v3079
      %v3085 = vshll.u32 %v3062, 16
      %v3087 = vrot.slane %v3085, 1
      %v3088 = vsel %vm933, %v3083, %v3087
      %v3091 = vunpack.c.l.b16 %v3058
      %v3092 = vunpack.c.l.b16 %v3059
      %v3093 = vpack.c.b16 %v3092, %v3091
      %v3096 = vsel %vm1136, %v3066, 0
      %v3099 = vsel %vm1136, %v3073, 0
      %v3102 = vsel %vm1136, %v3080, 0
      %v3105 = vsel %vm1136, %v3088, 0
      %3107 = vmatpush.bf16.msra.mxu0 0
      %3108 = vmatpush.bf16.msra.mxu0 0
      %3109 = vmatpush.bf16.msra.mxu0 0
      %3110 = vmatpush.bf16.msra.mxu0 0
      %3111 = vmatpush.bf16.msra.mxu0 0
      %3112 = vmatpush.bf16.msra.mxu0 0
      %3113 = vmatpush.bf16.msra.mxu0 0
      %3114 = vmatpush.bf16.msra.mxu0 %v3093
      %3115 = vmatmul.bf16.gmra.mxu0 %v1147
      %v3116 = vpop.f32.mrf.mxu0
      %v3117 = vadd.f32 0.0, %v3116
      %v3118 = vpop.f32.mrf.mxu0
      %v3119 = vadd.f32 0.0, %v3118
      %3120 = vmatmul.bf16.gmra.mxu0 %v1150
      %v3121 = vpop.f32.mrf.mxu0
      %v3122 = vadd.f32 0.0, %v3121
      %v3123 = vpop.f32.mrf.mxu0
      %v3124 = vadd.f32 0.0, %v3123
      %3125 = vmatmul.bf16.gmra.mxu0 %v1153
      %v3126 = vpop.f32.mrf.mxu0
      %v3127 = vadd.f32 0.0, %v3126
      %v3128 = vpop.f32.mrf.mxu0
      %v3129 = vadd.f32 0.0, %v3128
      %3130 = vmatmul.bf16.gmra.mxu0 %v1156
      %v3131 = vpop.f32.mrf.mxu0
      %v3132 = vadd.f32 0.0, %v3131
      %v3133 = vpop.f32.mrf.mxu0
      %v3134 = vadd.f32 0.0, %v3133
      %3135 = vmatmul.bf16.gmra.mxu0 %v1159
      %v3136 = vpop.f32.mrf.mxu0
      %v3137 = vadd.f32 0.0, %v3136
      %v3138 = vpop.f32.mrf.mxu0
      %v3139 = vadd.f32 0.0, %v3138
      %3140 = vmatmul.bf16.gmra.mxu0 %v1162
      %v3141 = vpop.f32.mrf.mxu0
      %v3142 = vadd.f32 0.0, %v3141
      %v3143 = vpop.f32.mrf.mxu0
      %v3144 = vadd.f32 0.0, %v3143
      %3145 = vmatmul.bf16.gmra.mxu0 %v1165
      %v3146 = vpop.f32.mrf.mxu0
      %v3147 = vadd.f32 0.0, %v3146
      %v3148 = vpop.f32.mrf.mxu0
      %v3149 = vadd.f32 0.0, %v3148
      %3150 = vmatmul.bf16.gmra.mxu0 %v1168
      %v3151 = vpop.f32.mrf.mxu0
      %v3152 = vadd.f32 0.0, %v3151
      %v3153 = vpop.f32.mrf.mxu0
      %v3154 = vadd.f32 0.0, %v3153
      %3155 = vmatmul.bf16.gmra.mxu0 %v1171
      %v3156 = vpop.f32.mrf.mxu0
      %v3157 = vadd.f32 0.0, %v3156
      %v3158 = vpop.f32.mrf.mxu0
      %v3159 = vadd.f32 0.0, %v3158
      %3160 = vmatmul.bf16.gmra.mxu0 %v1174
      %v3161 = vpop.f32.mrf.mxu0
      %v3162 = vadd.f32 0.0, %v3161
      %v3163 = vpop.f32.mrf.mxu0
      %v3164 = vadd.f32 0.0, %v3163
      %3165 = vmatmul.bf16.gmra.mxu0 %v1177
      %v3166 = vpop.f32.mrf.mxu0
      %v3167 = vadd.f32 0.0, %v3166
      %v3168 = vpop.f32.mrf.mxu0
      %v3169 = vadd.f32 0.0, %v3168
      %3170 = vmatmul.bf16.gmra.mxu0 %v1180
      %v3171 = vpop.f32.mrf.mxu0
      %v3172 = vadd.f32 0.0, %v3171
      %v3173 = vpop.f32.mrf.mxu0
      %v3174 = vadd.f32 0.0, %v3173
      %3175 = vmatmul.bf16.gmra.mxu0 %v1183
      %v3176 = vpop.f32.mrf.mxu0
      %v3177 = vadd.f32 0.0, %v3176
      %v3178 = vpop.f32.mrf.mxu0
      %v3179 = vadd.f32 0.0, %v3178
      %3180 = vmatmul.bf16.gmra.mxu0 %v1186
      %v3181 = vpop.f32.mrf.mxu0
      %v3182 = vadd.f32 0.0, %v3181
      %v3183 = vpop.f32.mrf.mxu0
      %v3184 = vadd.f32 0.0, %v3183
      %3185 = vmatmul.bf16.gmra.mxu0 %v1189
      %v3186 = vpop.f32.mrf.mxu0
      %v3187 = vadd.f32 0.0, %v3186
      %v3188 = vpop.f32.mrf.mxu0
      %v3189 = vadd.f32 0.0, %v3188
      %3190 = vmatmul.bf16.gmra.mxu0 %v1192
      %v3191 = vpop.f32.mrf.mxu0
      %v3192 = vadd.f32 0.0, %v3191
      %v3193 = vpop.f32.mrf.mxu0
      %v3194 = vadd.f32 0.0, %v3193
      %3195 = vmatmul.bf16.gmra.mxu0 %v1195
      %v3196 = vpop.f32.mrf.mxu0
      %v3197 = vadd.f32 0.0, %v3196
      %v3198 = vpop.f32.mrf.mxu0
      %v3199 = vadd.f32 0.0, %v3198
      %3200 = vmatmul.bf16.gmra.mxu0 %v1198
      %v3201 = vpop.f32.mrf.mxu0
      %v3202 = vadd.f32 0.0, %v3201
      %v3203 = vpop.f32.mrf.mxu0
      %v3204 = vadd.f32 0.0, %v3203
      %3205 = vmatmul.bf16.gmra.mxu0 %v1201
      %v3206 = vpop.f32.mrf.mxu0
      %v3207 = vadd.f32 0.0, %v3206
      %v3208 = vpop.f32.mrf.mxu0
      %v3209 = vadd.f32 0.0, %v3208
      %3210 = vmatmul.bf16.gmra.mxu0 %v1204
      %v3211 = vpop.f32.mrf.mxu0
      %v3212 = vadd.f32 0.0, %v3211
      %v3213 = vpop.f32.mrf.mxu0
      %v3214 = vadd.f32 0.0, %v3213
      %3215 = vmatmul.bf16.gmra.mxu0 %v3096
      %v3216 = vpop.f32.mrf.mxu0
      %v3217 = vadd.f32 0.0, %v3216
      %v3218 = vpop.f32.mrf.mxu0
      %v3219 = vadd.f32 0.0, %v3218
      %3220 = vmatmul.bf16.gmra.mxu0 %v3099
      %v3221 = vpop.f32.mrf.mxu0
      %v3222 = vadd.f32 0.0, %v3221
      %v3223 = vpop.f32.mrf.mxu0
      %v3224 = vadd.f32 0.0, %v3223
      %3225 = vmatmul.bf16.gmra.mxu0 %v3102
      %v3226 = vpop.f32.mrf.mxu0
      %v3227 = vadd.f32 0.0, %v3226
      %v3228 = vpop.f32.mrf.mxu0
      %v3229 = vadd.f32 0.0, %v3228
      %3230 = vmatmul.bf16.gmra.mxu0 %v3105
      %v3231 = vpop.f32.mrf.mxu0
      %v3232 = vadd.f32 0.0, %v3231
      %v3233 = vpop.f32.mrf.mxu0
      %v3234 = vadd.f32 0.0, %v3233
      %3235 = vdwg.mxu0
      %v3236 = vadd.f32 %v3009, %v3117
      %v3237 = vadd.f32 %v3010, %v3119
      %v3238 = vadd.f32 %v3011, %v3122
      %v3239 = vadd.f32 %v3012, %v3124
      %v3240 = vadd.f32 %v3013, %v3127
      %v3241 = vadd.f32 %v3014, %v3129
      %v3242 = vadd.f32 %v3015, %v3132
      %v3243 = vadd.f32 %v3016, %v3134
      %v3244 = vadd.f32 %v3017, %v3137
      %v3245 = vadd.f32 %v3018, %v3139
      %v3246 = vadd.f32 %v3019, %v3142
      %v3247 = vadd.f32 %v3020, %v3144
      %v3248 = vadd.f32 %v3021, %v3147
      %v3249 = vadd.f32 %v3022, %v3149
      %v3250 = vadd.f32 %v3023, %v3152
      %v3251 = vadd.f32 %v3024, %v3154
      %v3252 = vadd.f32 %v3025, %v3157
      %v3253 = vadd.f32 %v3026, %v3159
      %v3254 = vadd.f32 %v3027, %v3162
      %v3255 = vadd.f32 %v3028, %v3164
      %v3256 = vadd.f32 %v3029, %v3167
      %v3257 = vadd.f32 %v3030, %v3169
      %v3258 = vadd.f32 %v3031, %v3172
      %v3259 = vadd.f32 %v3032, %v3174
      %v3260 = vadd.f32 %v3033, %v3177
      %v3261 = vadd.f32 %v3034, %v3179
      %v3262 = vadd.f32 %v3035, %v3182
      %v3263 = vadd.f32 %v3036, %v3184
      %v3264 = vadd.f32 %v3037, %v3187
      %v3265 = vadd.f32 %v3038, %v3189
      %v3266 = vadd.f32 %v3039, %v3192
      %v3267 = vadd.f32 %v3040, %v3194
      %v3268 = vadd.f32 %v3041, %v3197
      %v3269 = vadd.f32 %v3042, %v3199
      %v3270 = vadd.f32 %v3043, %v3202
      %v3271 = vadd.f32 %v3044, %v3204
      %v3272 = vadd.f32 %v3045, %v3207
      %v3273 = vadd.f32 %v3046, %v3209
      %v3274 = vadd.f32 %v3047, %v3212
      %v3275 = vadd.f32 %v3048, %v3214
      %v3276 = vadd.f32 %v3049, %v3217
      %v3277 = vadd.f32 %v3050, %v3219
      %v3278 = vadd.f32 %v3051, %v3222
      %v3279 = vadd.f32 %v3052, %v3224
      %v3280 = vadd.f32 %v3053, %v3227
      %v3281 = vadd.f32 %v3054, %v3229
      %v3282 = vadd.f32 %v3055, %v3232
      %v3283 = vadd.f32 %v3056, %v3234
      %s3284 = scalar_lea.vmem %s2, 64
      %v3285 = vld [vmem:[%s3284] sm:$0xf]
      %v3286 = vld [vmem:[%s3284 + $0x4] sm:$0xf]
      %v3287 = vrot.slane %v2862, 1
      %v3288 = vsel %vm1524, %v1570, %v3287
      %v3289 = vrot.slane %v2863, 1
      %v3290 = vsel %vm1524, %v3287, %v3289
      %v3291 = vrot.slane %v2864, 1
      %v3292 = vsel %vm1524, %v3289, %v3291
      %v3293 = vrot.slane %v3062, 1
      %v3294 = vsel %vm1524, %v3291, %v3293
      %v3297 = vunpack.c.l.b16 %v3285
      %v3298 = vunpack.c.l.b16 %v3286
      %v3299 = vpack.c.b16 %v3298, %v3297
      %v3302 = vsel %vm1136, %v3288, 0
      %v3305 = vsel %vm1136, %v3290, 0
      %v3308 = vsel %vm1136, %v3292, 0
      %v3311 = vsel %vm1136, %v3294, 0
      %3313 = vmatpush.bf16.msra.mxu0 0
      %3314 = vmatpush.bf16.msra.mxu0 0
      %3315 = vmatpush.bf16.msra.mxu0 0
      %3316 = vmatpush.bf16.msra.mxu0 0
      %3317 = vmatpush.bf16.msra.mxu0 0
      %3318 = vmatpush.bf16.msra.mxu0 0
      %3319 = vmatpush.bf16.msra.mxu0 0
      %3320 = vmatpush.bf16.msra.mxu0 %v3299
      %3321 = vmatmul.bf16.gmra.mxu0 %v1590
      %v3322 = vpop.f32.mrf.mxu0
      %v3323 = vadd.f32 0.0, %v3322
      %v3324 = vpop.f32.mrf.mxu0
      %v3325 = vadd.f32 0.0, %v3324
      %3326 = vmatmul.bf16.gmra.mxu0 %v1593
      %v3327 = vpop.f32.mrf.mxu0
      %v3328 = vadd.f32 0.0, %v3327
      %v3329 = vpop.f32.mrf.mxu0
      %v3330 = vadd.f32 0.0, %v3329
      %3331 = vmatmul.bf16.gmra.mxu0 %v1596
      %v3332 = vpop.f32.mrf.mxu0
      %v3333 = vadd.f32 0.0, %v3332
      %v3334 = vpop.f32.mrf.mxu0
      %v3335 = vadd.f32 0.0, %v3334
      %3336 = vmatmul.bf16.gmra.mxu0 %v1599
      %v3337 = vpop.f32.mrf.mxu0
      %v3338 = vadd.f32 0.0, %v3337
      %v3339 = vpop.f32.mrf.mxu0
      %v3340 = vadd.f32 0.0, %v3339
      %3341 = vmatmul.bf16.gmra.mxu0 %v1602
      %v3342 = vpop.f32.mrf.mxu0
      %v3343 = vadd.f32 0.0, %v3342
      %v3344 = vpop.f32.mrf.mxu0
      %v3345 = vadd.f32 0.0, %v3344
      %3346 = vmatmul.bf16.gmra.mxu0 %v1605
      %v3347 = vpop.f32.mrf.mxu0
      %v3348 = vadd.f32 0.0, %v3347
      %v3349 = vpop.f32.mrf.mxu0
      %v3350 = vadd.f32 0.0, %v3349
      %3351 = vmatmul.bf16.gmra.mxu0 %v1608
      %v3352 = vpop.f32.mrf.mxu0
      %v3353 = vadd.f32 0.0, %v3352
      %v3354 = vpop.f32.mrf.mxu0
      %v3355 = vadd.f32 0.0, %v3354
      %3356 = vmatmul.bf16.gmra.mxu0 %v1611
      %v3357 = vpop.f32.mrf.mxu0
      %v3358 = vadd.f32 0.0, %v3357
      %v3359 = vpop.f32.mrf.mxu0
      %v3360 = vadd.f32 0.0, %v3359
      %3361 = vmatmul.bf16.gmra.mxu0 %v1614
      %v3362 = vpop.f32.mrf.mxu0
      %v3363 = vadd.f32 0.0, %v3362
      %v3364 = vpop.f32.mrf.mxu0
      %v3365 = vadd.f32 0.0, %v3364
      %3366 = vmatmul.bf16.gmra.mxu0 %v1617
      %v3367 = vpop.f32.mrf.mxu0
      %v3368 = vadd.f32 0.0, %v3367
      %v3369 = vpop.f32.mrf.mxu0
      %v3370 = vadd.f32 0.0, %v3369
      %3371 = vmatmul.bf16.gmra.mxu0 %v1620
      %v3372 = vpop.f32.mrf.mxu0
      %v3373 = vadd.f32 0.0, %v3372
      %v3374 = vpop.f32.mrf.mxu0
      %v3375 = vadd.f32 0.0, %v3374
      %3376 = vmatmul.bf16.gmra.mxu0 %v1623
      %v3377 = vpop.f32.mrf.mxu0
      %v3378 = vadd.f32 0.0, %v3377
      %v3379 = vpop.f32.mrf.mxu0
      %v3380 = vadd.f32 0.0, %v3379
      %3381 = vmatmul.bf16.gmra.mxu0 %v1626
      %v3382 = vpop.f32.mrf.mxu0
      %v3383 = vadd.f32 0.0, %v3382
      %v3384 = vpop.f32.mrf.mxu0
      %v3385 = vadd.f32 0.0, %v3384
      %3386 = vmatmul.bf16.gmra.mxu0 %v1629
      %v3387 = vpop.f32.mrf.mxu0
      %v3388 = vadd.f32 0.0, %v3387
      %v3389 = vpop.f32.mrf.mxu0
      %v3390 = vadd.f32 0.0, %v3389
      %3391 = vmatmul.bf16.gmra.mxu0 %v1632
      %v3392 = vpop.f32.mrf.mxu0
      %v3393 = vadd.f32 0.0, %v3392
      %v3394 = vpop.f32.mrf.mxu0
      %v3395 = vadd.f32 0.0, %v3394
      %3396 = vmatmul.bf16.gmra.mxu0 %v1635
      %v3397 = vpop.f32.mrf.mxu0
      %v3398 = vadd.f32 0.0, %v3397
      %v3399 = vpop.f32.mrf.mxu0
      %v3400 = vadd.f32 0.0, %v3399
      %3401 = vmatmul.bf16.gmra.mxu0 %v1638
      %v3402 = vpop.f32.mrf.mxu0
      %v3403 = vadd.f32 0.0, %v3402
      %v3404 = vpop.f32.mrf.mxu0
      %v3405 = vadd.f32 0.0, %v3404
      %3406 = vmatmul.bf16.gmra.mxu0 %v1641
      %v3407 = vpop.f32.mrf.mxu0
      %v3408 = vadd.f32 0.0, %v3407
      %v3409 = vpop.f32.mrf.mxu0
      %v3410 = vadd.f32 0.0, %v3409
      %3411 = vmatmul.bf16.gmra.mxu0 %v1644
      %v3412 = vpop.f32.mrf.mxu0
      %v3413 = vadd.f32 0.0, %v3412
      %v3414 = vpop.f32.mrf.mxu0
      %v3415 = vadd.f32 0.0, %v3414
      %3416 = vmatmul.bf16.gmra.mxu0 %v1647
      %v3417 = vpop.f32.mrf.mxu0
      %v3418 = vadd.f32 0.0, %v3417
      %v3419 = vpop.f32.mrf.mxu0
      %v3420 = vadd.f32 0.0, %v3419
      %3421 = vmatmul.bf16.gmra.mxu0 %v3302
      %v3422 = vpop.f32.mrf.mxu0
      %v3423 = vadd.f32 0.0, %v3422
      %v3424 = vpop.f32.mrf.mxu0
      %v3425 = vadd.f32 0.0, %v3424
      %3426 = vmatmul.bf16.gmra.mxu0 %v3305
      %v3427 = vpop.f32.mrf.mxu0
      %v3428 = vadd.f32 0.0, %v3427
      %v3429 = vpop.f32.mrf.mxu0
      %v3430 = vadd.f32 0.0, %v3429
      %3431 = vmatmul.bf16.gmra.mxu0 %v3308
      %v3432 = vpop.f32.mrf.mxu0
      %v3433 = vadd.f32 0.0, %v3432
      %v3434 = vpop.f32.mrf.mxu0
      %v3435 = vadd.f32 0.0, %v3434
      %3436 = vmatmul.bf16.gmra.mxu0 %v3311
      %v3437 = vpop.f32.mrf.mxu0
      %v3438 = vadd.f32 0.0, %v3437
      %v3439 = vpop.f32.mrf.mxu0
      %v3440 = vadd.f32 0.0, %v3439
      %3441 = vdwg.mxu0
      %v3442 = vadd.f32 %v3236, %v3323
      %v3443 = vadd.f32 %v3237, %v3325
      %v3444 = vadd.f32 %v3238, %v3328
      %v3445 = vadd.f32 %v3239, %v3330
      %v3446 = vadd.f32 %v3240, %v3333
      %v3447 = vadd.f32 %v3241, %v3335
      %v3448 = vadd.f32 %v3242, %v3338
      %v3449 = vadd.f32 %v3243, %v3340
      %v3450 = vadd.f32 %v3244, %v3343
      %v3451 = vadd.f32 %v3245, %v3345
      %v3452 = vadd.f32 %v3246, %v3348
      %v3453 = vadd.f32 %v3247, %v3350
      %v3454 = vadd.f32 %v3248, %v3353
      %v3455 = vadd.f32 %v3249, %v3355
      %v3456 = vadd.f32 %v3250, %v3358
      %v3457 = vadd.f32 %v3251, %v3360
      %v3458 = vadd.f32 %v3252, %v3363
      %v3459 = vadd.f32 %v3253, %v3365
      %v3460 = vadd.f32 %v3254, %v3368
      %v3461 = vadd.f32 %v3255, %v3370
      %v3462 = vadd.f32 %v3256, %v3373
      %v3463 = vadd.f32 %v3257, %v3375
      %v3464 = vadd.f32 %v3258, %v3378
      %v3465 = vadd.f32 %v3259, %v3380
      %v3466 = vadd.f32 %v3260, %v3383
      %v3467 = vadd.f32 %v3261, %v3385
      %v3468 = vadd.f32 %v3262, %v3388
      %v3469 = vadd.f32 %v3263, %v3390
      %v3470 = vadd.f32 %v3264, %v3393
      %v3471 = vadd.f32 %v3265, %v3395
      %v3472 = vadd.f32 %v3266, %v3398
      %v3473 = vadd.f32 %v3267, %v3400
      %v3474 = vadd.f32 %v3268, %v3403
      %v3475 = vadd.f32 %v3269, %v3405
      %v3476 = vadd.f32 %v3270, %v3408
      %v3477 = vadd.f32 %v3271, %v3410
      %v3478 = vadd.f32 %v3272, %v3413
      %v3479 = vadd.f32 %v3273, %v3415
      %v3480 = vadd.f32 %v3274, %v3418
      %v3481 = vadd.f32 %v3275, %v3420
      %v3482 = vadd.f32 %v3276, %v3423
      %v3483 = vadd.f32 %v3277, %v3425
      %v3484 = vadd.f32 %v3278, %v3428
      %v3485 = vadd.f32 %v3279, %v3430
      %v3486 = vadd.f32 %v3280, %v3433
      %v3487 = vadd.f32 %v3281, %v3435
      %v3488 = vadd.f32 %v3282, %v3438
      %v3489 = vadd.f32 %v3283, %v3440
      %v3490 = vld [vmem:[%s3] sm:$0x1]
      %v3492 = vperm.slane %v3490, 0
      %v3494 = vadd.f32 %v3442, %v3492
      %v3495 = vadd.f32 %v3443, %v3492
      %v3496 = vadd.f32 %v3444, %v3492
      %v3497 = vadd.f32 %v3445, %v3492
      %v3498 = vadd.f32 %v3446, %v3492
      %v3499 = vadd.f32 %v3447, %v3492
      %v3500 = vadd.f32 %v3448, %v3492
      %v3501 = vadd.f32 %v3449, %v3492
      %v3502 = vadd.f32 %v3450, %v3492
      %v3503 = vadd.f32 %v3451, %v3492
      %v3504 = vadd.f32 %v3452, %v3492
      %v3505 = vadd.f32 %v3453, %v3492
      %v3506 = vadd.f32 %v3454, %v3492
      %v3507 = vadd.f32 %v3455, %v3492
      %v3508 = vadd.f32 %v3456, %v3492
      %v3509 = vadd.f32 %v3457, %v3492
      %v3510 = vadd.f32 %v3458, %v3492
      %v3511 = vadd.f32 %v3459, %v3492
      %v3512 = vadd.f32 %v3460, %v3492
      %v3513 = vadd.f32 %v3461, %v3492
      %v3514 = vadd.f32 %v3462, %v3492
      %v3515 = vadd.f32 %v3463, %v3492
      %v3516 = vadd.f32 %v3464, %v3492
      %v3517 = vadd.f32 %v3465, %v3492
      %v3518 = vadd.f32 %v3466, %v3492
      %v3519 = vadd.f32 %v3467, %v3492
      %v3520 = vadd.f32 %v3468, %v3492
      %v3521 = vadd.f32 %v3469, %v3492
      %v3522 = vadd.f32 %v3470, %v3492
      %v3523 = vadd.f32 %v3471, %v3492
      %v3524 = vadd.f32 %v3472, %v3492
      %v3525 = vadd.f32 %v3473, %v3492
      %v3526 = vadd.f32 %v3474, %v3492
      %v3527 = vadd.f32 %v3475, %v3492
      %v3528 = vadd.f32 %v3476, %v3492
      %v3529 = vadd.f32 %v3477, %v3492
      %v3530 = vadd.f32 %v3478, %v3492
      %v3531 = vadd.f32 %v3479, %v3492
      %v3532 = vadd.f32 %v3480, %v3492
      %v3533 = vadd.f32 %v3481, %v3492
      %v3534 = vadd.f32 %v3482, %v3492
      %v3535 = vadd.f32 %v3483, %v3492
      %v3536 = vadd.f32 %v3484, %v3492
      %v3537 = vadd.f32 %v3485, %v3492
      %v3538 = vadd.f32 %v3486, %v3492
      %v3539 = vadd.f32 %v3487, %v3492
      %v3540 = vadd.f32 %v3488, %v3492
      %v3541 = vadd.f32 %v3489, %v3492
      %v3542 = vmax.f32 %v3494, 0.0
      %v3543 = vmax.f32 %v3495, 0.0
      %v3544 = vmax.f32 %v3496, 0.0
      %v3545 = vmax.f32 %v3497, 0.0
      %v3546 = vmax.f32 %v3498, 0.0
      %v3547 = vmax.f32 %v3499, 0.0
      %v3548 = vmax.f32 %v3500, 0.0
      %v3549 = vmax.f32 %v3501, 0.0
      %v3550 = vmax.f32 %v3502, 0.0
      %v3551 = vmax.f32 %v3503, 0.0
      %v3552 = vmax.f32 %v3504, 0.0
      %v3553 = vmax.f32 %v3505, 0.0
      %v3554 = vmax.f32 %v3506, 0.0
      %v3555 = vmax.f32 %v3507, 0.0
      %v3556 = vmax.f32 %v3508, 0.0
      %v3557 = vmax.f32 %v3509, 0.0
      %v3558 = vmax.f32 %v3510, 0.0
      %v3559 = vmax.f32 %v3511, 0.0
      %v3560 = vmax.f32 %v3512, 0.0
      %v3561 = vmax.f32 %v3513, 0.0
      %v3562 = vmax.f32 %v3514, 0.0
      %v3563 = vmax.f32 %v3515, 0.0
      %v3564 = vmax.f32 %v3516, 0.0
      %v3565 = vmax.f32 %v3517, 0.0
      %v3566 = vmax.f32 %v3518, 0.0
      %v3567 = vmax.f32 %v3519, 0.0
      %v3568 = vmax.f32 %v3520, 0.0
      %v3569 = vmax.f32 %v3521, 0.0
      %v3570 = vmax.f32 %v3522, 0.0
      %v3571 = vmax.f32 %v3523, 0.0
      %v3572 = vmax.f32 %v3524, 0.0
      %v3573 = vmax.f32 %v3525, 0.0
      %v3574 = vmax.f32 %v3526, 0.0
      %v3575 = vmax.f32 %v3527, 0.0
      %v3576 = vmax.f32 %v3528, 0.0
      %v3577 = vmax.f32 %v3529, 0.0
      %v3578 = vmax.f32 %v3530, 0.0
      %v3579 = vmax.f32 %v3531, 0.0
      %v3580 = vmax.f32 %v3532, 0.0
      %v3581 = vmax.f32 %v3533, 0.0
      %v3582 = vmax.f32 %v3534, 0.0
      %v3583 = vmax.f32 %v3535, 0.0
      %v3584 = vmax.f32 %v3536, 0.0
      %v3585 = vmax.f32 %v3537, 0.0
      %v3586 = vmax.f32 %v3538, 0.0
      %v3587 = vmax.f32 %v3539, 0.0
      %v3588 = vmax.f32 %v3540, 0.0
      %v3589 = vmax.f32 %v3541, 0.0
      %v3590 = vpack.c.bf16 %v3542, %v3542
      %v3591 = vpack.c.bf16 %v3543, %v3543
      %v3592 = vpack.c.bf16 %v3544, %v3544
      %v3593 = vpack.c.bf16 %v3545, %v3545
      %v3594 = vpack.c.bf16 %v3546, %v3546
      %v3595 = vpack.c.bf16 %v3547, %v3547
      %v3596 = vpack.c.bf16 %v3548, %v3548
      %v3597 = vpack.c.bf16 %v3549, %v3549
      %v3598 = vpack.c.bf16 %v3550, %v3550
      %v3599 = vpack.c.bf16 %v3551, %v3551
      %v3600 = vpack.c.bf16 %v3552, %v3552
      %v3601 = vpack.c.bf16 %v3553, %v3553
      %v3602 = vpack.c.bf16 %v3554, %v3554
      %v3603 = vpack.c.bf16 %v3555, %v3555
      %v3604 = vpack.c.bf16 %v3556, %v3556
      %v3605 = vpack.c.bf16 %v3557, %v3557
      %v3606 = vpack.c.bf16 %v3558, %v3558
      %v3607 = vpack.c.bf16 %v3559, %v3559
      %v3608 = vpack.c.bf16 %v3560, %v3560
      %v3609 = vpack.c.bf16 %v3561, %v3561
      %v3610 = vpack.c.bf16 %v3562, %v3562
      %v3611 = vpack.c.bf16 %v3563, %v3563
      %v3612 = vpack.c.bf16 %v3564, %v3564
      %v3613 = vpack.c.bf16 %v3565, %v3565
      %v3614 = vpack.c.bf16 %v3566, %v3566
      %v3615 = vpack.c.bf16 %v3567, %v3567
      %v3616 = vpack.c.bf16 %v3568, %v3568
      %v3617 = vpack.c.bf16 %v3569, %v3569
      %v3618 = vpack.c.bf16 %v3570, %v3570
      %v3619 = vpack.c.bf16 %v3571, %v3571
      %v3620 = vpack.c.bf16 %v3572, %v3572
      %v3621 = vpack.c.bf16 %v3573, %v3573
      %v3622 = vpack.c.bf16 %v3574, %v3574
      %v3623 = vpack.c.bf16 %v3575, %v3575
      %v3624 = vpack.c.bf16 %v3576, %v3576
      %v3625 = vpack.c.bf16 %v3577, %v3577
      %v3626 = vpack.c.bf16 %v3578, %v3578
      %v3627 = vpack.c.bf16 %v3579, %v3579
      %v3628 = vpack.c.bf16 %v3580, %v3580
      %v3629 = vpack.c.bf16 %v3581, %v3581
      %v3630 = vpack.c.bf16 %v3582, %v3582
      %v3631 = vpack.c.bf16 %v3583, %v3583
      %v3632 = vpack.c.bf16 %v3584, %v3584
      %v3633 = vpack.c.bf16 %v3585, %v3585
      %v3634 = vpack.c.bf16 %v3586, %v3586
      %v3635 = vpack.c.bf16 %v3587, %v3587
      %v3636 = vpack.c.bf16 %v3588, %v3588
      %v3637 = vpack.c.bf16 %v3589, %v3589
      %vm3638 = vcmask 125952
      %3639 = vst.msk [vmem:[%s219] sm:$0xf] %vm3638, %v3590
      %3640 = vst.msk [vmem:[%s219 + $0x4] sm:$0xf] %vm3638, %v3591
      %3641 = vst.msk [vmem:[%s219 + $0x8] sm:$0xf] %vm3638, %v3592
      %3642 = vst.msk [vmem:[%s219 + $0xc] sm:$0xf] %vm3638, %v3593
      %3643 = vst.msk [vmem:[%s219 + $0x10] sm:$0xf] %vm3638, %v3594
      %3644 = vst.msk [vmem:[%s219 + $0x14] sm:$0xf] %vm3638, %v3595
      %3645 = vst.msk [vmem:[%s219 + $0x18] sm:$0xf] %vm3638, %v3596
      %3646 = vst.msk [vmem:[%s219 + $0x1c] sm:$0xf] %vm3638, %v3597
      %3647 = vst.msk [vmem:[%s219 + $0x20] sm:$0xf] %vm3638, %v3598
      %3648 = vst.msk [vmem:[%s219 + $0x24] sm:$0xf] %vm3638, %v3599
      %3649 = vst.msk [vmem:[%s219 + $0x28] sm:$0xf] %vm3638, %v3600
      %3650 = vst.msk [vmem:[%s219 + $0x2c] sm:$0xf] %vm3638, %v3601
      %3651 = vst.msk [vmem:[%s219 + $0x30] sm:$0xf] %vm3638, %v3602
      %3652 = vst.msk [vmem:[%s219 + $0x34] sm:$0xf] %vm3638, %v3603
      %3653 = vst.msk [vmem:[%s219 + $0x38] sm:$0xf] %vm3638, %v3604
      %3654 = vst.msk [vmem:[%s219 + $0x3c] sm:$0xf] %vm3638, %v3605
      %3655 = vst.msk [vmem:[%s219 + $0x40] sm:$0xf] %vm3638, %v3606
      %3656 = vst.msk [vmem:[%s219 + $0x44] sm:$0xf] %vm3638, %v3607
      %3657 = vst.msk [vmem:[%s219 + $0x48] sm:$0xf] %vm3638, %v3608
      %3658 = vst.msk [vmem:[%s219 + $0x4c] sm:$0xf] %vm3638, %v3609
      %3659 = vst.msk [vmem:[%s219 + $0x50] sm:$0xf] %vm3638, %v3610
      %3660 = vst.msk [vmem:[%s219 + $0x54] sm:$0xf] %vm3638, %v3611
      %3661 = vst.msk [vmem:[%s219 + $0x58] sm:$0xf] %vm3638, %v3612
      %3662 = vst.msk [vmem:[%s219 + $0x5c] sm:$0xf] %vm3638, %v3613
      %3663 = vst.msk [vmem:[%s219 + $0x60] sm:$0xf] %vm3638, %v3614
      %3664 = vst.msk [vmem:[%s219 + $0x64] sm:$0xf] %vm3638, %v3615
      %3665 = vst.msk [vmem:[%s219 + $0x68] sm:$0xf] %vm3638, %v3616
      %3666 = vst.msk [vmem:[%s219 + $0x6c] sm:$0xf] %vm3638, %v3617
      %3667 = vst.msk [vmem:[%s219 + $0x70] sm:$0xf] %vm3638, %v3618
      %3668 = vst.msk [vmem:[%s219 + $0x74] sm:$0xf] %vm3638, %v3619
      %3669 = vst.msk [vmem:[%s219 + $0x78] sm:$0xf] %vm3638, %v3620
      %3670 = vst.msk [vmem:[%s219 + $0x7c] sm:$0xf] %vm3638, %v3621
      %3671 = vst.msk [vmem:[%s219 + $0x80] sm:$0xf] %vm3638, %v3622
      %3672 = vst.msk [vmem:[%s219 + $0x84] sm:$0xf] %vm3638, %v3623
      %3673 = vst.msk [vmem:[%s219 + $0x88] sm:$0xf] %vm3638, %v3624
      %3674 = vst.msk [vmem:[%s219 + $0x8c] sm:$0xf] %vm3638, %v3625
      %3675 = vst.msk [vmem:[%s219 + $0x90] sm:$0xf] %vm3638, %v3626
      %3676 = vst.msk [vmem:[%s219 + $0x94] sm:$0xf] %vm3638, %v3627
      %3677 = vst.msk [vmem:[%s219 + $0x98] sm:$0xf] %vm3638, %v3628
      %3678 = vst.msk [vmem:[%s219 + $0x9c] sm:$0xf] %vm3638, %v3629
      %3679 = vst.msk [vmem:[%s219 + $0xa0] sm:$0xf] %vm3638, %v3630
      %3680 = vst.msk [vmem:[%s219 + $0xa4] sm:$0xf] %vm3638, %v3631
      %3681 = vst.msk [vmem:[%s219 + $0xa8] sm:$0xf] %vm3638, %v3632
      %3682 = vst.msk [vmem:[%s219 + $0xac] sm:$0xf] %vm3638, %v3633
      %3683 = vst.msk [vmem:[%s219 + $0xb0] sm:$0xf] %vm3638, %v3634
      %3684 = vst.msk [vmem:[%s219 + $0xb4] sm:$0xf] %vm3638, %v3635
      %3685 = vst.msk [vmem:[%s219 + $0xb8] sm:$0xf] %vm3638, %v3636
      %3686 = vst.msk [vmem:[%s219 + $0xbc] sm:$0xf] %vm3638, %v3637
      %s3687 = smul.u32 48, %s20
      %p3688 = scmp.lt.s32.totalorder %s19, 1
      %s3689 = scalar_select %p3688, %s19, 1
      %p3690 = scmp.lt.s32.totalorder %s3687, 47
      %s3691 = scalar_select %p3690, %s3687, 47
      %s3692 = smul.addr %s3689, 48
      %s3693 = sadd.s32 %s3691, %s3692
      %s3694 = smul.addr %s3693, 4
      %s3695 = scalar_lea.vmem %s4, %s3694
      // Predicated region
      $region37: #{_lambda_.2} parent=35 // pred_check
        %p3696 = pneg %p136
      $region38: #{_lambda_.2} parent=35 // pred_check_branch
        %3698 = sbr.rel (%p3696) target = $region40
      $region39: #{_lambda_.2} parent=35 // pred_region
        %s3699 = smul.u32 48, %s20
      $region40: #{_lambda_.2} parent=35 // pred_fallthru
        _
    $region36: #{_lambda_.2} parent=5 // pred_fallthru
      _
    %p3700 = scmp.le.s32.totalorder 2, %s10
    // Predicated region
    $region41: #{_lambda_.2} parent=5 // pred_check
      %p3701 = pneg %p3700
    $region42: #{_lambda_.2} parent=5 // pred_check_branch
      %3703 = sbr.rel (%p3701) target = $region44
    $region43: #{_lambda_.2} parent=5 // pred_region
      %s3704 = ssub.s32 %s10, 2
      // Predicated region
      $region45: #{_lambda_.2} parent=43 // pred_check
        %p3705 = pneg %p142
      $region46: #{_lambda_.2} parent=43 // pred_check_branch
        %3707 = sbr.rel (%p3705) target = $region48
      $region47: #{_lambda_.2} parent=43 // pred_region
        %s3708 = smul.u32 48, %s22
        %p3709 = scmp.lt.s32.totalorder %s21, 1
        %s3710 = scalar_select %p3709, %s21, 1
        %p3711 = scmp.lt.s32.totalorder %s3708, 47
        %s3712 = scalar_select %p3711, %s3708, 47
        %s3713 = smul.addr %s3710, 48
        %s3714 = sadd.s32 %s3712, %s3713
        %s3715 = smul.addr %s3714, 4
        %s3716 = scalar_lea.vmem %s4, %s3715
      $region48: #{_lambda_.2} parent=43 // pred_fallthru
        _
    $region44: #{_lambda_.2} parent=5 // pred_fallthru
      _
  $region6: #{_lambda_.2} parent=0 // loop_footer
    %s14 = sadd.s32 1, %s10
  $region7: #{_lambda_.2} parent=0 // loop_footer_branch
    %9 = sbr.rel target = $region3
  $region8: #{_lambda_.2} parent=0 // loop_exit
    _

</llo_original>
